<compile_context>
chip_gen: v7x
topology: tpu7x:2x2x1
jax: 0.10.0
libtpu: 0.0.40
codegen_flags: <defaults>
</compile_context>

<pallas_src>
import jax
import jax.numpy as jnp
from jax.experimental import pallas as pl
from jax.experimental.pallas import tpu as pltpu


# ------------------------------ Pallas kernel ------------------------------- #

def _bottleneck_kernel(xm_ref, xt_ref, xb_ref, w1_ref, w2_ref, o_ref, ypad_ref):
    # xm_ref : (TH, W, 2C)        row tile of the packed [xr | xi] NHWC input
    # xt/xb  : (1, W, 2C)         one-row halo above / below the tile
    # w1_ref : (2C, 2Cmid)        [[W1r, W1i], [-W1i, W1r]]
    # w2_ref : (9, 2Cmid, 2G)     per-tap [[W2r, W2i], [-W2i, W2r]]
    # o_ref  : (TH, W, 2(C+G))    fused DenseNet concat output [xr | xi | zr | zi]
    # ypad_ref: (TH+2, W+2, 2Cmid) relu(conv1) staged with zero spatial halo
    i = pl.program_id(1)
    last = pl.num_programs(1) - 1

    th, w, c2 = xm_ref.shape
    cmid2 = w1_ref.shape[1]

    x = xm_ref[...]                                            # (TH, W, 2C)

    # --- complex_relu + conv1 (1x1) as one block matmul, then complex_relu ---
    a = jnp.maximum(x, 0.0).reshape(th * w, c2)
    y = jnp.dot(a, w1_ref[...], preferred_element_type=jnp.float32)
    y = jnp.maximum(y, 0.0).reshape(th, w, cmid2)

    # conv1 on the 1-row halos; zero-masked at the image border (== zero pad).
    xt = jnp.where(i == 0, 0.0, xt_ref[...])                   # (1, W, 2C)
    xb = jnp.where(i == last, 0.0, xb_ref[...])
    at = jnp.maximum(xt, 0.0).reshape(w, c2)
    ab = jnp.maximum(xb, 0.0).reshape(w, c2)
    yt = jnp.maximum(jnp.dot(at, w1_ref[...], preferred_element_type=jnp.float32), 0.0)
    yb = jnp.maximum(jnp.dot(ab, w1_ref[...], preferred_element_type=jnp.float32), 0.0)

    # --- stage relu(conv1) in the zero-padded scratch (no axis-0 concatenate) ---
    zc = jnp.zeros((th + 2, 1, cmid2), jnp.float32)
    ypad_ref[:, 0:1, :] = zc                                   # width halo (zeros)
    ypad_ref[:, w + 1:w + 2, :] = zc
    ypad_ref[0:1, 1:w + 1, :] = yt.reshape(1, w, cmid2)        # row halos
    ypad_ref[th + 1:th + 2, 1:w + 1, :] = yb.reshape(1, w, cmid2)
    ypad_ref[1:th + 1, 1:w + 1, :] = y                         # interior

    # --- conv2 (3x3, pad=1): 9 shifted taps accumulated on the MXU ---
    z = None
    for k in range(9):
        ky, kx = divmod(k, 3)
        tap = ypad_ref[ky:ky + th, kx:kx + w, :].reshape(th * w, cmid2)
        zk = jnp.dot(tap, w2_ref[k], preferred_element_type=jnp.float32)
        z = zk if z is None else z + zk
    z = z.reshape(th, w, w2_ref.shape[2])                      # (TH, W, 2G)

    # --- fused DenseNet channel concat, single full-width store ---
    o_ref[...] = jnp.concatenate([x, z], axis=-1)


# ------------------------------ Tile selection ------------------------------- #

def _pick_row_tile(n, h, w, c2, cg2, cmid2, budget_bytes, row_tile):
    """Largest divisor of H whose per-step VMEM footprint fits the budget."""
    cap = h if row_tile is None else max(1, min(row_tile, h))
    best = 1
    for th in range(1, cap + 1):
        if h % th:
            continue
        # keep >= 2 grid points on a parallel axis when N == 1 (v7x megacore)
        if n == 1 and h > 1 and th == h:
            continue
        step_bytes = 4 * (2 * th * w * c2            # double-buffered input tile
                          + 4 * w * c2               # two halo rows, double-buffered
                          + 2 * th * w * cg2         # double-buffered output tile
                          + (th + 2) * (w + 2) * cmid2)  # y scratch
        if step_bytes <= budget_bytes:
            best = th
    # TODO(synk): for H not divisible by any sizeable tile (prime-ish H) a cdiv
    # grid with ragged-row masking would avoid falling back to tiny tiles.
    return best


# ------------------------------ Module forward ------------------------------ #

def bottleneck_forward(xr, xi, params, *, row_tile=None):
    """xr, xi: (N, C, H, W) float32 (NCHW). Returns (N, C+growthRate, H, W) pair."""
    n, c, h, w = xr.shape
    w1r, w1i = params["conv1_wr"], params["conv1_wi"]              # (C, Cmid)
    cmid = w1r.shape[1]
    g = params["conv2_wr"].shape[-1]

    c2, g2, cmid2, cg2 = 2 * c, 2 * g, 2 * cmid, 2 * (c + g)

    # Block-matrix weights for the complex matmuls (tiny, built once per trace).
    w1 = jnp.concatenate(
        [jnp.concatenate([w1r, w1i], axis=1),
         jnp.concatenate([-w1i, w1r], axis=1)], axis=0)            # (2C, 2Cmid)
    w2r = params["conv2_wr"].reshape(9, cmid, g)                   # (ky*3+kx, Cmid, G)
    w2i = params["conv2_wi"].reshape(9, cmid, g)
    w2 = jnp.concatenate(
        [jnp.concatenate([w2r, w2i], axis=-1),
         jnp.concatenate([-w2i, w2r], axis=-1)], axis=1)           # (9, 2Cmid, 2G)

    # NCHW -> NHWC with real/imag packed on the channel (lane) dim: [xr | xi].
    x = jnp.concatenate([jnp.transpose(xr, (0, 2, 3, 1)),
                         jnp.transpose(xi, (0, 2, 3, 1))], axis=-1)  # (N, H, W, 2C)

    th = _pick_row_tile(n, h, w, c2, cg2, cmid2,
                        budget_bytes=24 * 1024 * 1024, row_tile=row_tile)

    x_main = pl.BlockSpec((None, th, w, c2), lambda b, i: (b, i, 0, 0))
    x_top = pl.BlockSpec((None, 1, w, c2),
                         lambda b, i: (b, jnp.maximum(i * th - 1, 0), 0, 0))
    x_bot = pl.BlockSpec((None, 1, w, c2),
                         lambda b, i: (b, jnp.minimum((i + 1) * th, h - 1), 0, 0))
    w1_spec = pl.BlockSpec((c2, cmid2), lambda b, i: (0, 0))         # VMEM-resident
    w2_spec = pl.BlockSpec((9, cmid2, g2), lambda b, i: (0, 0, 0))
    out_spec = pl.BlockSpec((None, th, w, cg2), lambda b, i: (b, i, 0, 0))

    flops = 2 * n * h * w * (c2 * cmid2 + 9 * cmid2 * g2)
    bytes_accessed = 4 * n * h * w * (c2 + cg2)

    out = pl.pallas_call(
        _bottleneck_kernel,
        out_shape=jax.ShapeDtypeStruct((n, h, w, cg2), jnp.float32),
        grid=(n, h // th),
        in_specs=[x_main, x_top, x_bot, w1_spec, w2_spec],
        out_specs=out_spec,
        scratch_shapes=[pltpu.VMEM((th + 2, w + 2, cmid2), jnp.float32)],
        compiler_params=pltpu.CompilerParams(
            dimension_semantics=("parallel", "parallel"),
            vmem_limit_bytes=48 * 1024 * 1024),
        cost_estimate=pl.CostEstimate(flops=flops, transcendentals=0,
                                      bytes_accessed=bytes_accessed),
    )(x, x, x, w1, w2)

    # Packed output layout is [xr(C) | xi(C) | zr(G) | zi(G)]; unpack + NCHW.
    out_r = jnp.concatenate([out[..., :c], out[..., c2:c2 + g]], axis=-1)
    out_i = jnp.concatenate([out[..., c:c2], out[..., c2 + g:]], axis=-1)
    return (jnp.transpose(out_r, (0, 3, 1, 2)),
            jnp.transpose(out_i, (0, 3, 1, 2)))


# ------------------------------ Param init ---------------------------------- #

def init_params(key, n_channels, growth_rate):
    """Deterministic synthetic weights, stored in kernel-friendly layouts:
    conv1: (Cin, Cout), conv2: (kh, kw, Cin, Cout)."""
    inter = 4 * growth_rate
    k1, k2, k3, k4 = jax.random.split(key, 4)
    s1 = 1.0 / jnp.sqrt(n_channels * 1 * 1)
    s2 = 1.0 / jnp.sqrt(inter * 3 * 3)
    return {
        "conv1_wr": jax.random.uniform(k1, (n_channels, inter), jnp.float32, -s1, s1),
        "conv1_wi": jax.random.uniform(k2, (n_channels, inter), jnp.float32, -s1, s1),
        "conv2_wr": jax.random.uniform(k3, (3, 3, inter, growth_rate), jnp.float32, -s2, s2),
        "conv2_wi": jax.random.uniform(k4, (3, 3, inter, growth_rate), jnp.float32, -s2, s2),
    }


# ------------------------------ Pure-JAX reference --------------------------- #

def reference_forward(xr, xi, params):
    def conv(x, w, padding):
        return jax.lax.conv_general_dilated(
            x, w, (1, 1), padding, dimension_numbers=("NHWC", "HWIO", "NHWC"))

    def cconv(ar, ai, wr, wi, padding):
        return (conv(ar, wr, padding) - conv(ai, wi, padding),
                conv(ai, wr, padding) + conv(ar, wi, padding))

    ar = jnp.maximum(jnp.transpose(xr, (0, 2, 3, 1)), 0.0)
    ai = jnp.maximum(jnp.transpose(xi, (0, 2, 3, 1)), 0.0)
    w1r = params["conv1_wr"][None, None]
    w1i = params["conv1_wi"][None, None]
    yr, yi = cconv(ar, ai, w1r, w1i, "VALID")
    yr, yi = jnp.maximum(yr, 0.0), jnp.maximum(yi, 0.0)
    zr, zi = cconv(yr, yi, params["conv2_wr"], params["conv2_wi"], ((1, 1), (1, 1)))
    zr = jnp.transpose(zr, (0, 3, 1, 2))
    zi = jnp.transpose(zi, (0, 3, 1, 2))
    return jnp.concatenate([xr, zr], 1), jnp.concatenate([xi, zi], 1)


# ---------------------------------- Main ------------------------------------ #

if __name__ == "__main__":
    N, C, H, W = 2, 4, 16, 16
    GROWTH = 4

    key = jax.random.PRNGKey(0)
    kx1, kx2, kp = jax.random.split(key, 3)
    xr = jax.random.normal(kx1, (N, C, H, W), jnp.float32)
    xi = jax.random.normal(kx2, (N, C, H, W), jnp.float32)
    params = init_params(kp, C, GROWTH)

    out_r, out_i = jax.jit(bottleneck_forward)(xr, xi, params)
    jax.block_until_ready((out_r, out_i))

    assert out_r.shape == (N, C + GROWTH, H, W)
    assert out_i.shape == (N, C + GROWTH, H, W)

    ref_r, ref_i = reference_forward(xr, xi, params)
    assert jnp.allclose(out_r, ref_r, atol=1e-4, rtol=1e-4)
    assert jnp.allclose(out_i, ref_i, atol=1e-4, rtol=1e-4)

    print("KERNEL_OK")
</pallas_src>

<mosaic_0001>
module attributes {stable_mosaic.version = 11 : i64} {
  func.func @_bottleneck_kernel(%arg0: i32, %arg1: i32, %arg2: memref<1x16x16x8xf32, #tpu.memory_space<vmem>>, %arg3: memref<1x1x16x8xf32, #tpu.memory_space<vmem>>, %arg4: memref<1x1x16x8xf32, #tpu.memory_space<vmem>>, %arg5: memref<8x32xf32, #tpu.memory_space<vmem>>, %arg6: memref<9x32x8xf32, #tpu.memory_space<vmem>>, %arg7: memref<1x16x16x16xf32, #tpu.memory_space<vmem>>, %arg8: memref<18x18x32xf32, #tpu.memory_space<vmem>>) attributes {dimension_semantics = [#tpu.dimension_semantics<parallel>, #tpu.dimension_semantics<parallel>], iteration_bounds = array<i64: 2, 1>, scalar_prefetch = 0 : i64, scratch_operands = 1 : i64, tpu.core_type = #tpu.core_type<tc>, window_params = [{transform_indices = @transform_0, window_bounds = array<i64: 1, 16, 16, 8>}, {transform_indices = @transform_1, window_bounds = array<i64: 1, 1, 16, 8>}, {transform_indices = @transform_2, window_bounds = array<i64: 1, 1, 16, 8>}, {pipeline_mode = #tpu.pipeline_mode<synchronous>, transform_indices = @transform_3, window_bounds = array<i64: 8, 32>}, {pipeline_mode = #tpu.pipeline_mode<synchronous>, transform_indices = @transform_4, window_bounds = array<i64: 9, 32, 8>}, {transform_indices = @transform_5, window_bounds = array<i64: 1, 16, 16, 16>}]} {
    %c0 = arith.constant 0 : index
    %c0_0 = arith.constant 0 : index
    %c0_1 = arith.constant 0 : index
    %c0_2 = arith.constant 0 : index
    %0 = vector.load %arg2[%c0, %c0_0, %c0_1, %c0_2] : memref<1x16x16x8xf32, #tpu.memory_space<vmem>>, vector<1x16x16x8xf32>
    %1 = vector.shape_cast %0 : vector<1x16x16x8xf32> to vector<16x16x8xf32>
    %cst = arith.constant 0.000000e+00 : f32
    %2 = vector.broadcast %cst : f32 to vector<16x16x8xf32>
    %3 = arith.maximumf %1, %2 : vector<16x16x8xf32>
    %4 = vector.shape_cast %3 : vector<16x16x8xf32> to vector<256x8xf32>
    %c0_3 = arith.constant 0 : index
    %c0_4 = arith.constant 0 : index
    %5 = vector.load %arg5[%c0_3, %c0_4] : memref<8x32xf32, #tpu.memory_space<vmem>>, vector<8x32xf32>
    %cst_5 = arith.constant dense<0.000000e+00> : vector<256x32xf32>
    %6 = tpu.matmul %4, %5, %cst_5 {dimension_numbers = #tpu.dot_dimension_numbers<[1], [0], [0], [1], [0, 0, 1, 1], [], []>} : vector<256x8xf32>, vector<8x32xf32>, vector<256x32xf32> -> vector<256x32xf32>
    %cst_6 = arith.constant 0.000000e+00 : f32
    %7 = vector.broadcast %cst_6 : f32 to vector<256x32xf32>
    %8 = arith.maximumf %6, %7 : vector<256x32xf32>
    %9 = vector.shape_cast %8 : vector<256x32xf32> to vector<16x16x32xf32>
    %c0_i32 = arith.constant 0 : i32
    %10 = arith.cmpi eq, %arg1, %c0_i32 : i32
    %c0_7 = arith.constant 0 : index
    %c0_8 = arith.constant 0 : index
    %c0_9 = arith.constant 0 : index
    %c0_10 = arith.constant 0 : index
    %11 = vector.load %arg3[%c0_7, %c0_8, %c0_9, %c0_10] : memref<1x1x16x8xf32, #tpu.memory_space<vmem>>, vector<1x1x16x8xf32>
    %12 = vector.shape_cast %11 : vector<1x1x16x8xf32> to vector<1x16x8xf32>
    %cst_11 = arith.constant 0.000000e+00 : f32
    %13 = vector.broadcast %cst_11 : f32 to vector<1x16x8xf32>
    %14 = arith.select %10, %13, %12 : vector<1x16x8xf32>
    %c0_i32_12 = arith.constant 0 : i32
    %15 = arith.cmpi eq, %arg1, %c0_i32_12 : i32
    %c0_13 = arith.constant 0 : index
    %c0_14 = arith.constant 0 : index
    %c0_15 = arith.constant 0 : index
    %c0_16 = arith.constant 0 : index
    %16 = vector.load %arg4[%c0_13, %c0_14, %c0_15, %c0_16] : memref<1x1x16x8xf32, #tpu.memory_space<vmem>>, vector<1x1x16x8xf32>
    %17 = vector.shape_cast %16 : vector<1x1x16x8xf32> to vector<1x16x8xf32>
    %cst_17 = arith.constant 0.000000e+00 : f32
    %18 = vector.broadcast %cst_17 : f32 to vector<1x16x8xf32>
    %19 = arith.select %15, %18, %17 : vector<1x16x8xf32>
    %cst_18 = arith.constant 0.000000e+00 : f32
    %20 = vector.broadcast %cst_18 : f32 to vector<1x16x8xf32>
    %21 = arith.maximumf %14, %20 : vector<1x16x8xf32>
    %22 = vector.shape_cast %21 : vector<1x16x8xf32> to vector<16x8xf32>
    %cst_19 = arith.constant 0.000000e+00 : f32
    %23 = vector.broadcast %cst_19 : f32 to vector<1x16x8xf32>
    %24 = arith.maximumf %19, %23 : vector<1x16x8xf32>
    %25 = vector.shape_cast %24 : vector<1x16x8xf32> to vector<16x8xf32>
    %c0_20 = arith.constant 0 : index
    %c0_21 = arith.constant 0 : index
    %26 = vector.load %arg5[%c0_20, %c0_21] : memref<8x32xf32, #tpu.memory_space<vmem>>, vector<8x32xf32>
    %cst_22 = arith.constant dense<0.000000e+00> : vector<16x32xf32>
    %27 = tpu.matmul %22, %26, %cst_22 {dimension_numbers = #tpu.dot_dimension_numbers<[1], [0], [0], [1], [0, 0, 1, 1], [], []>} : vector<16x8xf32>, vector<8x32xf32>, vector<16x32xf32> -> vector<16x32xf32>
    %cst_23 = arith.constant 0.000000e+00 : f32
    %28 = vector.broadcast %cst_23 : f32 to vector<16x32xf32>
    %29 = arith.maximumf %27, %28 : vector<16x32xf32>
    %c0_24 = arith.constant 0 : index
    %c0_25 = arith.constant 0 : index
    %30 = vector.load %arg5[%c0_24, %c0_25] : memref<8x32xf32, #tpu.memory_space<vmem>>, vector<8x32xf32>
    %cst_26 = arith.constant dense<0.000000e+00> : vector<16x32xf32>
    %31 = tpu.matmul %25, %30, %cst_26 {dimension_numbers = #tpu.dot_dimension_numbers<[1], [0], [0], [1], [0, 0, 1, 1], [], []>} : vector<16x8xf32>, vector<8x32xf32>, vector<16x32xf32> -> vector<16x32xf32>
    %cst_27 = arith.constant 0.000000e+00 : f32
    %32 = vector.broadcast %cst_27 : f32 to vector<16x32xf32>
    %33 = arith.maximumf %31, %32 : vector<16x32xf32>
    %cst_28 = arith.constant 0.000000e+00 : f32
    %34 = vector.broadcast %cst_28 : f32 to vector<18x1x32xf32>
    %c0_29 = arith.constant 0 : index
    %c0_30 = arith.constant 0 : index
    %c0_31 = arith.constant 0 : index
    %35 = vector.load %arg8[%c0_29, %c0_30, %c0_31] : memref<18x18x32xf32, #tpu.memory_space<vmem>>, vector<18x1x32xf32>
    tpu.vector_store %arg8[%c0_29, %c0_30, %c0_31], %34 {strides = array<i32>} : memref<18x18x32xf32, #tpu.memory_space<vmem>>, vector<18x1x32xf32>,
    %c0_32 = arith.constant 0 : index
    %c17 = arith.constant 17 : index
    %c0_33 = arith.constant 0 : index
    %36 = vector.load %arg8[%c0_32, %c17, %c0_33] : memref<18x18x32xf32, #tpu.memory_space<vmem>>, vector<18x1x32xf32>
    tpu.vector_store %arg8[%c0_32, %c17, %c0_33], %34 {strides = array<i32>} : memref<18x18x32xf32, #tpu.memory_space<vmem>>, vector<18x1x32xf32>,
    %37 = vector.shape_cast %29 : vector<16x32xf32> to vector<1x16x32xf32>
    %c0_34 = arith.constant 0 : index
    %c1 = arith.constant 1 : index
    %c0_35 = arith.constant 0 : index
    %38 = vector.load %arg8[%c0_34, %c1, %c0_35] : memref<18x18x32xf32, #tpu.memory_space<vmem>>, vector<1x16x32xf32>
    tpu.vector_store %arg8[%c0_34, %c1, %c0_35], %37 {strides = array<i32>} : memref<18x18x32xf32, #tpu.memory_space<vmem>>, vector<1x16x32xf32>,
    %39 = vector.shape_cast %33 : vector<16x32xf32> to vector<1x16x32xf32>
    %c17_36 = arith.constant 17 : index
    %c1_37 = arith.constant 1 : index
    %c0_38 = arith.constant 0 : index
    %40 = vector.load %arg8[%c17_36, %c1_37, %c0_38] : memref<18x18x32xf32, #tpu.memory_space<vmem>>, vector<1x16x32xf32>
    tpu.vector_store %arg8[%c17_36, %c1_37, %c0_38], %39 {strides = array<i32>} : memref<18x18x32xf32, #tpu.memory_space<vmem>>, vector<1x16x32xf32>,
    %c1_39 = arith.constant 1 : index
    %c1_40 = arith.constant 1 : index
    %c0_41 = arith.constant 0 : index
    %41 = vector.load %arg8[%c1_39, %c1_40, %c0_41] : memref<18x18x32xf32, #tpu.memory_space<vmem>>, vector<16x16x32xf32>
    tpu.vector_store %arg8[%c1_39, %c1_40, %c0_41], %9 {strides = array<i32>} : memref<18x18x32xf32, #tpu.memory_space<vmem>>, vector<16x16x32xf32>,
    %c0_42 = arith.constant 0 : index
    %c0_43 = arith.constant 0 : index
    %c0_44 = arith.constant 0 : index
    %42 = vector.load %arg8[%c0_42, %c0_43, %c0_44] : memref<18x18x32xf32, #tpu.memory_space<vmem>>, vector<16x16x32xf32>
    %43 = vector.shape_cast %42 : vector<16x16x32xf32> to vector<256x32xf32>
    %c0_45 = arith.constant 0 : index
    %c0_46 = arith.constant 0 : index
    %c0_47 = arith.constant 0 : index
    %44 = vector.load %arg6[%c0_45, %c0_46, %c0_47] : memref<9x32x8xf32, #tpu.memory_space<vmem>>, vector<1x32x8xf32>
    %45 = vector.shape_cast %44 : vector<1x32x8xf32> to vector<32x8xf32>
    %cst_48 = arith.constant dense<0.000000e+00> : vector<256x8xf32>
    %46 = tpu.matmul %43, %45, %cst_48 {dimension_numbers = #tpu.dot_dimension_numbers<[1], [0], [0], [1], [0, 0, 1, 1], [], []>} : vector<256x32xf32>, vector<32x8xf32>, vector<256x8xf32> -> vector<256x8xf32>
    %c0_49 = arith.constant 0 : index
    %c1_50 = arith.constant 1 : index
    %c0_51 = arith.constant 0 : index
    %47 = vector.load %arg8[%c0_49, %c1_50, %c0_51] : memref<18x18x32xf32, #tpu.memory_space<vmem>>, vector<16x16x32xf32>
    %48 = vector.shape_cast %47 : vector<16x16x32xf32> to vector<256x32xf32>
    %c1_52 = arith.constant 1 : index
    %c0_53 = arith.constant 0 : index
    %c0_54 = arith.constant 0 : index
    %49 = vector.load %arg6[%c1_52, %c0_53, %c0_54] : memref<9x32x8xf32, #tpu.memory_space<vmem>>, vector<1x32x8xf32>
    %50 = vector.shape_cast %49 : vector<1x32x8xf32> to vector<32x8xf32>
    %cst_55 = arith.constant dense<0.000000e+00> : vector<256x8xf32>
    %51 = tpu.matmul %48, %50, %cst_55 {dimension_numbers = #tpu.dot_dimension_numbers<[1], [0], [0], [1], [0, 0, 1, 1], [], []>} : vector<256x32xf32>, vector<32x8xf32>, vector<256x8xf32> -> vector<256x8xf32>
    %52 = arith.addf %46, %51 : vector<256x8xf32>
    %c0_56 = arith.constant 0 : index
    %c2 = arith.constant 2 : index
    %c0_57 = arith.constant 0 : index
    %53 = vector.load %arg8[%c0_56, %c2, %c0_57] : memref<18x18x32xf32, #tpu.memory_space<vmem>>, vector<16x16x32xf32>
    %54 = vector.shape_cast %53 : vector<16x16x32xf32> to vector<256x32xf32>
    %c2_58 = arith.constant 2 : index
    %c0_59 = arith.constant 0 : index
    %c0_60 = arith.constant 0 : index
    %55 = vector.load %arg6[%c2_58, %c0_59, %c0_60] : memref<9x32x8xf32, #tpu.memory_space<vmem>>, vector<1x32x8xf32>
    %56 = vector.shape_cast %55 : vector<1x32x8xf32> to vector<32x8xf32>
    %cst_61 = arith.constant dense<0.000000e+00> : vector<256x8xf32>
    %57 = tpu.matmul %54, %56, %cst_61 {dimension_numbers = #tpu.dot_dimension_numbers<[1], [0], [0], [1], [0, 0, 1, 1], [], []>} : vector<256x32xf32>, vector<32x8xf32>, vector<256x8xf32> -> vector<256x8xf32>
    %58 = arith.addf %52, %57 : vector<256x8xf32>
    %c1_62 = arith.constant 1 : index
    %c0_63 = arith.constant 0 : index
    %c0_64 = arith.constant 0 : index
    %59 = vector.load %arg8[%c1_62, %c0_63, %c0_64] : memref<18x18x32xf32, #tpu.memory_space<vmem>>, vector<16x16x32xf32>
    %60 = vector.shape_cast %59 : vector<16x16x32xf32> to vector<256x32xf32>
    %c3 = arith.constant 3 : index
    %c0_65 = arith.constant 0 : index
    %c0_66 = arith.constant 0 : index
    %61 = vector.load %arg6[%c3, %c0_65, %c0_66] : memref<9x32x8xf32, #tpu.memory_space<vmem>>, vector<1x32x8xf32>
    %62 = vector.shape_cast %61 : vector<1x32x8xf32> to vector<32x8xf32>
    %cst_67 = arith.constant dense<0.000000e+00> : vector<256x8xf32>
    %63 = tpu.matmul %60, %62, %cst_67 {dimension_numbers = #tpu.dot_dimension_numbers<[1], [0], [0], [1], [0, 0, 1, 1], [], []>} : vector<256x32xf32>, vector<32x8xf32>, vector<256x8xf32> -> vector<256x8xf32>
    %64 = arith.addf %58, %63 : vector<256x8xf32>
    %c1_68 = arith.constant 1 : index
    %c1_69 = arith.constant 1 : index
    %c0_70 = arith.constant 0 : index
    %65 = vector.load %arg8[%c1_68, %c1_69, %c0_70] : memref<18x18x32xf32, #tpu.memory_space<vmem>>, vector<16x16x32xf32>
    %66 = vector.shape_cast %65 : vector<16x16x32xf32> to vector<256x32xf32>
    %c4 = arith.constant 4 : index
    %c0_71 = arith.constant 0 : index
    %c0_72 = arith.constant 0 : index
    %67 = vector.load %arg6[%c4, %c0_71, %c0_72] : memref<9x32x8xf32, #tpu.memory_space<vmem>>, vector<1x32x8xf32>
    %68 = vector.shape_cast %67 : vector<1x32x8xf32> to vector<32x8xf32>
    %cst_73 = arith.constant dense<0.000000e+00> : vector<256x8xf32>
    %69 = tpu.matmul %66, %68, %cst_73 {dimension_numbers = #tpu.dot_dimension_numbers<[1], [0], [0], [1], [0, 0, 1, 1], [], []>} : vector<256x32xf32>, vector<32x8xf32>, vector<256x8xf32> -> vector<256x8xf32>
    %70 = arith.addf %64, %69 : vector<256x8xf32>
    %c1_74 = arith.constant 1 : index
    %c2_75 = arith.constant 2 : index
    %c0_76 = arith.constant 0 : index
    %71 = vector.load %arg8[%c1_74, %c2_75, %c0_76] : memref<18x18x32xf32, #tpu.memory_space<vmem>>, vector<16x16x32xf32>
    %72 = vector.shape_cast %71 : vector<16x16x32xf32> to vector<256x32xf32>
    %c5 = arith.constant 5 : index
    %c0_77 = arith.constant 0 : index
    %c0_78 = arith.constant 0 : index
    %73 = vector.load %arg6[%c5, %c0_77, %c0_78] : memref<9x32x8xf32, #tpu.memory_space<vmem>>, vector<1x32x8xf32>
    %74 = vector.shape_cast %73 : vector<1x32x8xf32> to vector<32x8xf32>
    %cst_79 = arith.constant dense<0.000000e+00> : vector<256x8xf32>
    %75 = tpu.matmul %72, %74, %cst_79 {dimension_numbers = #tpu.dot_dimension_numbers<[1], [0], [0], [1], [0, 0, 1, 1], [], []>} : vector<256x32xf32>, vector<32x8xf32>, vector<256x8xf32> -> vector<256x8xf32>
    %76 = arith.addf %70, %75 : vector<256x8xf32>
    %c2_80 = arith.constant 2 : index
    %c0_81 = arith.constant 0 : index
    %c0_82 = arith.constant 0 : index
    %77 = vector.load %arg8[%c2_80, %c0_81, %c0_82] : memref<18x18x32xf32, #tpu.memory_space<vmem>>, vector<16x16x32xf32>
    %78 = vector.shape_cast %77 : vector<16x16x32xf32> to vector<256x32xf32>
    %c6 = arith.constant 6 : index
    %c0_83 = arith.constant 0 : index
    %c0_84 = arith.constant 0 : index
    %79 = vector.load %arg6[%c6, %c0_83, %c0_84] : memref<9x32x8xf32, #tpu.memory_space<vmem>>, vector<1x32x8xf32>
    %80 = vector.shape_cast %79 : vector<1x32x8xf32> to vector<32x8xf32>
    %cst_85 = arith.constant dense<0.000000e+00> : vector<256x8xf32>
    %81 = tpu.matmul %78, %80, %cst_85 {dimension_numbers = #tpu.dot_dimension_numbers<[1], [0], [0], [1], [0, 0, 1, 1], [], []>} : vector<256x32xf32>, vector<32x8xf32>, vector<256x8xf32> -> vector<256x8xf32>
    %82 = arith.addf %76, %81 : vector<256x8xf32>
    %c2_86 = arith.constant 2 : index
    %c1_87 = arith.constant 1 : index
    %c0_88 = arith.constant 0 : index
    %83 = vector.load %arg8[%c2_86, %c1_87, %c0_88] : memref<18x18x32xf32, #tpu.memory_space<vmem>>, vector<16x16x32xf32>
    %84 = vector.shape_cast %83 : vector<16x16x32xf32> to vector<256x32xf32>
    %c7 = arith.constant 7 : index
    %c0_89 = arith.constant 0 : index
    %c0_90 = arith.constant 0 : index
    %85 = vector.load %arg6[%c7, %c0_89, %c0_90] : memref<9x32x8xf32, #tpu.memory_space<vmem>>, vector<1x32x8xf32>
    %86 = vector.shape_cast %85 : vector<1x32x8xf32> to vector<32x8xf32>
    %cst_91 = arith.constant dense<0.000000e+00> : vector<256x8xf32>
    %87 = tpu.matmul %84, %86, %cst_91 {dimension_numbers = #tpu.dot_dimension_numbers<[1], [0], [0], [1], [0, 0, 1, 1], [], []>} : vector<256x32xf32>, vector<32x8xf32>, vector<256x8xf32> -> vector<256x8xf32>
    %88 = arith.addf %82, %87 : vector<256x8xf32>
    %c2_92 = arith.constant 2 : index
    %c2_93 = arith.constant 2 : index
    %c0_94 = arith.constant 0 : index
    %89 = vector.load %arg8[%c2_92, %c2_93, %c0_94] : memref<18x18x32xf32, #tpu.memory_space<vmem>>, vector<16x16x32xf32>
    %90 = vector.shape_cast %89 : vector<16x16x32xf32> to vector<256x32xf32>
    %c8 = arith.constant 8 : index
    %c0_95 = arith.constant 0 : index
    %c0_96 = arith.constant 0 : index
    %91 = vector.load %arg6[%c8, %c0_95, %c0_96] : memref<9x32x8xf32, #tpu.memory_space<vmem>>, vector<1x32x8xf32>
    %92 = vector.shape_cast %91 : vector<1x32x8xf32> to vector<32x8xf32>
    %cst_97 = arith.constant dense<0.000000e+00> : vector<256x8xf32>
    %93 = tpu.matmul %90, %92, %cst_97 {dimension_numbers = #tpu.dot_dimension_numbers<[1], [0], [0], [1], [0, 0, 1, 1], [], []>} : vector<256x32xf32>, vector<32x8xf32>, vector<256x8xf32> -> vector<256x8xf32>
    %94 = arith.addf %88, %93 : vector<256x8xf32>
    %95 = vector.shape_cast %94 : vector<256x8xf32> to vector<16x16x8xf32>
    %96 = tpu.concatenate %1, %95 in 2 : vector<16x16x8xf32>, vector<16x16x8xf32> -> vector<16x16x16xf32>
    %c0_98 = arith.constant 0 : index
    %c0_99 = arith.constant 0 : index
    %c0_100 = arith.constant 0 : index
    %c0_101 = arith.constant 0 : index
    %97 = vector.load %arg7[%c0_98, %c0_99, %c0_100, %c0_101] : memref<1x16x16x16xf32, #tpu.memory_space<vmem>>, vector<1x16x16x16xf32>
    %98 = vector.shape_cast %97 : vector<1x16x16x16xf32> to vector<16x16x16xf32>
    %99 = vector.shape_cast %96 : vector<16x16x16xf32> to vector<1x16x16x16xf32>
    tpu.vector_store %arg7[%c0_98, %c0_99, %c0_100, %c0_101], %99 {strides = array<i32>} : memref<1x16x16x16xf32, #tpu.memory_space<vmem>>, vector<1x16x16x16xf32>,
    return
  }
  func.func @transform_0(%arg0: i32, %arg1: i32) -> (i32, i32, i32, i32) {
    %c0_i32 = arith.constant 0 : i32
    %c0_i32_0 = arith.constant 0 : i32
    %c0_i32_1 = arith.constant 0 : i32
    return %arg0, %arg1, %c0_i32, %c0_i32_0 : i32, i32, i32, i32
  }
  func.func @transform_1(%arg0: i32, %arg1: i32) -> (i32, i32, i32, i32) {
    %c16_i32 = arith.constant 16 : i32
    %0 = arith.muli %arg1, %c16_i32 : i32
    %c1_i32 = arith.constant 1 : i32
    %1 = arith.subi %0, %c1_i32 : i32
    %c0_i32 = arith.constant 0 : i32
    %2 = arith.maxsi %1, %c0_i32 : i32
    %c0_i32_0 = arith.constant 0 : i32
    %c0_i32_1 = arith.constant 0 : i32
    %c0_i32_2 = arith.constant 0 : i32
    return %arg0, %2, %c0_i32_0, %c0_i32_1 : i32, i32, i32, i32
  }
  func.func @transform_2(%arg0: i32, %arg1: i32) -> (i32, i32, i32, i32) {
    %c1_i32 = arith.constant 1 : i32
    %0 = arith.addi %arg1, %c1_i32 : i32
    %c16_i32 = arith.constant 16 : i32
    %1 = arith.muli %0, %c16_i32 : i32
    %c15_i32 = arith.constant 15 : i32
    %2 = arith.minsi %1, %c15_i32 : i32
    %c0_i32 = arith.constant 0 : i32
    %c0_i32_0 = arith.constant 0 : i32
    %c0_i32_1 = arith.constant 0 : i32
    return %arg0, %2, %c0_i32, %c0_i32_0 : i32, i32, i32, i32
  }
  func.func @transform_3(%arg0: i32, %arg1: i32) -> (i32, i32) {
    %c0_i32 = arith.constant 0 : i32
    %c0_i32_0 = arith.constant 0 : i32
    %c0_i32_1 = arith.constant 0 : i32
    return %c0_i32, %c0_i32_0 : i32, i32
  }
  func.func @transform_4(%arg0: i32, %arg1: i32) -> (i32, i32, i32) {
    %c0_i32 = arith.constant 0 : i32
    %c0_i32_0 = arith.constant 0 : i32
    %c0_i32_1 = arith.constant 0 : i32
    %c0_i32_2 = arith.constant 0 : i32
    return %c0_i32, %c0_i32_0, %c0_i32_1 : i32, i32, i32
  }
  func.func @transform_5(%arg0: i32, %arg1: i32) -> (i32, i32, i32, i32) {
    %c0_i32 = arith.constant 0 : i32
    %c0_i32_0 = arith.constant 0 : i32
    %c0_i32_1 = arith.constant 0 : i32
    return %arg0, %arg1, %c0_i32, %c0_i32_0 : i32, i32, i32, i32
  }
}

</mosaic_0001>

<llo_original>
// kernel: neg.2
$region0: #{neg.2}
  #allocation0 [shape = 's32[1]{0}', space=sflag, size = 0x4, scoped, tag = 'scoped memory for neg.2']
  %s0 = inlined_call_operand.vmem [shape: f32[4,16], index: 0, kind: input, shape index: {}]
  %s1 = inlined_call_operand.vmem [shape: f32[4,16], index: 1, kind: output, shape index: {}]
  %v2 = vld [vmem:[%s0] sm:$0xf]
  %3 = xla_tuple %v2
  %4 = xla_tuple %3
  %v5 = vxor.u32 %v2, 2147483648
  %6 = xla_tuple %v5
  %7 = vst [vmem:[%s1] sm:$0xf] %v5

// kernel: neg.3
$region0: #{neg.3}
  #allocation0 [shape = 's32[1]{0}', space=sflag, size = 0x4, scoped, tag = 'scoped memory for neg.3']
  %s0 = inlined_call_operand.vmem [shape: f32[9,16,4], index: 0, kind: input, shape index: {}]
  %s1 = inlined_call_operand.vmem [shape: f32[9,16,4], index: 1, kind: output, shape index: {}]
  %v2 = vld [vmem:[%s0] sm:$0xf]
  %3 = xla_tuple %v2
  %4 = xla_tuple %3
  %v5 = vxor.u32 %v2, 2147483648
  %6 = xla_tuple %v5
  %7 = vst [vmem:[%s1] sm:$0xf] %v5
  %s8 = scalar_lea.vmem %s0, 4
  %v9 = vld [vmem:[%s8] sm:$0xf]
  %10 = xla_tuple %v9
  %11 = xla_tuple %10
  %v12 = vxor.u32 %v9, 2147483648
  %13 = xla_tuple %v12
  %s14 = scalar_lea.vmem %s1, 4
  %15 = vst [vmem:[%s14] sm:$0xf] %v12
  %s16 = scalar_lea.vmem %s0, 8
  %v17 = vld [vmem:[%s16] sm:$0xf]
  %18 = xla_tuple %v17
  %19 = xla_tuple %18
  %v20 = vxor.u32 %v17, 2147483648
  %21 = xla_tuple %v20
  %s22 = scalar_lea.vmem %s1, 8
  %23 = vst [vmem:[%s22] sm:$0xf] %v20
  %s24 = scalar_lea.vmem %s0, 12
  %v25 = vld [vmem:[%s24] sm:$0xf]
  %26 = xla_tuple %v25
  %27 = xla_tuple %26
  %v28 = vxor.u32 %v25, 2147483648
  %29 = xla_tuple %v28
  %s30 = scalar_lea.vmem %s1, 12
  %31 = vst [vmem:[%s30] sm:$0xf] %v28
  %s32 = scalar_lea.vmem %s0, 16
  %v33 = vld [vmem:[%s32] sm:$0xf]
  %34 = xla_tuple %v33
  %35 = xla_tuple %34
  %v36 = vxor.u32 %v33, 2147483648
  %37 = xla_tuple %v36
  %s38 = scalar_lea.vmem %s1, 16
  %39 = vst [vmem:[%s38] sm:$0xf] %v36
  %s40 = scalar_lea.vmem %s0, 20
  %v41 = vld [vmem:[%s40] sm:$0xf]
  %42 = xla_tuple %v41
  %43 = xla_tuple %42
  %v44 = vxor.u32 %v41, 2147483648
  %45 = xla_tuple %v44
  %s46 = scalar_lea.vmem %s1, 20
  %47 = vst [vmem:[%s46] sm:$0xf] %v44
  %s48 = scalar_lea.vmem %s0, 24
  %v49 = vld [vmem:[%s48] sm:$0xf]
  %50 = xla_tuple %v49
  %51 = xla_tuple %50
  %v52 = vxor.u32 %v49, 2147483648
  %53 = xla_tuple %v52
  %s54 = scalar_lea.vmem %s1, 24
  %55 = vst [vmem:[%s54] sm:$0xf] %v52
  %s56 = scalar_lea.vmem %s0, 28
  %v57 = vld [vmem:[%s56] sm:$0xf]
  %58 = xla_tuple %v57
  %59 = xla_tuple %58
  %v60 = vxor.u32 %v57, 2147483648
  %61 = xla_tuple %v60
  %s62 = scalar_lea.vmem %s1, 28
  %63 = vst [vmem:[%s62] sm:$0xf] %v60
  %s64 = scalar_lea.vmem %s0, 32
  %v65 = vld [vmem:[%s64] sm:$0xf]
  %66 = xla_tuple %v65
  %67 = xla_tuple %66
  %v68 = vxor.u32 %v65, 2147483648
  %69 = xla_tuple %v68
  %s70 = scalar_lea.vmem %s1, 32
  %71 = vst [vmem:[%s70] sm:$0xf] %v68

// kernel: bottleneck_forward.1
$region0: #{bottleneck_forward.1}
  #allocation0 [shape = 'u32[]', space=smem, size = 0x4, offset = 0x4, fixed_abs, tag = 'smem constant byte address 0x4 - core index']
  #allocation1 [shape = 'u32[144,128]{1,0:T(1,128)}', space=vmem, size = 0x12000, scoped, tag = 'internal scratch']
  #allocation2 [shape = 'f32[18,18,32]{2,1,0:T(8,128)}', space=vmem, size = 0x36000, scoped, tag = 'scratch operand']
  %s0 = inlined_call_operand.vmem [shape: f32[2,16,16,8], index: 0, kind: input, shape index: {}, may-alias: {0,1,2}]
  %s1 = inlined_call_operand.vmem [shape: f32[2,16,16,8], index: 1, kind: input, shape index: {}, may-alias: {0,1,2}]
  %s2 = inlined_call_operand.vmem [shape: f32[2,16,16,8], index: 2, kind: input, shape index: {}, may-alias: {0,1,2}]
  %s3 = inlined_call_operand.vmem [shape: f32[8,32], index: 3, kind: input, shape index: {}]
  %s4 = inlined_call_operand.vmem [shape: f32[9,32,8], index: 4, kind: input, shape index: {}]
  %s5 = inlined_call_operand.vmem [shape: f32[2,16,16,16], index: 5, kind: output, shape index: {}]
  %s6 = sld [smem:[#allocation0]]
  $region53: #{bottleneck_forward.1} parent=0
    _
  %s8 = ssub.s32 1, %s6
  %s9 = scalar_select 0, %s8, %s6
  loop: start=0, step=1, limit=4
  $region2: #{bottleneck_forward.1} parent=0 // loop_pre_header
    _
  $region3: #{bottleneck_forward.1} parent=0 // loop_header
    %s11 = sphi 0, %s15
    %p12 = scmp.ge.s32.totalorder %s11, 4
    %s18 = sphi 0, %s30
    %s19 = sphi 0, %s26
    %s20 = sphi 0, %s18
    %s21 = sphi 0, %s19
    %s22 = sphi 0, %s20
    %s23 = sphi 0, %s21
    %s35 = sphi 0, %s37
    %s38 = sphi 0, %s35
    %s39 = sphi 0, %s38
    %s55 = sphi 0, %s39
    %s71 = sphi 0, %s73
    %s74 = sphi 0, %s71
    %s75 = sphi 0, %s74
    %s91 = sphi 0, %s75
    %s107 = sphi 0, %s109
    %s110 = sphi 0, %s107
    %s111 = sphi 0, %s110
    %s127 = sphi 0, %s111
    %s131 = sphi 0, %s131
    %s133 = sphi 0, %s131
    %s134 = sphi 0, %s133
    %s148 = sphi 0, %s134
    %s152 = sphi 0, %s152
    %s154 = sphi 0, %s152
    %s155 = sphi 0, %s154
    %s169 = sphi 0, %s155
    %s177 = sphi 0, %s179
    %s180 = sphi 0, %s177
    %s181 = sphi 0, %s180
    %s197 = sphi 0, %s181
  $region4: #{bottleneck_forward.1} parent=0 // loop_header_branch
    %14 = sbr.rel (%p12) target = $region8
  $region5: #{bottleneck_forward.1} parent=0 // loop_body
    %s16 = ssub.s32 %s11, 1
    %s17 = ssub.s32 %s11, 2
    %s24 = sadd.s32 1, %s19
    %p25 = scmp.ge.s32.totalorder %s24, 1
    %s26 = scalar_select %p25, 0, %s24
    %s27 = sadd.s32 1, %s18
    %s28 = scalar_select %p25, %s27, %s18
    %p29 = scmp.ge.s32.totalorder %s28, 2
    %s30 = scalar_select %p29, 0, %s28
    %s31 = ssub.s32 %s18, %s30
    %s32 = ssub.s32 %s19, %s26
    %s33 = sor.u32 %s31, %s32
    %p34 = scmp.eq.s32.totalorder %s33, 0
    %s36 = sadd.s32 %s35, 1
    %s37 = scalar_select %p34, %s35, %s36
    %p40 = pneg %p34
    %p41 = scmp.eq.s32.totalorder %s11, 1
    %p42 = por %p40, %p41
    %p43 = scmp.ne.s32.totalorder %s35, %s38
    %p44 = scmp.eq.s32.totalorder %s11, 0
    %p45 = por %p43, %p44
    %p46 = scmp.ne.s32.totalorder %s35, %s38
    %p47 = scmp.eq.s32.totalorder %s16, 1
    %p48 = por %p46, %p47
    %p49 = scmp.ne.s32.totalorder %s38, %s39
    %p50 = scmp.eq.s32.totalorder %s16, 0
    %p51 = por %p49, %p50
    %p52 = scmp.ne.s32.totalorder %s38, %s39
    %p53 = scmp.eq.s32.totalorder %s17, 1
    %p54 = por %p52, %p53
    %p56 = scmp.ne.s32.totalorder %s39, %s55
    %p57 = scmp.eq.s32.totalorder %s17, 0
    %p58 = por %p56, %p57
    %s59 = smul.u32 %s19, 16
    %s60 = ssub.s32 %s59, 1
    %p61 = scmp.gt.s32.totalorder %s60, 0
    %s62 = scalar_select %p61, %s60, 0
    %s63 = smul.u32 %s26, 16
    %s64 = ssub.s32 %s63, 1
    %p65 = scmp.gt.s32.totalorder %s64, 0
    %s66 = scalar_select %p65, %s64, 0
    %s67 = ssub.s32 %s18, %s30
    %s68 = ssub.s32 %s62, %s66
    %s69 = sor.u32 %s67, %s68
    %p70 = scmp.eq.s32.totalorder %s69, 0
    %s72 = sadd.s32 %s71, 1
    %s73 = scalar_select %p70, %s71, %s72
    %p76 = pneg %p70
    %p77 = scmp.eq.s32.totalorder %s11, 1
    %p78 = por %p76, %p77
    %p79 = scmp.ne.s32.totalorder %s71, %s74
    %p80 = scmp.eq.s32.totalorder %s11, 0
    %p81 = por %p79, %p80
    %p82 = scmp.ne.s32.totalorder %s71, %s74
    %p83 = scmp.eq.s32.totalorder %s16, 1
    %p84 = por %p82, %p83
    %p85 = scmp.ne.s32.totalorder %s74, %s75
    %p86 = scmp.eq.s32.totalorder %s16, 0
    %p87 = por %p85, %p86
    %p88 = scmp.ne.s32.totalorder %s74, %s75
    %p89 = scmp.eq.s32.totalorder %s17, 1
    %p90 = por %p88, %p89
    %p92 = scmp.ne.s32.totalorder %s75, %s91
    %p93 = scmp.eq.s32.totalorder %s17, 0
    %p94 = por %p92, %p93
    %s95 = sadd.s32 %s19, 1
    %s96 = smul.u32 %s95, 16
    %p97 = scmp.lt.s32.totalorder %s96, 15
    %s98 = scalar_select %p97, %s96, 15
    %s99 = sadd.s32 %s26, 1
    %s100 = smul.u32 %s99, 16
    %p101 = scmp.lt.s32.totalorder %s100, 15
    %s102 = scalar_select %p101, %s100, 15
    %s103 = ssub.s32 %s18, %s30
    %s104 = ssub.s32 %s98, %s102
    %s105 = sor.u32 %s103, %s104
    %p106 = scmp.eq.s32.totalorder %s105, 0
    %s108 = sadd.s32 %s107, 1
    %s109 = scalar_select %p106, %s107, %s108
    %p112 = pneg %p106
    %p113 = scmp.eq.s32.totalorder %s11, 1
    %p114 = por %p112, %p113
    %p115 = scmp.ne.s32.totalorder %s107, %s110
    %p116 = scmp.eq.s32.totalorder %s11, 0
    %p117 = por %p115, %p116
    %p118 = scmp.ne.s32.totalorder %s107, %s110
    %p119 = scmp.eq.s32.totalorder %s16, 1
    %p120 = por %p118, %p119
    %p121 = scmp.ne.s32.totalorder %s110, %s111
    %p122 = scmp.eq.s32.totalorder %s16, 0
    %p123 = por %p121, %p122
    %p124 = scmp.ne.s32.totalorder %s110, %s111
    %p125 = scmp.eq.s32.totalorder %s17, 1
    %p126 = por %p124, %p125
    %p128 = scmp.ne.s32.totalorder %s111, %s127
    %p129 = scmp.eq.s32.totalorder %s17, 0
    %p130 = por %p128, %p129
    %s132 = sadd.s32 %s131, 1
    %p135 = scmp.eq.s32.totalorder %s11, 1
    %p136 = scmp.ne.s32.totalorder %s131, %s133
    %p137 = scmp.eq.s32.totalorder %s11, 0
    %p138 = por %p136, %p137
    %p139 = scmp.ne.s32.totalorder %s131, %s133
    %p140 = scmp.eq.s32.totalorder %s16, 1
    %p141 = por %p139, %p140
    %p142 = scmp.ne.s32.totalorder %s133, %s134
    %p143 = scmp.eq.s32.totalorder %s16, 0
    %p144 = por %p142, %p143
    %p145 = scmp.ne.s32.totalorder %s133, %s134
    %p146 = scmp.eq.s32.totalorder %s17, 1
    %p147 = por %p145, %p146
    %p149 = scmp.ne.s32.totalorder %s134, %s148
    %p150 = scmp.eq.s32.totalorder %s17, 0
    %p151 = por %p149, %p150
    %s153 = sadd.s32 %s152, 1
    %p156 = scmp.eq.s32.totalorder %s11, 1
    %p157 = scmp.ne.s32.totalorder %s152, %s154
    %p158 = scmp.eq.s32.totalorder %s11, 0
    %p159 = por %p157, %p158
    %p160 = scmp.ne.s32.totalorder %s152, %s154
    %p161 = scmp.eq.s32.totalorder %s16, 1
    %p162 = por %p160, %p161
    %p163 = scmp.ne.s32.totalorder %s154, %s155
    %p164 = scmp.eq.s32.totalorder %s16, 0
    %p165 = por %p163, %p164
    %p166 = scmp.ne.s32.totalorder %s154, %s155
    %p167 = scmp.eq.s32.totalorder %s17, 1
    %p168 = por %p166, %p167
    %p170 = scmp.ne.s32.totalorder %s155, %s169
    %p171 = scmp.eq.s32.totalorder %s17, 0
    %p172 = por %p170, %p171
    %s173 = ssub.s32 %s18, %s30
    %s174 = ssub.s32 %s19, %s26
    %s175 = sor.u32 %s173, %s174
    %p176 = scmp.eq.s32.totalorder %s175, 0
    %s178 = sadd.s32 %s177, 1
    %s179 = scalar_select %p176, %s177, %s178
    %p182 = pneg %p176
    %p183 = scmp.eq.s32.totalorder %s11, 1
    %p184 = por %p182, %p183
    %p185 = scmp.ne.s32.totalorder %s177, %s180
    %p186 = scmp.eq.s32.totalorder %s11, 0
    %p187 = por %p185, %p186
    %p188 = scmp.ne.s32.totalorder %s177, %s180
    %p189 = scmp.eq.s32.totalorder %s16, 1
    %p190 = por %p188, %p189
    %p191 = scmp.ne.s32.totalorder %s180, %s181
    %p192 = scmp.eq.s32.totalorder %s16, 0
    %p193 = por %p191, %p192
    %p194 = scmp.ne.s32.totalorder %s180, %s181
    %p195 = scmp.eq.s32.totalorder %s17, 1
    %p196 = por %p194, %p195
    %p198 = scmp.ne.s32.totalorder %s181, %s197
    %p199 = scmp.eq.s32.totalorder %s17, 0
    %p200 = por %p198, %p199
    %p201 = scmp.le.s32.totalorder 1, %s11
    %p202 = scmp.lt.s32.totalorder %s11, 3
    %p203 = pnand %p201, %p202
    %p204 = pneg %p203
    // Predicated region
    $region9: #{bottleneck_forward.1} parent=5 // pred_check
      _
    $region10: #{bottleneck_forward.1} parent=5 // pred_check_branch
      %206 = sbr.rel (%p203) target = $region12
    $region11: #{bottleneck_forward.1} parent=5 // pred_region
      %s207 = ssub.s32 %s11, 1
      // Predicated region
      $region13: #{bottleneck_forward.1} parent=11 // pred_check
        %p208 = pneg %p144
      $region14: #{bottleneck_forward.1} parent=11 // pred_check_branch
        %210 = sbr.rel (%p208) target = $region16
      $region15: #{bottleneck_forward.1} parent=11 // pred_region
        _
      $region16: #{bottleneck_forward.1} parent=11 // pred_fallthru
        _
      // Predicated region
      $region17: #{bottleneck_forward.1} parent=11 // pred_check
        %p211 = pneg %p165
      $region18: #{bottleneck_forward.1} parent=11 // pred_check_branch
        %213 = sbr.rel (%p211) target = $region20
      $region19: #{bottleneck_forward.1} parent=11 // pred_region
        _
      $region20: #{bottleneck_forward.1} parent=11 // pred_fallthru
        _
    $region12: #{bottleneck_forward.1} parent=5 // pred_fallthru
      _
    %p214 = scmp.lt.s32.totalorder %s11, 2
    // Predicated region
    $region21: #{bottleneck_forward.1} parent=5 // pred_check
      %p215 = pneg %p214
    $region22: #{bottleneck_forward.1} parent=5 // pred_check_branch
      %217 = sbr.rel (%p215) target = $region24
    $region23: #{bottleneck_forward.1} parent=5 // pred_region
      // Predicated region
      $region25: #{bottleneck_forward.1} parent=23 // pred_check
        %p218 = pneg %p45
      $region26: #{bottleneck_forward.1} parent=23 // pred_check_branch
        %220 = sbr.rel (%p218) target = $region28
      $region27: #{bottleneck_forward.1} parent=23 // pred_region
        %s221 = smul.u32 16, %s19
        %p222 = scmp.lt.s32.totalorder %s18, 1
        %s223 = scalar_select %p222, %s18, 1
        %p224 = scmp.lt.s32.totalorder %s221, 15
        %s225 = scalar_select %p224, %s221, 15
        %s226 = smul.addr %s225, 2
        %s227 = smul.addr %s223, 32
        %s228 = sadd.s32 %s226, %s227
        %s229 = smul.addr %s228, 8
        %s230 = scalar_lea.vmem %s0, %s229
        %s231 = smul.u32 16, %s19
      $region28: #{bottleneck_forward.1} parent=23 // pred_fallthru
        _
      // Predicated region
      $region29: #{bottleneck_forward.1} parent=23 // pred_check
        %p232 = pneg %p81
      $region30: #{bottleneck_forward.1} parent=23 // pred_check_branch
        %234 = sbr.rel (%p232) target = $region32
      $region31: #{bottleneck_forward.1} parent=23 // pred_region
        %s235 = smul.u32 %s19, 16
        %s236 = ssub.s32 %s235, 1
        %p237 = scmp.gt.s32.totalorder %s236, 0
        %s238 = scalar_select %p237, %s236, 0
        %p239 = scmp.lt.s32.totalorder %s18, 1
        %s240 = scalar_select %p239, %s18, 1
        %p241 = scmp.lt.s32.totalorder %s238, 15
        %s242 = scalar_select %p241, %s238, 15
        %s243 = smul.addr %s242, 2
        %s244 = smul.addr %s240, 32
        %s245 = sadd.s32 %s243, %s244
        %s246 = smul.addr %s245, 8
        %s247 = scalar_lea.vmem %s1, %s246
        %s248 = smul.u32 %s19, 16
        %s249 = ssub.s32 %s248, 1
        %p250 = scmp.gt.s32.totalorder %s249, 0
        %s251 = scalar_select %p250, %s249, 0
      $region32: #{bottleneck_forward.1} parent=23 // pred_fallthru
        _
      // Predicated region
      $region33: #{bottleneck_forward.1} parent=23 // pred_check
        %p252 = pneg %p117
      $region34: #{bottleneck_forward.1} parent=23 // pred_check_branch
        %254 = sbr.rel (%p252) target = $region36
      $region35: #{bottleneck_forward.1} parent=23 // pred_region
        %s255 = sadd.s32 %s19, 1
        %s256 = smul.u32 %s255, 16
        %p257 = scmp.lt.s32.totalorder %s256, 15
        %s258 = scalar_select %p257, %s256, 15
        %p259 = scmp.lt.s32.totalorder %s18, 1
        %s260 = scalar_select %p259, %s18, 1
        %p261 = scmp.lt.s32.totalorder %s258, 15
        %s262 = scalar_select %p261, %s258, 15
        %s263 = smul.addr %s262, 2
        %s264 = smul.addr %s260, 32
        %s265 = sadd.s32 %s263, %s264
        %s266 = smul.addr %s265, 8
        %s267 = scalar_lea.vmem %s2, %s266
        %s268 = sadd.s32 %s19, 1
        %s269 = smul.u32 %s268, 16
        %p270 = scmp.lt.s32.totalorder %s269, 15
        %s271 = scalar_select %p270, %s269, 15
      $region36: #{bottleneck_forward.1} parent=23 // pred_fallthru
        _
    $region24: #{bottleneck_forward.1} parent=5 // pred_fallthru
      _
    %p272 = scmp.le.s32.totalorder 1, %s11
    %p273 = scmp.lt.s32.totalorder %s11, 3
    %p274 = pnand %p272, %p273
    %p275 = pneg %p274
    // Predicated region
    $region37: #{bottleneck_forward.1} parent=5 // pred_check
      _
    $region38: #{bottleneck_forward.1} parent=5 // pred_check_branch
      %277 = sbr.rel (%p274) target = $region40
    $region39: #{bottleneck_forward.1} parent=5 // pred_region
      %s278 = ssub.s32 %s11, 1
      %s279 = smul.u32 16, %s21
      %p280 = scmp.lt.s32.totalorder %s20, 1
      %s281 = scalar_select %p280, %s20, 1
      %p282 = scmp.lt.s32.totalorder %s279, 15
      %s283 = scalar_select %p282, %s279, 15
      %s284 = smul.addr %s283, 2
      %s285 = smul.addr %s281, 32
      %s286 = sadd.s32 %s284, %s285
      %s287 = smul.addr %s286, 8
      %s288 = scalar_lea.vmem %s0, %s287
      %p289 = pneg %p51
      %p290 = pneg %p48
      %s291 = smul.u32 %s21, 16
      %s292 = ssub.s32 %s291, 1
      %p293 = scmp.gt.s32.totalorder %s292, 0
      %s294 = scalar_select %p293, %s292, 0
      %p295 = scmp.lt.s32.totalorder %s20, 1
      %s296 = scalar_select %p295, %s20, 1
      %p297 = scmp.lt.s32.totalorder %s294, 15
      %s298 = scalar_select %p297, %s294, 15
      %s299 = smul.addr %s298, 2
      %s300 = smul.addr %s296, 32
      %s301 = sadd.s32 %s299, %s300
      %s302 = smul.addr %s301, 8
      %s303 = scalar_lea.vmem %s1, %s302
      %p304 = pneg %p87
      %p305 = pneg %p84
      %s306 = sadd.s32 %s21, 1
      %s307 = smul.u32 %s306, 16
      %p308 = scmp.lt.s32.totalorder %s307, 15
      %s309 = scalar_select %p308, %s307, 15
      %p310 = scmp.lt.s32.totalorder %s20, 1
      %s311 = scalar_select %p310, %s20, 1
      %p312 = scmp.lt.s32.totalorder %s309, 15
      %s313 = scalar_select %p312, %s309, 15
      %s314 = smul.addr %s313, 2
      %s315 = smul.addr %s311, 32
      %s316 = sadd.s32 %s314, %s315
      %s317 = smul.addr %s316, 8
      %s318 = scalar_lea.vmem %s2, %s317
      %p319 = pneg %p123
      %p320 = pneg %p120
      %p321 = pneg %p144
      %p322 = pneg %p141
      %p323 = pneg %p165
      %p324 = pneg %p162
      %p325 = pneg %p193
      %p326 = pneg %p190
      %s327 = smul.u32 16, %s21
      %p328 = scmp.lt.s32.totalorder %s20, 1
      %s329 = scalar_select %p328, %s20, 1
      %p330 = scmp.lt.s32.totalorder %s327, 15
      %s331 = scalar_select %p330, %s327, 15
      %s332 = smul.addr %s331, 2
      %s333 = smul.addr %s329, 32
      %s334 = sadd.s32 %s332, %s333
      %s335 = smul.addr %s334, 8
      %s336 = scalar_lea.vmem %s5, %s335
      %s337 = smul.u32 16, %s21
      %p338 = scmp.lt.s32.totalorder %s20, 1
      %s339 = scalar_select %p338, %s20, 1
      %p340 = scmp.lt.s32.totalorder %s337, 15
      %s341 = scalar_select %p340, %s337, 15
      %s342 = smul.addr %s341, 2
      %s343 = smul.addr %s339, 32
      %s344 = sadd.s32 %s342, %s343
      %s345 = smul.addr %s344, 8
      %s346 = scalar_lea.vmem %s0, %s345
      %s347 = smul.u32 16, %s21
      %s348 = smul.u32 %s21, 16
      %s349 = ssub.s32 %s348, 1
      %p350 = scmp.gt.s32.totalorder %s349, 0
      %s351 = scalar_select %p350, %s349, 0
      %p352 = scmp.lt.s32.totalorder %s20, 1
      %s353 = scalar_select %p352, %s20, 1
      %p354 = scmp.lt.s32.totalorder %s351, 15
      %s355 = scalar_select %p354, %s351, 15
      %s356 = smul.addr %s355, 2
      %s357 = smul.addr %s353, 32
      %s358 = sadd.s32 %s356, %s357
      %s359 = smul.addr %s358, 8
      %s360 = scalar_lea.vmem %s1, %s359
      %s361 = smul.u32 %s21, 16
      %s362 = ssub.s32 %s361, 1
      %p363 = scmp.gt.s32.totalorder %s362, 0
      %s364 = scalar_select %p363, %s362, 0
      %s365 = sadd.s32 %s21, 1
      %s366 = smul.u32 %s365, 16
      %p367 = scmp.lt.s32.totalorder %s366, 15
      %s368 = scalar_select %p367, %s366, 15
      %p369 = scmp.lt.s32.totalorder %s20, 1
      %s370 = scalar_select %p369, %s20, 1
      %p371 = scmp.lt.s32.totalorder %s368, 15
      %s372 = scalar_select %p371, %s368, 15
      %s373 = smul.addr %s372, 2
      %s374 = smul.addr %s370, 32
      %s375 = sadd.s32 %s373, %s374
      %s376 = smul.addr %s375, 8
      %s377 = scalar_lea.vmem %s2, %s376
      %s378 = sadd.s32 %s21, 1
      %s379 = smul.u32 %s378, 16
      %p380 = scmp.lt.s32.totalorder %s379, 15
      %s381 = scalar_select %p380, %s379, 15
      %s382 = smul.u32 16, %s21
      %p383 = scmp.lt.s32.totalorder %s20, 1
      %s384 = scalar_select %p383, %s20, 1
      %p385 = scmp.lt.s32.totalorder %s382, 15
      %s386 = scalar_select %p385, %s382, 15
      %s387 = smul.addr %s386, 2
      %s388 = smul.addr %s384, 32
      %s389 = sadd.s32 %s387, %s388
      %s390 = smul.addr %s389, 8
      %s391 = scalar_lea.vmem %s5, %s390
      %s392 = smul.u32 16, %s21
      %v393 = vld [vmem:[%s346] sm:$0xff]
      %v394 = vld [vmem:[%s346 + $0x8] sm:$0xff]
      %v395 = vld [vmem:[%s346 + $0x10] sm:$0xff]
      %v396 = vld [vmem:[%s346 + $0x18] sm:$0xff]
      %v397 = vld [vmem:[%s346 + $0x20] sm:$0xff]
      %v398 = vld [vmem:[%s346 + $0x28] sm:$0xff]
      %v399 = vld [vmem:[%s346 + $0x30] sm:$0xff]
      %v400 = vld [vmem:[%s346 + $0x38] sm:$0xff]
      %v401 = vld [vmem:[%s346 + $0x40] sm:$0xff]
      %v402 = vld [vmem:[%s346 + $0x48] sm:$0xff]
      %v403 = vld [vmem:[%s346 + $0x50] sm:$0xff]
      %v404 = vld [vmem:[%s346 + $0x58] sm:$0xff]
      %v405 = vld [vmem:[%s346 + $0x60] sm:$0xff]
      %v406 = vld [vmem:[%s346 + $0x68] sm:$0xff]
      %v407 = vld [vmem:[%s346 + $0x70] sm:$0xff]
      %v408 = vld [vmem:[%s346 + $0x78] sm:$0xff]
      %v409 = vld [vmem:[%s346 + $0x80] sm:$0xff]
      %v410 = vld [vmem:[%s346 + $0x88] sm:$0xff]
      %v411 = vld [vmem:[%s346 + $0x90] sm:$0xff]
      %v412 = vld [vmem:[%s346 + $0x98] sm:$0xff]
      %v413 = vld [vmem:[%s346 + $0xa0] sm:$0xff]
      %v414 = vld [vmem:[%s346 + $0xa8] sm:$0xff]
      %v415 = vld [vmem:[%s346 + $0xb0] sm:$0xff]
      %v416 = vld [vmem:[%s346 + $0xb8] sm:$0xff]
      %v417 = vld [vmem:[%s346 + $0xc0] sm:$0xff]
      %v418 = vld [vmem:[%s346 + $0xc8] sm:$0xff]
      %v419 = vld [vmem:[%s346 + $0xd0] sm:$0xff]
      %v420 = vld [vmem:[%s346 + $0xd8] sm:$0xff]
      %v421 = vld [vmem:[%s346 + $0xe0] sm:$0xff]
      %v422 = vld [vmem:[%s346 + $0xe8] sm:$0xff]
      %v423 = vld [vmem:[%s346 + $0xf0] sm:$0xff]
      %v424 = vld [vmem:[%s346 + $0xf8] sm:$0xff]
      %v425 = vmax.f32 %v393, 0.0
      %v426 = vmax.f32 %v394, 0.0
      %v427 = vmax.f32 %v395, 0.0
      %v428 = vmax.f32 %v396, 0.0
      %v429 = vmax.f32 %v397, 0.0
      %v430 = vmax.f32 %v398, 0.0
      %v431 = vmax.f32 %v399, 0.0
      %v432 = vmax.f32 %v400, 0.0
      %v433 = vmax.f32 %v401, 0.0
      %v434 = vmax.f32 %v402, 0.0
      %v435 = vmax.f32 %v403, 0.0
      %v436 = vmax.f32 %v404, 0.0
      %v437 = vmax.f32 %v405, 0.0
      %v438 = vmax.f32 %v406, 0.0
      %v439 = vmax.f32 %v407, 0.0
      %v440 = vmax.f32 %v408, 0.0
      %v441 = vmax.f32 %v409, 0.0
      %v442 = vmax.f32 %v410, 0.0
      %v443 = vmax.f32 %v411, 0.0
      %v444 = vmax.f32 %v412, 0.0
      %v445 = vmax.f32 %v413, 0.0
      %v446 = vmax.f32 %v414, 0.0
      %v447 = vmax.f32 %v415, 0.0
      %v448 = vmax.f32 %v416, 0.0
      %v449 = vmax.f32 %v417, 0.0
      %v450 = vmax.f32 %v418, 0.0
      %v451 = vmax.f32 %v419, 0.0
      %v452 = vmax.f32 %v420, 0.0
      %v453 = vmax.f32 %v421, 0.0
      %v454 = vmax.f32 %v422, 0.0
      %v455 = vmax.f32 %v423, 0.0
      %v456 = vmax.f32 %v424, 0.0
      %v457 = vld [vmem:[%s3] sm:$0xff]
      %vm458 = vcmask 64512
      %v460 = vsel %vm458, %v425, 0
      %v463 = vsel %vm458, %v426, 0
      %v466 = vsel %vm458, %v427, 0
      %v469 = vsel %vm458, %v428, 0
      %v472 = vsel %vm458, %v429, 0
      %v475 = vsel %vm458, %v430, 0
      %v478 = vsel %vm458, %v431, 0
      %v481 = vsel %vm458, %v432, 0
      %v484 = vsel %vm458, %v433, 0
      %v487 = vsel %vm458, %v434, 0
      %v490 = vsel %vm458, %v435, 0
      %v493 = vsel %vm458, %v436, 0
      %v496 = vsel %vm458, %v437, 0
      %v499 = vsel %vm458, %v438, 0
      %v502 = vsel %vm458, %v439, 0
      %v505 = vsel %vm458, %v440, 0
      %v508 = vsel %vm458, %v441, 0
      %v511 = vsel %vm458, %v442, 0
      %v514 = vsel %vm458, %v443, 0
      %v517 = vsel %vm458, %v444, 0
      %v520 = vsel %vm458, %v445, 0
      %v523 = vsel %vm458, %v446, 0
      %v526 = vsel %vm458, %v447, 0
      %v529 = vsel %vm458, %v448, 0
      %v532 = vsel %vm458, %v449, 0
      %v535 = vsel %vm458, %v450, 0
      %v538 = vsel %vm458, %v451, 0
      %v541 = vsel %vm458, %v452, 0
      %v544 = vsel %vm458, %v453, 0
      %v547 = vsel %vm458, %v454, 0
      %v550 = vsel %vm458, %v455, 0
      %v553 = vsel %vm458, %v456, 0
      %555 = vmatprep.subr.mxu0 0.0
      %556 = vmatpush1.msra.mxu0 %v457
      %557 = vmatprep.subr.mxu0 0.0
      %558 = vmatpush1.msra.mxu0 0.0
      %559 = vmatprep.subr.mxu0 0.0
      %560 = vmatpush1.msra.mxu0 0.0
      %561 = vmatprep.subr.mxu0 0.0
      %562 = vmatpush1.msra.mxu0 0.0
      %563 = vmatprep.subr.mxu0 0.0
      %564 = vmatpush1.msra.mxu0 0.0
      %565 = vmatprep.subr.mxu0 0.0
      %566 = vmatpush1.msra.mxu0 0.0
      %567 = vmatprep.subr.mxu0 0.0
      %568 = vmatpush1.msra.mxu0 0.0
      %569 = vmatprep.subr.mxu0 0.0
      %570 = vmatpush1.msra.mxu0 0.0
      %571 = vmatprep.subr.mxu0 0.0
      %572 = vmatpush1.msra.mxu0 0.0
      %573 = vmatprep.subr.mxu0 0.0
      %574 = vmatpush1.msra.mxu0 0.0
      %575 = vmatprep.subr.mxu0 0.0
      %576 = vmatpush1.msra.mxu0 0.0
      %577 = vmatprep.subr.mxu0 0.0
      %578 = vmatpush1.msra.mxu0 0.0
      %579 = vmatprep.subr.mxu0 0.0
      %580 = vmatpush1.msra.mxu0 0.0
      %581 = vmatprep.subr.mxu0 0.0
      %582 = vmatpush1.msra.mxu0 0.0
      %583 = vmatprep.subr.mxu0 0.0
      %584 = vmatpush1.msra.mxu0 0.0
      %585 = vmatprep.subr.mxu0 0.0
      %586 = vmatpush1.msra.mxu0 0.0
      %587 = vmatprep.subr.mxu0 0.0
      %588 = vmatpush1.msra.mxu0 0.0
      %589 = vmatprep.subr.mxu0 0.0
      %590 = vmatpush1.msra.mxu0 0.0
      %591 = vmatprep.subr.mxu0 0.0
      %592 = vmatpush1.msra.mxu0 0.0
      %593 = vmatprep.subr.mxu0 0.0
      %594 = vmatpush1.msra.mxu0 0.0
      %595 = vmatprep.subr.mxu0 0.0
      %596 = vmatpush1.msra.mxu0 0.0
      %597 = vmatprep.subr.mxu0 0.0
      %598 = vmatpush1.msra.mxu0 0.0
      %599 = vmatprep.subr.mxu0 0.0
      %600 = vmatpush1.msra.mxu0 0.0
      %601 = vmatprep.subr.mxu0 0.0
      %602 = vmatpush1.msra.mxu0 0.0
      %603 = vmatprep.subr.mxu0 0.0
      %604 = vmatpush1.msra.mxu0 0.0
      %605 = vmatprep.subr.mxu0 0.0
      %606 = vmatpush1.msra.mxu0 0.0
      %607 = vmatprep.subr.mxu0 0.0
      %608 = vmatpush1.msra.mxu0 0.0
      %609 = vmatprep.subr.mxu0 0.0
      %610 = vmatpush1.msra.mxu0 0.0
      %611 = vmatprep.subr.mxu0 0.0
      %612 = vmatpush1.msra.mxu0 0.0
      %613 = vmatprep.subr.mxu0 0.0
      %614 = vmatpush1.msra.mxu0 0.0
      %615 = vmatprep.subr.mxu0 0.0
      %616 = vmatpush1.msra.mxu0 0.0
      %617 = vmatprep.subr.mxu0 0.0
      %618 = vmatpush1.msra.mxu0 0.0
      %619 = vmatprep.mubr.f32.mxu0 0.0
      %620 = vmatmul.mubr.f32.gmra.mrb[0].mxu0 %v460
      %v621 = vpop.f32.mrb[0].mxu0
      %v622 = vadd.f32 0.0, %v621
      %v623 = vpop.f32.mrb[0].mxu0
      %624 = vmatprep.mubr.f32.mxu0 0.0
      %625 = vmatmul.mubr.f32.gmra.mrb[0].mxu0 %v463
      %v626 = vpop.f32.mrb[0].mxu0
      %v627 = vadd.f32 0.0, %v626
      %v628 = vpop.f32.mrb[0].mxu0
      %629 = vmatprep.mubr.f32.mxu0 0.0
      %630 = vmatmul.mubr.f32.gmra.mrb[0].mxu0 %v466
      %v631 = vpop.f32.mrb[0].mxu0
      %v632 = vadd.f32 0.0, %v631
      %v633 = vpop.f32.mrb[0].mxu0
      %634 = vmatprep.mubr.f32.mxu0 0.0
      %635 = vmatmul.mubr.f32.gmra.mrb[0].mxu0 %v469
      %v636 = vpop.f32.mrb[0].mxu0
      %v637 = vadd.f32 0.0, %v636
      %v638 = vpop.f32.mrb[0].mxu0
      %639 = vmatprep.mubr.f32.mxu0 0.0
      %640 = vmatmul.mubr.f32.gmra.mrb[0].mxu0 %v472
      %v641 = vpop.f32.mrb[0].mxu0
      %v642 = vadd.f32 0.0, %v641
      %v643 = vpop.f32.mrb[0].mxu0
      %644 = vmatprep.mubr.f32.mxu0 0.0
      %645 = vmatmul.mubr.f32.gmra.mrb[0].mxu0 %v475
      %v646 = vpop.f32.mrb[0].mxu0
      %v647 = vadd.f32 0.0, %v646
      %v648 = vpop.f32.mrb[0].mxu0
      %649 = vmatprep.mubr.f32.mxu0 0.0
      %650 = vmatmul.mubr.f32.gmra.mrb[0].mxu0 %v478
      %v651 = vpop.f32.mrb[0].mxu0
      %v652 = vadd.f32 0.0, %v651
      %v653 = vpop.f32.mrb[0].mxu0
      %654 = vmatprep.mubr.f32.mxu0 0.0
      %655 = vmatmul.mubr.f32.gmra.mrb[0].mxu0 %v481
      %v656 = vpop.f32.mrb[0].mxu0
      %v657 = vadd.f32 0.0, %v656
      %v658 = vpop.f32.mrb[0].mxu0
      %659 = vmatprep.mubr.f32.mxu0 0.0
      %660 = vmatmul.mubr.f32.gmra.mrb[0].mxu0 %v484
      %v661 = vpop.f32.mrb[0].mxu0
      %v662 = vadd.f32 0.0, %v661
      %v663 = vpop.f32.mrb[0].mxu0
      %664 = vmatprep.mubr.f32.mxu0 0.0
      %665 = vmatmul.mubr.f32.gmra.mrb[0].mxu0 %v487
      %v666 = vpop.f32.mrb[0].mxu0
      %v667 = vadd.f32 0.0, %v666
      %v668 = vpop.f32.mrb[0].mxu0
      %669 = vmatprep.mubr.f32.mxu0 0.0
      %670 = vmatmul.mubr.f32.gmra.mrb[0].mxu0 %v490
      %v671 = vpop.f32.mrb[0].mxu0
      %v672 = vadd.f32 0.0, %v671
      %v673 = vpop.f32.mrb[0].mxu0
      %674 = vmatprep.mubr.f32.mxu0 0.0
      %675 = vmatmul.mubr.f32.gmra.mrb[0].mxu0 %v493
      %v676 = vpop.f32.mrb[0].mxu0
      %v677 = vadd.f32 0.0, %v676
      %v678 = vpop.f32.mrb[0].mxu0
      %679 = vmatprep.mubr.f32.mxu0 0.0
      %680 = vmatmul.mubr.f32.gmra.mrb[0].mxu0 %v496
      %v681 = vpop.f32.mrb[0].mxu0
      %v682 = vadd.f32 0.0, %v681
      %v683 = vpop.f32.mrb[0].mxu0
      %684 = vmatprep.mubr.f32.mxu0 0.0
      %685 = vmatmul.mubr.f32.gmra.mrb[0].mxu0 %v499
      %v686 = vpop.f32.mrb[0].mxu0
      %v687 = vadd.f32 0.0, %v686
      %v688 = vpop.f32.mrb[0].mxu0
      %689 = vmatprep.mubr.f32.mxu0 0.0
      %690 = vmatmul.mubr.f32.gmra.mrb[0].mxu0 %v502
      %v691 = vpop.f32.mrb[0].mxu0
      %v692 = vadd.f32 0.0, %v691
      %v693 = vpop.f32.mrb[0].mxu0
      %694 = vmatprep.mubr.f32.mxu0 0.0
      %695 = vmatmul.mubr.f32.gmra.mrb[0].mxu0 %v505
      %v696 = vpop.f32.mrb[0].mxu0
      %v697 = vadd.f32 0.0, %v696
      %v698 = vpop.f32.mrb[0].mxu0
      %699 = vmatprep.mubr.f32.mxu0 0.0
      %700 = vmatmul.mubr.f32.gmra.mrb[0].mxu0 %v508
      %v701 = vpop.f32.mrb[0].mxu0
      %v702 = vadd.f32 0.0, %v701
      %v703 = vpop.f32.mrb[0].mxu0
      %704 = vmatprep.mubr.f32.mxu0 0.0
      %705 = vmatmul.mubr.f32.gmra.mrb[0].mxu0 %v511
      %v706 = vpop.f32.mrb[0].mxu0
      %v707 = vadd.f32 0.0, %v706
      %v708 = vpop.f32.mrb[0].mxu0
      %709 = vmatprep.mubr.f32.mxu0 0.0
      %710 = vmatmul.mubr.f32.gmra.mrb[0].mxu0 %v514
      %v711 = vpop.f32.mrb[0].mxu0
      %v712 = vadd.f32 0.0, %v711
      %v713 = vpop.f32.mrb[0].mxu0
      %714 = vmatprep.mubr.f32.mxu0 0.0
      %715 = vmatmul.mubr.f32.gmra.mrb[0].mxu0 %v517
      %v716 = vpop.f32.mrb[0].mxu0
      %v717 = vadd.f32 0.0, %v716
      %v718 = vpop.f32.mrb[0].mxu0
      %719 = vmatprep.mubr.f32.mxu0 0.0
      %720 = vmatmul.mubr.f32.gmra.mrb[0].mxu0 %v520
      %v721 = vpop.f32.mrb[0].mxu0
      %v722 = vadd.f32 0.0, %v721
      %v723 = vpop.f32.mrb[0].mxu0
      %724 = vmatprep.mubr.f32.mxu0 0.0
      %725 = vmatmul.mubr.f32.gmra.mrb[0].mxu0 %v523
      %v726 = vpop.f32.mrb[0].mxu0
      %v727 = vadd.f32 0.0, %v726
      %v728 = vpop.f32.mrb[0].mxu0
      %729 = vmatprep.mubr.f32.mxu0 0.0
      %730 = vmatmul.mubr.f32.gmra.mrb[0].mxu0 %v526
      %v731 = vpop.f32.mrb[0].mxu0
      %v732 = vadd.f32 0.0, %v731
      %v733 = vpop.f32.mrb[0].mxu0
      %734 = vmatprep.mubr.f32.mxu0 0.0
      %735 = vmatmul.mubr.f32.gmra.mrb[0].mxu0 %v529
      %v736 = vpop.f32.mrb[0].mxu0
      %v737 = vadd.f32 0.0, %v736
      %v738 = vpop.f32.mrb[0].mxu0
      %739 = vmatprep.mubr.f32.mxu0 0.0
      %740 = vmatmul.mubr.f32.gmra.mrb[0].mxu0 %v532
      %v741 = vpop.f32.mrb[0].mxu0
      %v742 = vadd.f32 0.0, %v741
      %v743 = vpop.f32.mrb[0].mxu0
      %744 = vmatprep.mubr.f32.mxu0 0.0
      %745 = vmatmul.mubr.f32.gmra.mrb[0].mxu0 %v535
      %v746 = vpop.f32.mrb[0].mxu0
      %v747 = vadd.f32 0.0, %v746
      %v748 = vpop.f32.mrb[0].mxu0
      %749 = vmatprep.mubr.f32.mxu0 0.0
      %750 = vmatmul.mubr.f32.gmra.mrb[0].mxu0 %v538
      %v751 = vpop.f32.mrb[0].mxu0
      %v752 = vadd.f32 0.0, %v751
      %v753 = vpop.f32.mrb[0].mxu0
      %754 = vmatprep.mubr.f32.mxu0 0.0
      %755 = vmatmul.mubr.f32.gmra.mrb[0].mxu0 %v541
      %v756 = vpop.f32.mrb[0].mxu0
      %v757 = vadd.f32 0.0, %v756
      %v758 = vpop.f32.mrb[0].mxu0
      %759 = vmatprep.mubr.f32.mxu0 0.0
      %760 = vmatmul.mubr.f32.gmra.mrb[0].mxu0 %v544
      %v761 = vpop.f32.mrb[0].mxu0
      %v762 = vadd.f32 0.0, %v761
      %v763 = vpop.f32.mrb[0].mxu0
      %764 = vmatprep.mubr.f32.mxu0 0.0
      %765 = vmatmul.mubr.f32.gmra.mrb[0].mxu0 %v547
      %v766 = vpop.f32.mrb[0].mxu0
      %v767 = vadd.f32 0.0, %v766
      %v768 = vpop.f32.mrb[0].mxu0
      %769 = vmatprep.mubr.f32.mxu0 0.0
      %770 = vmatmul.mubr.f32.gmra.mrb[0].mxu0 %v550
      %v771 = vpop.f32.mrb[0].mxu0
      %v772 = vadd.f32 0.0, %v771
      %v773 = vpop.f32.mrb[0].mxu0
      %774 = vmatprep.mubr.f32.mxu0 0.0
      %775 = vmatmul.mubr.f32.gmra.mrb[0].mxu0 %v553
      %v776 = vpop.f32.mrb[0].mxu0
      %v777 = vadd.f32 0.0, %v776
      %v778 = vpop.f32.mrb[0].mxu0
      %779 = vdwg.mxu0
      %v780 = vmax.f32 %v622, 0.0
      %v781 = vmax.f32 %v627, 0.0
      %v782 = vmax.f32 %v632, 0.0
      %v783 = vmax.f32 %v637, 0.0
      %v784 = vmax.f32 %v642, 0.0
      %v785 = vmax.f32 %v647, 0.0
      %v786 = vmax.f32 %v652, 0.0
      %v787 = vmax.f32 %v657, 0.0
      %v788 = vmax.f32 %v662, 0.0
      %v789 = vmax.f32 %v667, 0.0
      %v790 = vmax.f32 %v672, 0.0
      %v791 = vmax.f32 %v677, 0.0
      %v792 = vmax.f32 %v682, 0.0
      %v793 = vmax.f32 %v687, 0.0
      %v794 = vmax.f32 %v692, 0.0
      %v795 = vmax.f32 %v697, 0.0
      %v796 = vmax.f32 %v702, 0.0
      %v797 = vmax.f32 %v707, 0.0
      %v798 = vmax.f32 %v712, 0.0
      %v799 = vmax.f32 %v717, 0.0
      %v800 = vmax.f32 %v722, 0.0
      %v801 = vmax.f32 %v727, 0.0
      %v802 = vmax.f32 %v732, 0.0
      %v803 = vmax.f32 %v737, 0.0
      %v804 = vmax.f32 %v742, 0.0
      %v805 = vmax.f32 %v747, 0.0
      %v806 = vmax.f32 %v752, 0.0
      %v807 = vmax.f32 %v757, 0.0
      %v808 = vmax.f32 %v762, 0.0
      %v809 = vmax.f32 %v767, 0.0
      %v810 = vmax.f32 %v772, 0.0
      %v811 = vmax.f32 %v777, 0.0
      %p812 = scmp.eq.s32.totalorder %s21, 0
      %v813 = vld [vmem:[%s360] sm:$0xff]
      %v814 = vld [vmem:[%s360 + $0x8] sm:$0xff]
      %s815 = scalar_select %p812, 1, 0
      %v816 = vstv %s815
      %vm817 = vcmp.eq.s32.totalorder %v816, 1
      %v818 = vsel %vm817, 0.0, %v813
      %v819 = vsel %vm817, 0.0, %v814
      %v820 = vld [vmem:[%s377] sm:$0xff]
      %v821 = vld [vmem:[%s377 + $0x8] sm:$0xff]
      %v822 = vsel %vm817, 0.0, %v820
      %v823 = vsel %vm817, 0.0, %v821
      %v824 = vmax.f32 %v818, 0.0
      %v825 = vmax.f32 %v819, 0.0
      %v826 = vmax.f32 %v822, 0.0
      %v827 = vmax.f32 %v823, 0.0
      %v829 = vsel %vm458, %v824, 0
      %v832 = vsel %vm458, %v825, 0
      %834 = vmatprep.subr.mxu0 0.0
      %835 = vmatpush1.msra.mxu0 %v457
      %836 = vmatprep.subr.mxu0 0.0
      %837 = vmatpush1.msra.mxu0 0.0
      %838 = vmatprep.subr.mxu0 0.0
      %839 = vmatpush1.msra.mxu0 0.0
      %840 = vmatprep.subr.mxu0 0.0
      %841 = vmatpush1.msra.mxu0 0.0
      %842 = vmatprep.subr.mxu0 0.0
      %843 = vmatpush1.msra.mxu0 0.0
      %844 = vmatprep.subr.mxu0 0.0
      %845 = vmatpush1.msra.mxu0 0.0
      %846 = vmatprep.subr.mxu0 0.0
      %847 = vmatpush1.msra.mxu0 0.0
      %848 = vmatprep.subr.mxu0 0.0
      %849 = vmatpush1.msra.mxu0 0.0
      %850 = vmatprep.subr.mxu0 0.0
      %851 = vmatpush1.msra.mxu0 0.0
      %852 = vmatprep.subr.mxu0 0.0
      %853 = vmatpush1.msra.mxu0 0.0
      %854 = vmatprep.subr.mxu0 0.0
      %855 = vmatpush1.msra.mxu0 0.0
      %856 = vmatprep.subr.mxu0 0.0
      %857 = vmatpush1.msra.mxu0 0.0
      %858 = vmatprep.subr.mxu0 0.0
      %859 = vmatpush1.msra.mxu0 0.0
      %860 = vmatprep.subr.mxu0 0.0
      %861 = vmatpush1.msra.mxu0 0.0
      %862 = vmatprep.subr.mxu0 0.0
      %863 = vmatpush1.msra.mxu0 0.0
      %864 = vmatprep.subr.mxu0 0.0
      %865 = vmatpush1.msra.mxu0 0.0
      %866 = vmatprep.subr.mxu0 0.0
      %867 = vmatpush1.msra.mxu0 0.0
      %868 = vmatprep.subr.mxu0 0.0
      %869 = vmatpush1.msra.mxu0 0.0
      %870 = vmatprep.subr.mxu0 0.0
      %871 = vmatpush1.msra.mxu0 0.0
      %872 = vmatprep.subr.mxu0 0.0
      %873 = vmatpush1.msra.mxu0 0.0
      %874 = vmatprep.subr.mxu0 0.0
      %875 = vmatpush1.msra.mxu0 0.0
      %876 = vmatprep.subr.mxu0 0.0
      %877 = vmatpush1.msra.mxu0 0.0
      %878 = vmatprep.subr.mxu0 0.0
      %879 = vmatpush1.msra.mxu0 0.0
      %880 = vmatprep.subr.mxu0 0.0
      %881 = vmatpush1.msra.mxu0 0.0
      %882 = vmatprep.subr.mxu0 0.0
      %883 = vmatpush1.msra.mxu0 0.0
      %884 = vmatprep.subr.mxu0 0.0
      %885 = vmatpush1.msra.mxu0 0.0
      %886 = vmatprep.subr.mxu0 0.0
      %887 = vmatpush1.msra.mxu0 0.0
      %888 = vmatprep.subr.mxu0 0.0
      %889 = vmatpush1.msra.mxu0 0.0
      %890 = vmatprep.subr.mxu0 0.0
      %891 = vmatpush1.msra.mxu0 0.0
      %892 = vmatprep.subr.mxu0 0.0
      %893 = vmatpush1.msra.mxu0 0.0
      %894 = vmatprep.subr.mxu0 0.0
      %895 = vmatpush1.msra.mxu0 0.0
      %896 = vmatprep.subr.mxu0 0.0
      %897 = vmatpush1.msra.mxu0 0.0
      %898 = vmatprep.mubr.f32.mxu0 0.0
      %899 = vmatmul.mubr.f32.gmra.mrb[0].mxu0 %v829
      %v900 = vpop.f32.mrb[0].mxu0
      %v901 = vadd.f32 0.0, %v900
      %v902 = vpop.f32.mrb[0].mxu0
      %903 = vmatprep.mubr.f32.mxu0 0.0
      %904 = vmatmul.mubr.f32.gmra.mrb[0].mxu0 %v832
      %v905 = vpop.f32.mrb[0].mxu0
      %v906 = vadd.f32 0.0, %v905
      %v907 = vpop.f32.mrb[0].mxu0
      %908 = vdwg.mxu0
      %v909 = vmax.f32 %v901, 0.0
      %v910 = vmax.f32 %v906, 0.0
      %v912 = vsel %vm458, %v826, 0
      %v915 = vsel %vm458, %v827, 0
      %917 = vmatprep.subr.mxu0 0.0
      %918 = vmatpush1.msra.mxu0 %v457
      %919 = vmatprep.subr.mxu0 0.0
      %920 = vmatpush1.msra.mxu0 0.0
      %921 = vmatprep.subr.mxu0 0.0
      %922 = vmatpush1.msra.mxu0 0.0
      %923 = vmatprep.subr.mxu0 0.0
      %924 = vmatpush1.msra.mxu0 0.0
      %925 = vmatprep.subr.mxu0 0.0
      %926 = vmatpush1.msra.mxu0 0.0
      %927 = vmatprep.subr.mxu0 0.0
      %928 = vmatpush1.msra.mxu0 0.0
      %929 = vmatprep.subr.mxu0 0.0
      %930 = vmatpush1.msra.mxu0 0.0
      %931 = vmatprep.subr.mxu0 0.0
      %932 = vmatpush1.msra.mxu0 0.0
      %933 = vmatprep.subr.mxu0 0.0
      %934 = vmatpush1.msra.mxu0 0.0
      %935 = vmatprep.subr.mxu0 0.0
      %936 = vmatpush1.msra.mxu0 0.0
      %937 = vmatprep.subr.mxu0 0.0
      %938 = vmatpush1.msra.mxu0 0.0
      %939 = vmatprep.subr.mxu0 0.0
      %940 = vmatpush1.msra.mxu0 0.0
      %941 = vmatprep.subr.mxu0 0.0
      %942 = vmatpush1.msra.mxu0 0.0
      %943 = vmatprep.subr.mxu0 0.0
      %944 = vmatpush1.msra.mxu0 0.0
      %945 = vmatprep.subr.mxu0 0.0
      %946 = vmatpush1.msra.mxu0 0.0
      %947 = vmatprep.subr.mxu0 0.0
      %948 = vmatpush1.msra.mxu0 0.0
      %949 = vmatprep.subr.mxu0 0.0
      %950 = vmatpush1.msra.mxu0 0.0
      %951 = vmatprep.subr.mxu0 0.0
      %952 = vmatpush1.msra.mxu0 0.0
      %953 = vmatprep.subr.mxu0 0.0
      %954 = vmatpush1.msra.mxu0 0.0
      %955 = vmatprep.subr.mxu0 0.0
      %956 = vmatpush1.msra.mxu0 0.0
      %957 = vmatprep.subr.mxu0 0.0
      %958 = vmatpush1.msra.mxu0 0.0
      %959 = vmatprep.subr.mxu0 0.0
      %960 = vmatpush1.msra.mxu0 0.0
      %961 = vmatprep.subr.mxu0 0.0
      %962 = vmatpush1.msra.mxu0 0.0
      %963 = vmatprep.subr.mxu0 0.0
      %964 = vmatpush1.msra.mxu0 0.0
      %965 = vmatprep.subr.mxu0 0.0
      %966 = vmatpush1.msra.mxu0 0.0
      %967 = vmatprep.subr.mxu0 0.0
      %968 = vmatpush1.msra.mxu0 0.0
      %969 = vmatprep.subr.mxu0 0.0
      %970 = vmatpush1.msra.mxu0 0.0
      %971 = vmatprep.subr.mxu0 0.0
      %972 = vmatpush1.msra.mxu0 0.0
      %973 = vmatprep.subr.mxu0 0.0
      %974 = vmatpush1.msra.mxu0 0.0
      %975 = vmatprep.subr.mxu0 0.0
      %976 = vmatpush1.msra.mxu0 0.0
      %977 = vmatprep.subr.mxu0 0.0
      %978 = vmatpush1.msra.mxu0 0.0
      %979 = vmatprep.subr.mxu0 0.0
      %980 = vmatpush1.msra.mxu0 0.0
      %981 = vmatprep.mubr.f32.mxu0 0.0
      %982 = vmatmul.mubr.f32.gmra.mrb[0].mxu0 %v912
      %v983 = vpop.f32.mrb[0].mxu0
      %v984 = vadd.f32 0.0, %v983
      %v985 = vpop.f32.mrb[0].mxu0
      %986 = vmatprep.mubr.f32.mxu0 0.0
      %987 = vmatmul.mubr.f32.gmra.mrb[0].mxu0 %v915
      %v988 = vpop.f32.mrb[0].mxu0
      %v989 = vadd.f32 0.0, %v988
      %v990 = vpop.f32.mrb[0].mxu0
      %991 = vdwg.mxu0
      %v992 = vmax.f32 %v984, 0.0
      %v993 = vmax.f32 %v989, 0.0
      %vm994 = vcmask 253952
      %995 = vst.msk [vmem:[#allocation2] sm:$0x1] %vm994, 0.0
      %996 = vst.msk [vmem:[#allocation2 + $0x18] sm:$0x1] %vm994, 0.0
      %997 = vst.msk [vmem:[#allocation2 + $0x30] sm:$0x1] %vm994, 0.0
      %998 = vst.msk [vmem:[#allocation2 + $0x48] sm:$0x1] %vm994, 0.0
      %999 = vst.msk [vmem:[#allocation2 + $0x60] sm:$0x1] %vm994, 0.0
      %1000 = vst.msk [vmem:[#allocation2 + $0x78] sm:$0x1] %vm994, 0.0
      %1001 = vst.msk [vmem:[#allocation2 + $0x90] sm:$0x1] %vm994, 0.0
      %1002 = vst.msk [vmem:[#allocation2 + $0xa8] sm:$0x1] %vm994, 0.0
      %1003 = vst.msk [vmem:[#allocation2 + $0xc0] sm:$0x1] %vm994, 0.0
      %1004 = vst.msk [vmem:[#allocation2 + $0xd8] sm:$0x1] %vm994, 0.0
      %1005 = vst.msk [vmem:[#allocation2 + $0xf0] sm:$0x1] %vm994, 0.0
      %1006 = vst.msk [vmem:[#allocation2 + $0x108] sm:$0x1] %vm994, 0.0
      %1007 = vst.msk [vmem:[#allocation2 + $0x120] sm:$0x1] %vm994, 0.0
      %1008 = vst.msk [vmem:[#allocation2 + $0x138] sm:$0x1] %vm994, 0.0
      %1009 = vst.msk [vmem:[#allocation2 + $0x150] sm:$0x1] %vm994, 0.0
      %1010 = vst.msk [vmem:[#allocation2 + $0x168] sm:$0x1] %vm994, 0.0
      %1011 = vst.msk [vmem:[#allocation2 + $0x180] sm:$0x1] %vm994, 0.0
      %1012 = vst.msk [vmem:[#allocation2 + $0x198] sm:$0x1] %vm994, 0.0
      %1013 = vst.msk [vmem:[#allocation2 + $0x11] sm:$0x1] %vm994, 0.0
      %1014 = vst.msk [vmem:[#allocation2 + $0x29] sm:$0x1] %vm994, 0.0
      %1015 = vst.msk [vmem:[#allocation2 + $0x41] sm:$0x1] %vm994, 0.0
      %1016 = vst.msk [vmem:[#allocation2 + $0x59] sm:$0x1] %vm994, 0.0
      %1017 = vst.msk [vmem:[#allocation2 + $0x71] sm:$0x1] %vm994, 0.0
      %1018 = vst.msk [vmem:[#allocation2 + $0x89] sm:$0x1] %vm994, 0.0
      %1019 = vst.msk [vmem:[#allocation2 + $0xa1] sm:$0x1] %vm994, 0.0
      %1020 = vst.msk [vmem:[#allocation2 + $0xb9] sm:$0x1] %vm994, 0.0
      %1021 = vst.msk [vmem:[#allocation2 + $0xd1] sm:$0x1] %vm994, 0.0
      %1022 = vst.msk [vmem:[#allocation2 + $0xe9] sm:$0x1] %vm994, 0.0
      %1023 = vst.msk [vmem:[#allocation2 + $0x101] sm:$0x1] %vm994, 0.0
      %1024 = vst.msk [vmem:[#allocation2 + $0x119] sm:$0x1] %vm994, 0.0
      %1025 = vst.msk [vmem:[#allocation2 + $0x131] sm:$0x1] %vm994, 0.0
      %1026 = vst.msk [vmem:[#allocation2 + $0x149] sm:$0x1] %vm994, 0.0
      %1027 = vst.msk [vmem:[#allocation2 + $0x161] sm:$0x1] %vm994, 0.0
      %1028 = vst.msk [vmem:[#allocation2 + $0x179] sm:$0x1] %vm994, 0.0
      %1029 = vst.msk [vmem:[#allocation2 + $0x191] sm:$0x1] %vm994, 0.0
      %1030 = vst.msk [vmem:[#allocation2 + $0x1a9] sm:$0x1] %vm994, 0.0
      %vm1031 = vcmask 261120
      %1032 = vst.msk [vmem:[#allocation2 + $0x1] sm:$0xff] %vm1031, %v909
      %1033 = vst.msk [vmem:[#allocation2 + $0x9] sm:$0xff] %vm1031, %v910
      %s1034 = scalar_lea.vmem [#allocation2], 408
      %1035 = vst.msk [vmem:[%s1034 + $0x1] sm:$0xff] %vm1031, %v992
      %1036 = vst.msk [vmem:[%s1034 + $0x9] sm:$0xff] %vm1031, %v993
      %s1037 = scalar_lea.vmem [#allocation2], 24
      %1038 = vst.msk [vmem:[%s1037 + $0x1] sm:$0xff] %vm1031, %v780
      %1039 = vst.msk [vmem:[%s1037 + $0x9] sm:$0xff] %vm1031, %v781
      %1040 = vst.msk [vmem:[%s1037 + $0x19] sm:$0xff] %vm1031, %v782
      %1041 = vst.msk [vmem:[%s1037 + $0x21] sm:$0xff] %vm1031, %v783
      %1042 = vst.msk [vmem:[%s1037 + $0x31] sm:$0xff] %vm1031, %v784
      %1043 = vst.msk [vmem:[%s1037 + $0x39] sm:$0xff] %vm1031, %v785
      %1044 = vst.msk [vmem:[%s1037 + $0x49] sm:$0xff] %vm1031, %v786
      %1045 = vst.msk [vmem:[%s1037 + $0x51] sm:$0xff] %vm1031, %v787
      %1046 = vst.msk [vmem:[%s1037 + $0x61] sm:$0xff] %vm1031, %v788
      %1047 = vst.msk [vmem:[%s1037 + $0x69] sm:$0xff] %vm1031, %v789
      %1048 = vst.msk [vmem:[%s1037 + $0x79] sm:$0xff] %vm1031, %v790
      %1049 = vst.msk [vmem:[%s1037 + $0x81] sm:$0xff] %vm1031, %v791
      %1050 = vst.msk [vmem:[%s1037 + $0x91] sm:$0xff] %vm1031, %v792
      %1051 = vst.msk [vmem:[%s1037 + $0x99] sm:$0xff] %vm1031, %v793
      %1052 = vst.msk [vmem:[%s1037 + $0xa9] sm:$0xff] %vm1031, %v794
      %1053 = vst.msk [vmem:[%s1037 + $0xb1] sm:$0xff] %vm1031, %v795
      %1054 = vst.msk [vmem:[%s1037 + $0xc1] sm:$0xff] %vm1031, %v796
      %1055 = vst.msk [vmem:[%s1037 + $0xc9] sm:$0xff] %vm1031, %v797
      %1056 = vst.msk [vmem:[%s1037 + $0xd9] sm:$0xff] %vm1031, %v798
      %1057 = vst.msk [vmem:[%s1037 + $0xe1] sm:$0xff] %vm1031, %v799
      %1058 = vst.msk [vmem:[%s1037 + $0xf1] sm:$0xff] %vm1031, %v800
      %1059 = vst.msk [vmem:[%s1037 + $0xf9] sm:$0xff] %vm1031, %v801
      %1060 = vst.msk [vmem:[%s1037 + $0x109] sm:$0xff] %vm1031, %v802
      %1061 = vst.msk [vmem:[%s1037 + $0x111] sm:$0xff] %vm1031, %v803
      %1062 = vst.msk [vmem:[%s1037 + $0x121] sm:$0xff] %vm1031, %v804
      %1063 = vst.msk [vmem:[%s1037 + $0x129] sm:$0xff] %vm1031, %v805
      %1064 = vst.msk [vmem:[%s1037 + $0x139] sm:$0xff] %vm1031, %v806
      %1065 = vst.msk [vmem:[%s1037 + $0x141] sm:$0xff] %vm1031, %v807
      %1066 = vst.msk [vmem:[%s1037 + $0x151] sm:$0xff] %vm1031, %v808
      %1067 = vst.msk [vmem:[%s1037 + $0x159] sm:$0xff] %vm1031, %v809
      %1068 = vst.msk [vmem:[%s1037 + $0x169] sm:$0xff] %vm1031, %v810
      %1069 = vst.msk [vmem:[%s1037 + $0x171] sm:$0xff] %vm1031, %v811
      %v1070 = vld [vmem:[#allocation2] sm:$0xff]
      %v1071 = vld [vmem:[#allocation2 + $0x8] sm:$0xff]
      %v1072 = vld [vmem:[#allocation2 + $0x18] sm:$0xff]
      %v1073 = vld [vmem:[#allocation2 + $0x20] sm:$0xff]
      %v1074 = vld [vmem:[#allocation2 + $0x30] sm:$0xff]
      %v1075 = vld [vmem:[#allocation2 + $0x38] sm:$0xff]
      %v1076 = vld [vmem:[#allocation2 + $0x48] sm:$0xff]
      %v1077 = vld [vmem:[#allocation2 + $0x50] sm:$0xff]
      %v1078 = vld [vmem:[#allocation2 + $0x60] sm:$0xff]
      %v1079 = vld [vmem:[#allocation2 + $0x68] sm:$0xff]
      %v1080 = vld [vmem:[#allocation2 + $0x78] sm:$0xff]
      %v1081 = vld [vmem:[#allocation2 + $0x80] sm:$0xff]
      %v1082 = vld [vmem:[#allocation2 + $0x90] sm:$0xff]
      %v1083 = vld [vmem:[#allocation2 + $0x98] sm:$0xff]
      %v1084 = vld [vmem:[#allocation2 + $0xa8] sm:$0xff]
      %v1085 = vld [vmem:[#allocation2 + $0xb0] sm:$0xff]
      %v1086 = vld [vmem:[#allocation2 + $0xc0] sm:$0xff]
      %v1087 = vld [vmem:[#allocation2 + $0xc8] sm:$0xff]
      %v1088 = vld [vmem:[#allocation2 + $0xd8] sm:$0xff]
      %v1089 = vld [vmem:[#allocation2 + $0xe0] sm:$0xff]
      %v1090 = vld [vmem:[#allocation2 + $0xf0] sm:$0xff]
      %v1091 = vld [vmem:[#allocation2 + $0xf8] sm:$0xff]
      %v1092 = vld [vmem:[#allocation2 + $0x108] sm:$0xff]
      %v1093 = vld [vmem:[#allocation2 + $0x110] sm:$0xff]
      %v1094 = vld [vmem:[#allocation2 + $0x120] sm:$0xff]
      %v1095 = vld [vmem:[#allocation2 + $0x128] sm:$0xff]
      %v1096 = vld [vmem:[#allocation2 + $0x138] sm:$0xff]
      %v1097 = vld [vmem:[#allocation2 + $0x140] sm:$0xff]
      %v1098 = vld [vmem:[#allocation2 + $0x150] sm:$0xff]
      %v1099 = vld [vmem:[#allocation2 + $0x158] sm:$0xff]
      %v1100 = vld [vmem:[#allocation2 + $0x168] sm:$0xff]
      %v1101 = vld [vmem:[#allocation2 + $0x170] sm:$0xff]
      %v1102 = vld [vmem:[%s4] sm:$0xff]
      %v1103 = vld [vmem:[%s4 + $0x8] sm:$0xff]
      %v1104 = vld [vmem:[%s4 + $0x10] sm:$0xff]
      %v1105 = vld [vmem:[%s4 + $0x18] sm:$0xff]
      %v1106 = vld [vmem:[#allocation2 + $0x1] sm:$0xff]
      %v1107 = vld [vmem:[#allocation2 + $0x9] sm:$0xff]
      %v1108 = vld [vmem:[#allocation2 + $0x19] sm:$0xff]
      %v1109 = vld [vmem:[#allocation2 + $0x21] sm:$0xff]
      %v1110 = vld [vmem:[#allocation2 + $0x31] sm:$0xff]
      %v1111 = vld [vmem:[#allocation2 + $0x39] sm:$0xff]
      %v1112 = vld [vmem:[#allocation2 + $0x49] sm:$0xff]
      %v1113 = vld [vmem:[#allocation2 + $0x51] sm:$0xff]
      %v1114 = vld [vmem:[#allocation2 + $0x61] sm:$0xff]
      %v1115 = vld [vmem:[#allocation2 + $0x69] sm:$0xff]
      %v1116 = vld [vmem:[#allocation2 + $0x79] sm:$0xff]
      %v1117 = vld [vmem:[#allocation2 + $0x81] sm:$0xff]
      %v1118 = vld [vmem:[#allocation2 + $0x91] sm:$0xff]
      %v1119 = vld [vmem:[#allocation2 + $0x99] sm:$0xff]
      %v1120 = vld [vmem:[#allocation2 + $0xa9] sm:$0xff]
      %v1121 = vld [vmem:[#allocation2 + $0xb1] sm:$0xff]
      %v1122 = vld [vmem:[#allocation2 + $0xc1] sm:$0xff]
      %v1123 = vld [vmem:[#allocation2 + $0xc9] sm:$0xff]
      %v1124 = vld [vmem:[#allocation2 + $0xd9] sm:$0xff]
      %v1125 = vld [vmem:[#allocation2 + $0xe1] sm:$0xff]
      %v1126 = vld [vmem:[#allocation2 + $0xf1] sm:$0xff]
      %v1127 = vld [vmem:[#allocation2 + $0xf9] sm:$0xff]
      %v1128 = vld [vmem:[#allocation2 + $0x109] sm:$0xff]
      %v1129 = vld [vmem:[#allocation2 + $0x111] sm:$0xff]
      %v1130 = vld [vmem:[#allocation2 + $0x121] sm:$0xff]
      %v1131 = vld [vmem:[#allocation2 + $0x129] sm:$0xff]
      %v1132 = vld [vmem:[#allocation2 + $0x139] sm:$0xff]
      %v1133 = vld [vmem:[#allocation2 + $0x141] sm:$0xff]
      %v1134 = vld [vmem:[#allocation2 + $0x151] sm:$0xff]
      %v1135 = vld [vmem:[#allocation2 + $0x159] sm:$0xff]
      %v1136 = vld [vmem:[#allocation2 + $0x169] sm:$0xff]
      %v1137 = vld [vmem:[#allocation2 + $0x171] sm:$0xff]
      %s1138 = scalar_lea.vmem %s4, 32
      %v1139 = vld [vmem:[%s1138] sm:$0xff]
      %v1140 = vld [vmem:[%s1138 + $0x8] sm:$0xff]
      %v1141 = vld [vmem:[%s1138 + $0x10] sm:$0xff]
      %v1142 = vld [vmem:[%s1138 + $0x18] sm:$0xff]
      %v1144 = vsel %vm1031, %v1106, 0
      %v1147 = vsel %vm1031, %v1107, 0
      %v1150 = vsel %vm1031, %v1108, 0
      %v1153 = vsel %vm1031, %v1109, 0
      %v1156 = vsel %vm1031, %v1110, 0
      %v1159 = vsel %vm1031, %v1111, 0
      %v1162 = vsel %vm1031, %v1112, 0
      %v1165 = vsel %vm1031, %v1113, 0
      %v1168 = vsel %vm1031, %v1114, 0
      %v1171 = vsel %vm1031, %v1115, 0
      %v1174 = vsel %vm1031, %v1116, 0
      %v1177 = vsel %vm1031, %v1117, 0
      %v1180 = vsel %vm1031, %v1118, 0
      %v1183 = vsel %vm1031, %v1119, 0
      %v1186 = vsel %vm1031, %v1120, 0
      %v1189 = vsel %vm1031, %v1121, 0
      %v1192 = vsel %vm1031, %v1122, 0
      %v1195 = vsel %vm1031, %v1123, 0
      %v1198 = vsel %vm1031, %v1124, 0
      %v1201 = vsel %vm1031, %v1125, 0
      %v1204 = vsel %vm1031, %v1126, 0
      %v1207 = vsel %vm1031, %v1127, 0
      %v1210 = vsel %vm1031, %v1128, 0
      %v1213 = vsel %vm1031, %v1129, 0
      %v1216 = vsel %vm1031, %v1130, 0
      %v1219 = vsel %vm1031, %v1131, 0
      %v1222 = vsel %vm1031, %v1132, 0
      %v1225 = vsel %vm1031, %v1133, 0
      %v1228 = vsel %vm1031, %v1134, 0
      %v1231 = vsel %vm1031, %v1135, 0
      %v1234 = vsel %vm1031, %v1136, 0
      %v1237 = vsel %vm1031, %v1137, 0
      %1239 = vmatprep.subr.mxu0 0.0
      %1240 = vmatpush1.msra.mxu0 %v1139
      %1241 = vmatprep.subr.mxu0 0.0
      %1242 = vmatpush1.msra.mxu0 %v1140
      %1243 = vmatprep.subr.mxu0 0.0
      %1244 = vmatpush1.msra.mxu0 %v1141
      %1245 = vmatprep.subr.mxu0 0.0
      %1246 = vmatpush1.msra.mxu0 %v1142
      %1247 = vmatprep.subr.mxu0 0.0
      %1248 = vmatpush1.msra.mxu0 0.0
      %1249 = vmatprep.subr.mxu0 0.0
      %1250 = vmatpush1.msra.mxu0 0.0
      %1251 = vmatprep.subr.mxu0 0.0
      %1252 = vmatpush1.msra.mxu0 0.0
      %1253 = vmatprep.subr.mxu0 0.0
      %1254 = vmatpush1.msra.mxu0 0.0
      %1255 = vmatprep.subr.mxu0 0.0
      %1256 = vmatpush1.msra.mxu0 0.0
      %1257 = vmatprep.subr.mxu0 0.0
      %1258 = vmatpush1.msra.mxu0 0.0
      %1259 = vmatprep.subr.mxu0 0.0
      %1260 = vmatpush1.msra.mxu0 0.0
      %1261 = vmatprep.subr.mxu0 0.0
      %1262 = vmatpush1.msra.mxu0 0.0
      %1263 = vmatprep.subr.mxu0 0.0
      %1264 = vmatpush1.msra.mxu0 0.0
      %1265 = vmatprep.subr.mxu0 0.0
      %1266 = vmatpush1.msra.mxu0 0.0
      %1267 = vmatprep.subr.mxu0 0.0
      %1268 = vmatpush1.msra.mxu0 0.0
      %1269 = vmatprep.subr.mxu0 0.0
      %1270 = vmatpush1.msra.mxu0 0.0
      %1271 = vmatprep.subr.mxu0 0.0
      %1272 = vmatpush1.msra.mxu0 0.0
      %1273 = vmatprep.subr.mxu0 0.0
      %1274 = vmatpush1.msra.mxu0 0.0
      %1275 = vmatprep.subr.mxu0 0.0
      %1276 = vmatpush1.msra.mxu0 0.0
      %1277 = vmatprep.subr.mxu0 0.0
      %1278 = vmatpush1.msra.mxu0 0.0
      %1279 = vmatprep.subr.mxu0 0.0
      %1280 = vmatpush1.msra.mxu0 0.0
      %1281 = vmatprep.subr.mxu0 0.0
      %1282 = vmatpush1.msra.mxu0 0.0
      %1283 = vmatprep.subr.mxu0 0.0
      %1284 = vmatpush1.msra.mxu0 0.0
      %1285 = vmatprep.subr.mxu0 0.0
      %1286 = vmatpush1.msra.mxu0 0.0
      %1287 = vmatprep.subr.mxu0 0.0
      %1288 = vmatpush1.msra.mxu0 0.0
      %1289 = vmatprep.subr.mxu0 0.0
      %1290 = vmatpush1.msra.mxu0 0.0
      %1291 = vmatprep.subr.mxu0 0.0
      %1292 = vmatpush1.msra.mxu0 0.0
      %1293 = vmatprep.subr.mxu0 0.0
      %1294 = vmatpush1.msra.mxu0 0.0
      %1295 = vmatprep.subr.mxu0 0.0
      %1296 = vmatpush1.msra.mxu0 0.0
      %1297 = vmatprep.subr.mxu0 0.0
      %1298 = vmatpush1.msra.mxu0 0.0
      %1299 = vmatprep.subr.mxu0 0.0
      %1300 = vmatpush1.msra.mxu0 0.0
      %1301 = vmatprep.subr.mxu0 0.0
      %1302 = vmatpush1.msra.mxu0 0.0
      %1303 = vmatprep.mubr.f32.mxu0 0.0
      %1304 = vmatmul.mubr.f32.gmra.mrb[0].mxu0 %v1144
      %v1305 = vpop.f32.mrb[0].mxu0
      %v1306 = vadd.f32 0.0, %v1305
      %v1307 = vpop.f32.mrb[0].mxu0
      %1308 = vmatprep.mubr.f32.mxu0 0.0
      %1309 = vmatmul.mubr.f32.gmra.mrb[0].mxu0 %v1147
      %v1310 = vpop.f32.mrb[0].mxu0
      %v1311 = vadd.f32 0.0, %v1310
      %v1312 = vpop.f32.mrb[0].mxu0
      %1313 = vmatprep.mubr.f32.mxu0 0.0
      %1314 = vmatmul.mubr.f32.gmra.mrb[0].mxu0 %v1150
      %v1315 = vpop.f32.mrb[0].mxu0
      %v1316 = vadd.f32 0.0, %v1315
      %v1317 = vpop.f32.mrb[0].mxu0
      %1318 = vmatprep.mubr.f32.mxu0 0.0
      %1319 = vmatmul.mubr.f32.gmra.mrb[0].mxu0 %v1153
      %v1320 = vpop.f32.mrb[0].mxu0
      %v1321 = vadd.f32 0.0, %v1320
      %v1322 = vpop.f32.mrb[0].mxu0
      %1323 = vmatprep.mubr.f32.mxu0 0.0
      %1324 = vmatmul.mubr.f32.gmra.mrb[0].mxu0 %v1156
      %v1325 = vpop.f32.mrb[0].mxu0
      %v1326 = vadd.f32 0.0, %v1325
      %v1327 = vpop.f32.mrb[0].mxu0
      %1328 = vmatprep.mubr.f32.mxu0 0.0
      %1329 = vmatmul.mubr.f32.gmra.mrb[0].mxu0 %v1159
      %v1330 = vpop.f32.mrb[0].mxu0
      %v1331 = vadd.f32 0.0, %v1330
      %v1332 = vpop.f32.mrb[0].mxu0
      %1333 = vmatprep.mubr.f32.mxu0 0.0
      %1334 = vmatmul.mubr.f32.gmra.mrb[0].mxu0 %v1162
      %v1335 = vpop.f32.mrb[0].mxu0
      %v1336 = vadd.f32 0.0, %v1335
      %v1337 = vpop.f32.mrb[0].mxu0
      %1338 = vmatprep.mubr.f32.mxu0 0.0
      %1339 = vmatmul.mubr.f32.gmra.mrb[0].mxu0 %v1165
      %v1340 = vpop.f32.mrb[0].mxu0
      %v1341 = vadd.f32 0.0, %v1340
      %v1342 = vpop.f32.mrb[0].mxu0
      %1343 = vmatprep.mubr.f32.mxu0 0.0
      %1344 = vmatmul.mubr.f32.gmra.mrb[0].mxu0 %v1168
      %v1345 = vpop.f32.mrb[0].mxu0
      %v1346 = vadd.f32 0.0, %v1345
      %v1347 = vpop.f32.mrb[0].mxu0
      %1348 = vmatprep.mubr.f32.mxu0 0.0
      %1349 = vmatmul.mubr.f32.gmra.mrb[0].mxu0 %v1171
      %v1350 = vpop.f32.mrb[0].mxu0
      %v1351 = vadd.f32 0.0, %v1350
      %v1352 = vpop.f32.mrb[0].mxu0
      %1353 = vmatprep.mubr.f32.mxu0 0.0
      %1354 = vmatmul.mubr.f32.gmra.mrb[0].mxu0 %v1174
      %v1355 = vpop.f32.mrb[0].mxu0
      %v1356 = vadd.f32 0.0, %v1355
      %v1357 = vpop.f32.mrb[0].mxu0
      %1358 = vmatprep.mubr.f32.mxu0 0.0
      %1359 = vmatmul.mubr.f32.gmra.mrb[0].mxu0 %v1177
      %v1360 = vpop.f32.mrb[0].mxu0
      %v1361 = vadd.f32 0.0, %v1360
      %v1362 = vpop.f32.mrb[0].mxu0
      %1363 = vmatprep.mubr.f32.mxu0 0.0
      %1364 = vmatmul.mubr.f32.gmra.mrb[0].mxu0 %v1180
      %v1365 = vpop.f32.mrb[0].mxu0
      %v1366 = vadd.f32 0.0, %v1365
      %v1367 = vpop.f32.mrb[0].mxu0
      %1368 = vmatprep.mubr.f32.mxu0 0.0
      %1369 = vmatmul.mubr.f32.gmra.mrb[0].mxu0 %v1183
      %v1370 = vpop.f32.mrb[0].mxu0
      %v1371 = vadd.f32 0.0, %v1370
      %v1372 = vpop.f32.mrb[0].mxu0
      %1373 = vmatprep.mubr.f32.mxu0 0.0
      %1374 = vmatmul.mubr.f32.gmra.mrb[0].mxu0 %v1186
      %v1375 = vpop.f32.mrb[0].mxu0
      %v1376 = vadd.f32 0.0, %v1375
      %v1377 = vpop.f32.mrb[0].mxu0
      %1378 = vmatprep.mubr.f32.mxu0 0.0
      %1379 = vmatmul.mubr.f32.gmra.mrb[0].mxu0 %v1189
      %v1380 = vpop.f32.mrb[0].mxu0
      %v1381 = vadd.f32 0.0, %v1380
      %v1382 = vpop.f32.mrb[0].mxu0
      %1383 = vmatprep.mubr.f32.mxu0 0.0
      %1384 = vmatmul.mubr.f32.gmra.mrb[0].mxu0 %v1192
      %v1385 = vpop.f32.mrb[0].mxu0
      %v1386 = vadd.f32 0.0, %v1385
      %v1387 = vpop.f32.mrb[0].mxu0
      %1388 = vmatprep.mubr.f32.mxu0 0.0
      %1389 = vmatmul.mubr.f32.gmra.mrb[0].mxu0 %v1195
      %v1390 = vpop.f32.mrb[0].mxu0
      %v1391 = vadd.f32 0.0, %v1390
      %v1392 = vpop.f32.mrb[0].mxu0
      %1393 = vmatprep.mubr.f32.mxu0 0.0
      %1394 = vmatmul.mubr.f32.gmra.mrb[0].mxu0 %v1198
      %v1395 = vpop.f32.mrb[0].mxu0
      %v1396 = vadd.f32 0.0, %v1395
      %v1397 = vpop.f32.mrb[0].mxu0
      %1398 = vmatprep.mubr.f32.mxu0 0.0
      %1399 = vmatmul.mubr.f32.gmra.mrb[0].mxu0 %v1201
      %v1400 = vpop.f32.mrb[0].mxu0
      %v1401 = vadd.f32 0.0, %v1400
      %v1402 = vpop.f32.mrb[0].mxu0
      %1403 = vmatprep.mubr.f32.mxu0 0.0
      %1404 = vmatmul.mubr.f32.gmra.mrb[0].mxu0 %v1204
      %v1405 = vpop.f32.mrb[0].mxu0
      %v1406 = vadd.f32 0.0, %v1405
      %v1407 = vpop.f32.mrb[0].mxu0
      %1408 = vmatprep.mubr.f32.mxu0 0.0
      %1409 = vmatmul.mubr.f32.gmra.mrb[0].mxu0 %v1207
      %v1410 = vpop.f32.mrb[0].mxu0
      %v1411 = vadd.f32 0.0, %v1410
      %v1412 = vpop.f32.mrb[0].mxu0
      %1413 = vmatprep.mubr.f32.mxu0 0.0
      %1414 = vmatmul.mubr.f32.gmra.mrb[0].mxu0 %v1210
      %v1415 = vpop.f32.mrb[0].mxu0
      %v1416 = vadd.f32 0.0, %v1415
      %v1417 = vpop.f32.mrb[0].mxu0
      %1418 = vmatprep.mubr.f32.mxu0 0.0
      %1419 = vmatmul.mubr.f32.gmra.mrb[0].mxu0 %v1213
      %v1420 = vpop.f32.mrb[0].mxu0
      %v1421 = vadd.f32 0.0, %v1420
      %v1422 = vpop.f32.mrb[0].mxu0
      %1423 = vmatprep.mubr.f32.mxu0 0.0
      %1424 = vmatmul.mubr.f32.gmra.mrb[0].mxu0 %v1216
      %v1425 = vpop.f32.mrb[0].mxu0
      %v1426 = vadd.f32 0.0, %v1425
      %v1427 = vpop.f32.mrb[0].mxu0
      %1428 = vmatprep.mubr.f32.mxu0 0.0
      %1429 = vmatmul.mubr.f32.gmra.mrb[0].mxu0 %v1219
      %v1430 = vpop.f32.mrb[0].mxu0
      %v1431 = vadd.f32 0.0, %v1430
      %v1432 = vpop.f32.mrb[0].mxu0
      %1433 = vmatprep.mubr.f32.mxu0 0.0
      %1434 = vmatmul.mubr.f32.gmra.mrb[0].mxu0 %v1222
      %v1435 = vpop.f32.mrb[0].mxu0
      %v1436 = vadd.f32 0.0, %v1435
      %v1437 = vpop.f32.mrb[0].mxu0
      %1438 = vmatprep.mubr.f32.mxu0 0.0
      %1439 = vmatmul.mubr.f32.gmra.mrb[0].mxu0 %v1225
      %v1440 = vpop.f32.mrb[0].mxu0
      %v1441 = vadd.f32 0.0, %v1440
      %v1442 = vpop.f32.mrb[0].mxu0
      %1443 = vmatprep.mubr.f32.mxu0 0.0
      %1444 = vmatmul.mubr.f32.gmra.mrb[0].mxu0 %v1228
      %v1445 = vpop.f32.mrb[0].mxu0
      %v1446 = vadd.f32 0.0, %v1445
      %v1447 = vpop.f32.mrb[0].mxu0
      %1448 = vmatprep.mubr.f32.mxu0 0.0
      %1449 = vmatmul.mubr.f32.gmra.mrb[0].mxu0 %v1231
      %v1450 = vpop.f32.mrb[0].mxu0
      %v1451 = vadd.f32 0.0, %v1450
      %v1452 = vpop.f32.mrb[0].mxu0
      %1453 = vmatprep.mubr.f32.mxu0 0.0
      %1454 = vmatmul.mubr.f32.gmra.mrb[0].mxu0 %v1234
      %v1455 = vpop.f32.mrb[0].mxu0
      %v1456 = vadd.f32 0.0, %v1455
      %v1457 = vpop.f32.mrb[0].mxu0
      %1458 = vmatprep.mubr.f32.mxu0 0.0
      %1459 = vmatmul.mubr.f32.gmra.mrb[0].mxu0 %v1237
      %v1460 = vpop.f32.mrb[0].mxu0
      %v1461 = vadd.f32 0.0, %v1460
      %v1462 = vpop.f32.mrb[0].mxu0
      %1463 = vdwg.mxu0
      %v1465 = vsel %vm1031, %v1070, 0
      %v1468 = vsel %vm1031, %v1071, 0
      %v1471 = vsel %vm1031, %v1072, 0
      %v1474 = vsel %vm1031, %v1073, 0
      %v1477 = vsel %vm1031, %v1074, 0
      %v1480 = vsel %vm1031, %v1075, 0
      %v1483 = vsel %vm1031, %v1076, 0
      %v1486 = vsel %vm1031, %v1077, 0
      %v1489 = vsel %vm1031, %v1078, 0
      %v1492 = vsel %vm1031, %v1079, 0
      %v1495 = vsel %vm1031, %v1080, 0
      %v1498 = vsel %vm1031, %v1081, 0
      %v1501 = vsel %vm1031, %v1082, 0
      %v1504 = vsel %vm1031, %v1083, 0
      %v1507 = vsel %vm1031, %v1084, 0
      %v1510 = vsel %vm1031, %v1085, 0
      %v1513 = vsel %vm1031, %v1086, 0
      %v1516 = vsel %vm1031, %v1087, 0
      %v1519 = vsel %vm1031, %v1088, 0
      %v1522 = vsel %vm1031, %v1089, 0
      %v1525 = vsel %vm1031, %v1090, 0
      %v1528 = vsel %vm1031, %v1091, 0
      %v1531 = vsel %vm1031, %v1092, 0
      %v1534 = vsel %vm1031, %v1093, 0
      %v1537 = vsel %vm1031, %v1094, 0
      %v1540 = vsel %vm1031, %v1095, 0
      %v1543 = vsel %vm1031, %v1096, 0
      %v1546 = vsel %vm1031, %v1097, 0
      %v1549 = vsel %vm1031, %v1098, 0
      %v1552 = vsel %vm1031, %v1099, 0
      %v1555 = vsel %vm1031, %v1100, 0
      %v1558 = vsel %vm1031, %v1101, 0
      %1560 = vmatprep.subr.mxu0 0.0
      %1561 = vmatpush1.msra.mxu0 %v1102
      %1562 = vmatprep.subr.mxu0 0.0
      %1563 = vmatpush1.msra.mxu0 %v1103
      %1564 = vmatprep.subr.mxu0 0.0
      %1565 = vmatpush1.msra.mxu0 %v1104
      %1566 = vmatprep.subr.mxu0 0.0
      %1567 = vmatpush1.msra.mxu0 %v1105
      %1568 = vmatprep.subr.mxu0 0.0
      %1569 = vmatpush1.msra.mxu0 0.0
      %1570 = vmatprep.subr.mxu0 0.0
      %1571 = vmatpush1.msra.mxu0 0.0
      %1572 = vmatprep.subr.mxu0 0.0
      %1573 = vmatpush1.msra.mxu0 0.0
      %1574 = vmatprep.subr.mxu0 0.0
      %1575 = vmatpush1.msra.mxu0 0.0
      %1576 = vmatprep.subr.mxu0 0.0
      %1577 = vmatpush1.msra.mxu0 0.0
      %1578 = vmatprep.subr.mxu0 0.0
      %1579 = vmatpush1.msra.mxu0 0.0
      %1580 = vmatprep.subr.mxu0 0.0
      %1581 = vmatpush1.msra.mxu0 0.0
      %1582 = vmatprep.subr.mxu0 0.0
      %1583 = vmatpush1.msra.mxu0 0.0
      %1584 = vmatprep.subr.mxu0 0.0
      %1585 = vmatpush1.msra.mxu0 0.0
      %1586 = vmatprep.subr.mxu0 0.0
      %1587 = vmatpush1.msra.mxu0 0.0
      %1588 = vmatprep.subr.mxu0 0.0
      %1589 = vmatpush1.msra.mxu0 0.0
      %1590 = vmatprep.subr.mxu0 0.0
      %1591 = vmatpush1.msra.mxu0 0.0
      %1592 = vmatprep.subr.mxu0 0.0
      %1593 = vmatpush1.msra.mxu0 0.0
      %1594 = vmatprep.subr.mxu0 0.0
      %1595 = vmatpush1.msra.mxu0 0.0
      %1596 = vmatprep.subr.mxu0 0.0
      %1597 = vmatpush1.msra.mxu0 0.0
      %1598 = vmatprep.subr.mxu0 0.0
      %1599 = vmatpush1.msra.mxu0 0.0
      %1600 = vmatprep.subr.mxu0 0.0
      %1601 = vmatpush1.msra.mxu0 0.0
      %1602 = vmatprep.subr.mxu0 0.0
      %1603 = vmatpush1.msra.mxu0 0.0
      %1604 = vmatprep.subr.mxu0 0.0
      %1605 = vmatpush1.msra.mxu0 0.0
      %1606 = vmatprep.subr.mxu0 0.0
      %1607 = vmatpush1.msra.mxu0 0.0
      %1608 = vmatprep.subr.mxu0 0.0
      %1609 = vmatpush1.msra.mxu0 0.0
      %1610 = vmatprep.subr.mxu0 0.0
      %1611 = vmatpush1.msra.mxu0 0.0
      %1612 = vmatprep.subr.mxu0 0.0
      %1613 = vmatpush1.msra.mxu0 0.0
      %1614 = vmatprep.subr.mxu0 0.0
      %1615 = vmatpush1.msra.mxu0 0.0
      %1616 = vmatprep.subr.mxu0 0.0
      %1617 = vmatpush1.msra.mxu0 0.0
      %1618 = vmatprep.subr.mxu0 0.0
      %1619 = vmatpush1.msra.mxu0 0.0
      %1620 = vmatprep.subr.mxu0 0.0
      %1621 = vmatpush1.msra.mxu0 0.0
      %1622 = vmatprep.subr.mxu0 0.0
      %1623 = vmatpush1.msra.mxu0 0.0
      %1624 = vmatprep.mubr.f32.mxu0 0.0
      %1625 = vmatmul.mubr.f32.gmra.mrb[0].mxu0 %v1465
      %v1626 = vpop.f32.mrb[0].mxu0
      %v1627 = vadd.f32 %v1306, %v1626
      %v1628 = vpop.f32.mrb[0].mxu0
      %1629 = vmatprep.mubr.f32.mxu0 0.0
      %1630 = vmatmul.mubr.f32.gmra.mrb[0].mxu0 %v1468
      %v1631 = vpop.f32.mrb[0].mxu0
      %v1632 = vadd.f32 %v1311, %v1631
      %v1633 = vpop.f32.mrb[0].mxu0
      %1634 = vmatprep.mubr.f32.mxu0 0.0
      %1635 = vmatmul.mubr.f32.gmra.mrb[0].mxu0 %v1471
      %v1636 = vpop.f32.mrb[0].mxu0
      %v1637 = vadd.f32 %v1316, %v1636
      %v1638 = vpop.f32.mrb[0].mxu0
      %1639 = vmatprep.mubr.f32.mxu0 0.0
      %1640 = vmatmul.mubr.f32.gmra.mrb[0].mxu0 %v1474
      %v1641 = vpop.f32.mrb[0].mxu0
      %v1642 = vadd.f32 %v1321, %v1641
      %v1643 = vpop.f32.mrb[0].mxu0
      %1644 = vmatprep.mubr.f32.mxu0 0.0
      %1645 = vmatmul.mubr.f32.gmra.mrb[0].mxu0 %v1477
      %v1646 = vpop.f32.mrb[0].mxu0
      %v1647 = vadd.f32 %v1326, %v1646
      %v1648 = vpop.f32.mrb[0].mxu0
      %1649 = vmatprep.mubr.f32.mxu0 0.0
      %1650 = vmatmul.mubr.f32.gmra.mrb[0].mxu0 %v1480
      %v1651 = vpop.f32.mrb[0].mxu0
      %v1652 = vadd.f32 %v1331, %v1651
      %v1653 = vpop.f32.mrb[0].mxu0
      %1654 = vmatprep.mubr.f32.mxu0 0.0
      %1655 = vmatmul.mubr.f32.gmra.mrb[0].mxu0 %v1483
      %v1656 = vpop.f32.mrb[0].mxu0
      %v1657 = vadd.f32 %v1336, %v1656
      %v1658 = vpop.f32.mrb[0].mxu0
      %1659 = vmatprep.mubr.f32.mxu0 0.0
      %1660 = vmatmul.mubr.f32.gmra.mrb[0].mxu0 %v1486
      %v1661 = vpop.f32.mrb[0].mxu0
      %v1662 = vadd.f32 %v1341, %v1661
      %v1663 = vpop.f32.mrb[0].mxu0
      %1664 = vmatprep.mubr.f32.mxu0 0.0
      %1665 = vmatmul.mubr.f32.gmra.mrb[0].mxu0 %v1489
      %v1666 = vpop.f32.mrb[0].mxu0
      %v1667 = vadd.f32 %v1346, %v1666
      %v1668 = vpop.f32.mrb[0].mxu0
      %1669 = vmatprep.mubr.f32.mxu0 0.0
      %1670 = vmatmul.mubr.f32.gmra.mrb[0].mxu0 %v1492
      %v1671 = vpop.f32.mrb[0].mxu0
      %v1672 = vadd.f32 %v1351, %v1671
      %v1673 = vpop.f32.mrb[0].mxu0
      %1674 = vmatprep.mubr.f32.mxu0 0.0
      %1675 = vmatmul.mubr.f32.gmra.mrb[0].mxu0 %v1495
      %v1676 = vpop.f32.mrb[0].mxu0
      %v1677 = vadd.f32 %v1356, %v1676
      %v1678 = vpop.f32.mrb[0].mxu0
      %1679 = vmatprep.mubr.f32.mxu0 0.0
      %1680 = vmatmul.mubr.f32.gmra.mrb[0].mxu0 %v1498
      %v1681 = vpop.f32.mrb[0].mxu0
      %v1682 = vadd.f32 %v1361, %v1681
      %v1683 = vpop.f32.mrb[0].mxu0
      %1684 = vmatprep.mubr.f32.mxu0 0.0
      %1685 = vmatmul.mubr.f32.gmra.mrb[0].mxu0 %v1501
      %v1686 = vpop.f32.mrb[0].mxu0
      %v1687 = vadd.f32 %v1366, %v1686
      %v1688 = vpop.f32.mrb[0].mxu0
      %1689 = vmatprep.mubr.f32.mxu0 0.0
      %1690 = vmatmul.mubr.f32.gmra.mrb[0].mxu0 %v1504
      %v1691 = vpop.f32.mrb[0].mxu0
      %v1692 = vadd.f32 %v1371, %v1691
      %v1693 = vpop.f32.mrb[0].mxu0
      %1694 = vmatprep.mubr.f32.mxu0 0.0
      %1695 = vmatmul.mubr.f32.gmra.mrb[0].mxu0 %v1507
      %v1696 = vpop.f32.mrb[0].mxu0
      %v1697 = vadd.f32 %v1376, %v1696
      %v1698 = vpop.f32.mrb[0].mxu0
      %1699 = vmatprep.mubr.f32.mxu0 0.0
      %1700 = vmatmul.mubr.f32.gmra.mrb[0].mxu0 %v1510
      %v1701 = vpop.f32.mrb[0].mxu0
      %v1702 = vadd.f32 %v1381, %v1701
      %v1703 = vpop.f32.mrb[0].mxu0
      %1704 = vmatprep.mubr.f32.mxu0 0.0
      %1705 = vmatmul.mubr.f32.gmra.mrb[0].mxu0 %v1513
      %v1706 = vpop.f32.mrb[0].mxu0
      %v1707 = vadd.f32 %v1386, %v1706
      %v1708 = vpop.f32.mrb[0].mxu0
      %1709 = vmatprep.mubr.f32.mxu0 0.0
      %1710 = vmatmul.mubr.f32.gmra.mrb[0].mxu0 %v1516
      %v1711 = vpop.f32.mrb[0].mxu0
      %v1712 = vadd.f32 %v1391, %v1711
      %v1713 = vpop.f32.mrb[0].mxu0
      %1714 = vmatprep.mubr.f32.mxu0 0.0
      %1715 = vmatmul.mubr.f32.gmra.mrb[0].mxu0 %v1519
      %v1716 = vpop.f32.mrb[0].mxu0
      %v1717 = vadd.f32 %v1396, %v1716
      %v1718 = vpop.f32.mrb[0].mxu0
      %1719 = vmatprep.mubr.f32.mxu0 0.0
      %1720 = vmatmul.mubr.f32.gmra.mrb[0].mxu0 %v1522
      %v1721 = vpop.f32.mrb[0].mxu0
      %v1722 = vadd.f32 %v1401, %v1721
      %v1723 = vpop.f32.mrb[0].mxu0
      %1724 = vmatprep.mubr.f32.mxu0 0.0
      %1725 = vmatmul.mubr.f32.gmra.mrb[0].mxu0 %v1525
      %v1726 = vpop.f32.mrb[0].mxu0
      %v1727 = vadd.f32 %v1406, %v1726
      %v1728 = vpop.f32.mrb[0].mxu0
      %1729 = vmatprep.mubr.f32.mxu0 0.0
      %1730 = vmatmul.mubr.f32.gmra.mrb[0].mxu0 %v1528
      %v1731 = vpop.f32.mrb[0].mxu0
      %v1732 = vadd.f32 %v1411, %v1731
      %v1733 = vpop.f32.mrb[0].mxu0
      %1734 = vmatprep.mubr.f32.mxu0 0.0
      %1735 = vmatmul.mubr.f32.gmra.mrb[0].mxu0 %v1531
      %v1736 = vpop.f32.mrb[0].mxu0
      %v1737 = vadd.f32 %v1416, %v1736
      %v1738 = vpop.f32.mrb[0].mxu0
      %1739 = vmatprep.mubr.f32.mxu0 0.0
      %1740 = vmatmul.mubr.f32.gmra.mrb[0].mxu0 %v1534
      %v1741 = vpop.f32.mrb[0].mxu0
      %v1742 = vadd.f32 %v1421, %v1741
      %v1743 = vpop.f32.mrb[0].mxu0
      %1744 = vmatprep.mubr.f32.mxu0 0.0
      %1745 = vmatmul.mubr.f32.gmra.mrb[0].mxu0 %v1537
      %v1746 = vpop.f32.mrb[0].mxu0
      %v1747 = vadd.f32 %v1426, %v1746
      %v1748 = vpop.f32.mrb[0].mxu0
      %1749 = vmatprep.mubr.f32.mxu0 0.0
      %1750 = vmatmul.mubr.f32.gmra.mrb[0].mxu0 %v1540
      %v1751 = vpop.f32.mrb[0].mxu0
      %v1752 = vadd.f32 %v1431, %v1751
      %v1753 = vpop.f32.mrb[0].mxu0
      %1754 = vmatprep.mubr.f32.mxu0 0.0
      %1755 = vmatmul.mubr.f32.gmra.mrb[0].mxu0 %v1543
      %v1756 = vpop.f32.mrb[0].mxu0
      %v1757 = vadd.f32 %v1436, %v1756
      %v1758 = vpop.f32.mrb[0].mxu0
      %1759 = vmatprep.mubr.f32.mxu0 0.0
      %1760 = vmatmul.mubr.f32.gmra.mrb[0].mxu0 %v1546
      %v1761 = vpop.f32.mrb[0].mxu0
      %v1762 = vadd.f32 %v1441, %v1761
      %v1763 = vpop.f32.mrb[0].mxu0
      %1764 = vmatprep.mubr.f32.mxu0 0.0
      %1765 = vmatmul.mubr.f32.gmra.mrb[0].mxu0 %v1549
      %v1766 = vpop.f32.mrb[0].mxu0
      %v1767 = vadd.f32 %v1446, %v1766
      %v1768 = vpop.f32.mrb[0].mxu0
      %1769 = vmatprep.mubr.f32.mxu0 0.0
      %1770 = vmatmul.mubr.f32.gmra.mrb[0].mxu0 %v1552
      %v1771 = vpop.f32.mrb[0].mxu0
      %v1772 = vadd.f32 %v1451, %v1771
      %v1773 = vpop.f32.mrb[0].mxu0
      %1774 = vmatprep.mubr.f32.mxu0 0.0
      %1775 = vmatmul.mubr.f32.gmra.mrb[0].mxu0 %v1555
      %v1776 = vpop.f32.mrb[0].mxu0
      %v1777 = vadd.f32 %v1456, %v1776
      %v1778 = vpop.f32.mrb[0].mxu0
      %1779 = vmatprep.mubr.f32.mxu0 0.0
      %1780 = vmatmul.mubr.f32.gmra.mrb[0].mxu0 %v1558
      %v1781 = vpop.f32.mrb[0].mxu0
      %v1782 = vadd.f32 %v1461, %v1781
      %v1783 = vpop.f32.mrb[0].mxu0
      %1784 = vdwg.mxu0
      %v1785 = vld [vmem:[#allocation2 + $0x2] sm:$0xff]
      %v1786 = vld [vmem:[#allocation2 + $0xa] sm:$0xff]
      %v1787 = vld [vmem:[#allocation2 + $0x1a] sm:$0xff]
      %v1788 = vld [vmem:[#allocation2 + $0x22] sm:$0xff]
      %v1789 = vld [vmem:[#allocation2 + $0x32] sm:$0xff]
      %v1790 = vld [vmem:[#allocation2 + $0x3a] sm:$0xff]
      %v1791 = vld [vmem:[#allocation2 + $0x4a] sm:$0xff]
      %v1792 = vld [vmem:[#allocation2 + $0x52] sm:$0xff]
      %v1793 = vld [vmem:[#allocation2 + $0x62] sm:$0xff]
      %v1794 = vld [vmem:[#allocation2 + $0x6a] sm:$0xff]
      %v1795 = vld [vmem:[#allocation2 + $0x7a] sm:$0xff]
      %v1796 = vld [vmem:[#allocation2 + $0x82] sm:$0xff]
      %v1797 = vld [vmem:[#allocation2 + $0x92] sm:$0xff]
      %v1798 = vld [vmem:[#allocation2 + $0x9a] sm:$0xff]
      %v1799 = vld [vmem:[#allocation2 + $0xaa] sm:$0xff]
      %v1800 = vld [vmem:[#allocation2 + $0xb2] sm:$0xff]
      %v1801 = vld [vmem:[#allocation2 + $0xc2] sm:$0xff]
      %v1802 = vld [vmem:[#allocation2 + $0xca] sm:$0xff]
      %v1803 = vld [vmem:[#allocation2 + $0xda] sm:$0xff]
      %v1804 = vld [vmem:[#allocation2 + $0xe2] sm:$0xff]
      %v1805 = vld [vmem:[#allocation2 + $0xf2] sm:$0xff]
      %v1806 = vld [vmem:[#allocation2 + $0xfa] sm:$0xff]
      %v1807 = vld [vmem:[#allocation2 + $0x10a] sm:$0xff]
      %v1808 = vld [vmem:[#allocation2 + $0x112] sm:$0xff]
      %v1809 = vld [vmem:[#allocation2 + $0x122] sm:$0xff]
      %v1810 = vld [vmem:[#allocation2 + $0x12a] sm:$0xff]
      %v1811 = vld [vmem:[#allocation2 + $0x13a] sm:$0xff]
      %v1812 = vld [vmem:[#allocation2 + $0x142] sm:$0xff]
      %v1813 = vld [vmem:[#allocation2 + $0x152] sm:$0xff]
      %v1814 = vld [vmem:[#allocation2 + $0x15a] sm:$0xff]
      %v1815 = vld [vmem:[#allocation2 + $0x16a] sm:$0xff]
      %v1816 = vld [vmem:[#allocation2 + $0x172] sm:$0xff]
      %s1817 = scalar_lea.vmem %s4, 64
      %v1818 = vld [vmem:[%s1817] sm:$0xff]
      %v1819 = vld [vmem:[%s1817 + $0x8] sm:$0xff]
      %v1820 = vld [vmem:[%s1817 + $0x10] sm:$0xff]
      %v1821 = vld [vmem:[%s1817 + $0x18] sm:$0xff]
      %v1823 = vsel %vm1031, %v1785, 0
      %v1826 = vsel %vm1031, %v1786, 0
      %v1829 = vsel %vm1031, %v1787, 0
      %v1832 = vsel %vm1031, %v1788, 0
      %v1835 = vsel %vm1031, %v1789, 0
      %v1838 = vsel %vm1031, %v1790, 0
      %v1841 = vsel %vm1031, %v1791, 0
      %v1844 = vsel %vm1031, %v1792, 0
      %v1847 = vsel %vm1031, %v1793, 0
      %v1850 = vsel %vm1031, %v1794, 0
      %v1853 = vsel %vm1031, %v1795, 0
      %v1856 = vsel %vm1031, %v1796, 0
      %v1859 = vsel %vm1031, %v1797, 0
      %v1862 = vsel %vm1031, %v1798, 0
      %v1865 = vsel %vm1031, %v1799, 0
      %v1868 = vsel %vm1031, %v1800, 0
      %v1871 = vsel %vm1031, %v1801, 0
      %v1874 = vsel %vm1031, %v1802, 0
      %v1877 = vsel %vm1031, %v1803, 0
      %v1880 = vsel %vm1031, %v1804, 0
      %v1883 = vsel %vm1031, %v1805, 0
      %v1886 = vsel %vm1031, %v1806, 0
      %v1889 = vsel %vm1031, %v1807, 0
      %v1892 = vsel %vm1031, %v1808, 0
      %v1895 = vsel %vm1031, %v1809, 0
      %v1898 = vsel %vm1031, %v1810, 0
      %v1901 = vsel %vm1031, %v1811, 0
      %v1904 = vsel %vm1031, %v1812, 0
      %v1907 = vsel %vm1031, %v1813, 0
      %v1910 = vsel %vm1031, %v1814, 0
      %v1913 = vsel %vm1031, %v1815, 0
      %v1916 = vsel %vm1031, %v1816, 0
      %1918 = vmatprep.subr.mxu0 0.0
      %1919 = vmatpush1.msra.mxu0 %v1818
      %1920 = vmatprep.subr.mxu0 0.0
      %1921 = vmatpush1.msra.mxu0 %v1819
      %1922 = vmatprep.subr.mxu0 0.0
      %1923 = vmatpush1.msra.mxu0 %v1820
      %1924 = vmatprep.subr.mxu0 0.0
      %1925 = vmatpush1.msra.mxu0 %v1821
      %1926 = vmatprep.subr.mxu0 0.0
      %1927 = vmatpush1.msra.mxu0 0.0
      %1928 = vmatprep.subr.mxu0 0.0
      %1929 = vmatpush1.msra.mxu0 0.0
      %1930 = vmatprep.subr.mxu0 0.0
      %1931 = vmatpush1.msra.mxu0 0.0
      %1932 = vmatprep.subr.mxu0 0.0
      %1933 = vmatpush1.msra.mxu0 0.0
      %1934 = vmatprep.subr.mxu0 0.0
      %1935 = vmatpush1.msra.mxu0 0.0
      %1936 = vmatprep.subr.mxu0 0.0
      %1937 = vmatpush1.msra.mxu0 0.0
      %1938 = vmatprep.subr.mxu0 0.0
      %1939 = vmatpush1.msra.mxu0 0.0
      %1940 = vmatprep.subr.mxu0 0.0
      %1941 = vmatpush1.msra.mxu0 0.0
      %1942 = vmatprep.subr.mxu0 0.0
      %1943 = vmatpush1.msra.mxu0 0.0
      %1944 = vmatprep.subr.mxu0 0.0
      %1945 = vmatpush1.msra.mxu0 0.0
      %1946 = vmatprep.subr.mxu0 0.0
      %1947 = vmatpush1.msra.mxu0 0.0
      %1948 = vmatprep.subr.mxu0 0.0
      %1949 = vmatpush1.msra.mxu0 0.0
      %1950 = vmatprep.subr.mxu0 0.0
      %1951 = vmatpush1.msra.mxu0 0.0
      %1952 = vmatprep.subr.mxu0 0.0
      %1953 = vmatpush1.msra.mxu0 0.0
      %1954 = vmatprep.subr.mxu0 0.0
      %1955 = vmatpush1.msra.mxu0 0.0
      %1956 = vmatprep.subr.mxu0 0.0
      %1957 = vmatpush1.msra.mxu0 0.0
      %1958 = vmatprep.subr.mxu0 0.0
      %1959 = vmatpush1.msra.mxu0 0.0
      %1960 = vmatprep.subr.mxu0 0.0
      %1961 = vmatpush1.msra.mxu0 0.0
      %1962 = vmatprep.subr.mxu0 0.0
      %1963 = vmatpush1.msra.mxu0 0.0
      %1964 = vmatprep.subr.mxu0 0.0
      %1965 = vmatpush1.msra.mxu0 0.0
      %1966 = vmatprep.subr.mxu0 0.0
      %1967 = vmatpush1.msra.mxu0 0.0
      %1968 = vmatprep.subr.mxu0 0.0
      %1969 = vmatpush1.msra.mxu0 0.0
      %1970 = vmatprep.subr.mxu0 0.0
      %1971 = vmatpush1.msra.mxu0 0.0
      %1972 = vmatprep.subr.mxu0 0.0
      %1973 = vmatpush1.msra.mxu0 0.0
      %1974 = vmatprep.subr.mxu0 0.0
      %1975 = vmatpush1.msra.mxu0 0.0
      %1976 = vmatprep.subr.mxu0 0.0
      %1977 = vmatpush1.msra.mxu0 0.0
      %1978 = vmatprep.subr.mxu0 0.0
      %1979 = vmatpush1.msra.mxu0 0.0
      %1980 = vmatprep.subr.mxu0 0.0
      %1981 = vmatpush1.msra.mxu0 0.0
      %1982 = vmatprep.mubr.f32.mxu0 0.0
      %1983 = vmatmul.mubr.f32.gmra.mrb[0].mxu0 %v1823
      %v1984 = vpop.f32.mrb[0].mxu0
      %v1985 = vadd.f32 0.0, %v1984
      %v1986 = vpop.f32.mrb[0].mxu0
      %1987 = vmatprep.mubr.f32.mxu0 0.0
      %1988 = vmatmul.mubr.f32.gmra.mrb[0].mxu0 %v1826
      %v1989 = vpop.f32.mrb[0].mxu0
      %v1990 = vadd.f32 0.0, %v1989
      %v1991 = vpop.f32.mrb[0].mxu0
      %1992 = vmatprep.mubr.f32.mxu0 0.0
      %1993 = vmatmul.mubr.f32.gmra.mrb[0].mxu0 %v1829
      %v1994 = vpop.f32.mrb[0].mxu0
      %v1995 = vadd.f32 0.0, %v1994
      %v1996 = vpop.f32.mrb[0].mxu0
      %1997 = vmatprep.mubr.f32.mxu0 0.0
      %1998 = vmatmul.mubr.f32.gmra.mrb[0].mxu0 %v1832
      %v1999 = vpop.f32.mrb[0].mxu0
      %v2000 = vadd.f32 0.0, %v1999
      %v2001 = vpop.f32.mrb[0].mxu0
      %2002 = vmatprep.mubr.f32.mxu0 0.0
      %2003 = vmatmul.mubr.f32.gmra.mrb[0].mxu0 %v1835
      %v2004 = vpop.f32.mrb[0].mxu0
      %v2005 = vadd.f32 0.0, %v2004
      %v2006 = vpop.f32.mrb[0].mxu0
      %2007 = vmatprep.mubr.f32.mxu0 0.0
      %2008 = vmatmul.mubr.f32.gmra.mrb[0].mxu0 %v1838
      %v2009 = vpop.f32.mrb[0].mxu0
      %v2010 = vadd.f32 0.0, %v2009
      %v2011 = vpop.f32.mrb[0].mxu0
      %2012 = vmatprep.mubr.f32.mxu0 0.0
      %2013 = vmatmul.mubr.f32.gmra.mrb[0].mxu0 %v1841
      %v2014 = vpop.f32.mrb[0].mxu0
      %v2015 = vadd.f32 0.0, %v2014
      %v2016 = vpop.f32.mrb[0].mxu0
      %2017 = vmatprep.mubr.f32.mxu0 0.0
      %2018 = vmatmul.mubr.f32.gmra.mrb[0].mxu0 %v1844
      %v2019 = vpop.f32.mrb[0].mxu0
      %v2020 = vadd.f32 0.0, %v2019
      %v2021 = vpop.f32.mrb[0].mxu0
      %2022 = vmatprep.mubr.f32.mxu0 0.0
      %2023 = vmatmul.mubr.f32.gmra.mrb[0].mxu0 %v1847
      %v2024 = vpop.f32.mrb[0].mxu0
      %v2025 = vadd.f32 0.0, %v2024
      %v2026 = vpop.f32.mrb[0].mxu0
      %2027 = vmatprep.mubr.f32.mxu0 0.0
      %2028 = vmatmul.mubr.f32.gmra.mrb[0].mxu0 %v1850
      %v2029 = vpop.f32.mrb[0].mxu0
      %v2030 = vadd.f32 0.0, %v2029
      %v2031 = vpop.f32.mrb[0].mxu0
      %2032 = vmatprep.mubr.f32.mxu0 0.0
      %2033 = vmatmul.mubr.f32.gmra.mrb[0].mxu0 %v1853
      %v2034 = vpop.f32.mrb[0].mxu0
      %v2035 = vadd.f32 0.0, %v2034
      %v2036 = vpop.f32.mrb[0].mxu0
      %2037 = vmatprep.mubr.f32.mxu0 0.0
      %2038 = vmatmul.mubr.f32.gmra.mrb[0].mxu0 %v1856
      %v2039 = vpop.f32.mrb[0].mxu0
      %v2040 = vadd.f32 0.0, %v2039
      %v2041 = vpop.f32.mrb[0].mxu0
      %2042 = vmatprep.mubr.f32.mxu0 0.0
      %2043 = vmatmul.mubr.f32.gmra.mrb[0].mxu0 %v1859
      %v2044 = vpop.f32.mrb[0].mxu0
      %v2045 = vadd.f32 0.0, %v2044
      %v2046 = vpop.f32.mrb[0].mxu0
      %2047 = vmatprep.mubr.f32.mxu0 0.0
      %2048 = vmatmul.mubr.f32.gmra.mrb[0].mxu0 %v1862
      %v2049 = vpop.f32.mrb[0].mxu0
      %v2050 = vadd.f32 0.0, %v2049
      %v2051 = vpop.f32.mrb[0].mxu0
      %2052 = vmatprep.mubr.f32.mxu0 0.0
      %2053 = vmatmul.mubr.f32.gmra.mrb[0].mxu0 %v1865
      %v2054 = vpop.f32.mrb[0].mxu0
      %v2055 = vadd.f32 0.0, %v2054
      %v2056 = vpop.f32.mrb[0].mxu0
      %2057 = vmatprep.mubr.f32.mxu0 0.0
      %2058 = vmatmul.mubr.f32.gmra.mrb[0].mxu0 %v1868
      %v2059 = vpop.f32.mrb[0].mxu0
      %v2060 = vadd.f32 0.0, %v2059
      %v2061 = vpop.f32.mrb[0].mxu0
      %2062 = vmatprep.mubr.f32.mxu0 0.0
      %2063 = vmatmul.mubr.f32.gmra.mrb[0].mxu0 %v1871
      %v2064 = vpop.f32.mrb[0].mxu0
      %v2065 = vadd.f32 0.0, %v2064
      %v2066 = vpop.f32.mrb[0].mxu0
      %2067 = vmatprep.mubr.f32.mxu0 0.0
      %2068 = vmatmul.mubr.f32.gmra.mrb[0].mxu0 %v1874
      %v2069 = vpop.f32.mrb[0].mxu0
      %v2070 = vadd.f32 0.0, %v2069
      %v2071 = vpop.f32.mrb[0].mxu0
      %2072 = vmatprep.mubr.f32.mxu0 0.0
      %2073 = vmatmul.mubr.f32.gmra.mrb[0].mxu0 %v1877
      %v2074 = vpop.f32.mrb[0].mxu0
      %v2075 = vadd.f32 0.0, %v2074
      %v2076 = vpop.f32.mrb[0].mxu0
      %2077 = vmatprep.mubr.f32.mxu0 0.0
      %2078 = vmatmul.mubr.f32.gmra.mrb[0].mxu0 %v1880
      %v2079 = vpop.f32.mrb[0].mxu0
      %v2080 = vadd.f32 0.0, %v2079
      %v2081 = vpop.f32.mrb[0].mxu0
      %2082 = vmatprep.mubr.f32.mxu0 0.0
      %2083 = vmatmul.mubr.f32.gmra.mrb[0].mxu0 %v1883
      %v2084 = vpop.f32.mrb[0].mxu0
      %v2085 = vadd.f32 0.0, %v2084
      %v2086 = vpop.f32.mrb[0].mxu0
      %2087 = vmatprep.mubr.f32.mxu0 0.0
      %2088 = vmatmul.mubr.f32.gmra.mrb[0].mxu0 %v1886
      %v2089 = vpop.f32.mrb[0].mxu0
      %v2090 = vadd.f32 0.0, %v2089
      %v2091 = vpop.f32.mrb[0].mxu0
      %2092 = vmatprep.mubr.f32.mxu0 0.0
      %2093 = vmatmul.mubr.f32.gmra.mrb[0].mxu0 %v1889
      %v2094 = vpop.f32.mrb[0].mxu0
      %v2095 = vadd.f32 0.0, %v2094
      %v2096 = vpop.f32.mrb[0].mxu0
      %2097 = vmatprep.mubr.f32.mxu0 0.0
      %2098 = vmatmul.mubr.f32.gmra.mrb[0].mxu0 %v1892
      %v2099 = vpop.f32.mrb[0].mxu0
      %v2100 = vadd.f32 0.0, %v2099
      %v2101 = vpop.f32.mrb[0].mxu0
      %2102 = vmatprep.mubr.f32.mxu0 0.0
      %2103 = vmatmul.mubr.f32.gmra.mrb[0].mxu0 %v1895
      %v2104 = vpop.f32.mrb[0].mxu0
      %v2105 = vadd.f32 0.0, %v2104
      %v2106 = vpop.f32.mrb[0].mxu0
      %2107 = vmatprep.mubr.f32.mxu0 0.0
      %2108 = vmatmul.mubr.f32.gmra.mrb[0].mxu0 %v1898
      %v2109 = vpop.f32.mrb[0].mxu0
      %v2110 = vadd.f32 0.0, %v2109
      %v2111 = vpop.f32.mrb[0].mxu0
      %2112 = vmatprep.mubr.f32.mxu0 0.0
      %2113 = vmatmul.mubr.f32.gmra.mrb[0].mxu0 %v1901
      %v2114 = vpop.f32.mrb[0].mxu0
      %v2115 = vadd.f32 0.0, %v2114
      %v2116 = vpop.f32.mrb[0].mxu0
      %2117 = vmatprep.mubr.f32.mxu0 0.0
      %2118 = vmatmul.mubr.f32.gmra.mrb[0].mxu0 %v1904
      %v2119 = vpop.f32.mrb[0].mxu0
      %v2120 = vadd.f32 0.0, %v2119
      %v2121 = vpop.f32.mrb[0].mxu0
      %2122 = vmatprep.mubr.f32.mxu0 0.0
      %2123 = vmatmul.mubr.f32.gmra.mrb[0].mxu0 %v1907
      %v2124 = vpop.f32.mrb[0].mxu0
      %v2125 = vadd.f32 0.0, %v2124
      %v2126 = vpop.f32.mrb[0].mxu0
      %2127 = vmatprep.mubr.f32.mxu0 0.0
      %2128 = vmatmul.mubr.f32.gmra.mrb[0].mxu0 %v1910
      %v2129 = vpop.f32.mrb[0].mxu0
      %v2130 = vadd.f32 0.0, %v2129
      %v2131 = vpop.f32.mrb[0].mxu0
      %2132 = vmatprep.mubr.f32.mxu0 0.0
      %2133 = vmatmul.mubr.f32.gmra.mrb[0].mxu0 %v1913
      %v2134 = vpop.f32.mrb[0].mxu0
      %v2135 = vadd.f32 0.0, %v2134
      %v2136 = vpop.f32.mrb[0].mxu0
      %2137 = vmatprep.mubr.f32.mxu0 0.0
      %2138 = vmatmul.mubr.f32.gmra.mrb[0].mxu0 %v1916
      %v2139 = vpop.f32.mrb[0].mxu0
      %v2140 = vadd.f32 0.0, %v2139
      %v2141 = vpop.f32.mrb[0].mxu0
      %2142 = vdwg.mxu0
      %v2143 = vadd.f32 %v1627, %v1985
      %v2144 = vadd.f32 %v1632, %v1990
      %v2145 = vadd.f32 %v1637, %v1995
      %v2146 = vadd.f32 %v1642, %v2000
      %v2147 = vadd.f32 %v1647, %v2005
      %v2148 = vadd.f32 %v1652, %v2010
      %v2149 = vadd.f32 %v1657, %v2015
      %v2150 = vadd.f32 %v1662, %v2020
      %v2151 = vadd.f32 %v1667, %v2025
      %v2152 = vadd.f32 %v1672, %v2030
      %v2153 = vadd.f32 %v1677, %v2035
      %v2154 = vadd.f32 %v1682, %v2040
      %v2155 = vadd.f32 %v1687, %v2045
      %v2156 = vadd.f32 %v1692, %v2050
      %v2157 = vadd.f32 %v1697, %v2055
      %v2158 = vadd.f32 %v1702, %v2060
      %v2159 = vadd.f32 %v1707, %v2065
      %v2160 = vadd.f32 %v1712, %v2070
      %v2161 = vadd.f32 %v1717, %v2075
      %v2162 = vadd.f32 %v1722, %v2080
      %v2163 = vadd.f32 %v1727, %v2085
      %v2164 = vadd.f32 %v1732, %v2090
      %v2165 = vadd.f32 %v1737, %v2095
      %v2166 = vadd.f32 %v1742, %v2100
      %v2167 = vadd.f32 %v1747, %v2105
      %v2168 = vadd.f32 %v1752, %v2110
      %v2169 = vadd.f32 %v1757, %v2115
      %v2170 = vadd.f32 %v1762, %v2120
      %v2171 = vadd.f32 %v1767, %v2125
      %v2172 = vadd.f32 %v1772, %v2130
      %v2173 = vadd.f32 %v1777, %v2135
      %v2174 = vadd.f32 %v1782, %v2140
      %v2175 = vld [vmem:[%s1037] sm:$0xff]
      %v2176 = vld [vmem:[%s1037 + $0x8] sm:$0xff]
      %v2177 = vld [vmem:[%s1037 + $0x18] sm:$0xff]
      %v2178 = vld [vmem:[%s1037 + $0x20] sm:$0xff]
      %v2179 = vld [vmem:[%s1037 + $0x30] sm:$0xff]
      %v2180 = vld [vmem:[%s1037 + $0x38] sm:$0xff]
      %v2181 = vld [vmem:[%s1037 + $0x48] sm:$0xff]
      %v2182 = vld [vmem:[%s1037 + $0x50] sm:$0xff]
      %v2183 = vld [vmem:[%s1037 + $0x60] sm:$0xff]
      %v2184 = vld [vmem:[%s1037 + $0x68] sm:$0xff]
      %v2185 = vld [vmem:[%s1037 + $0x78] sm:$0xff]
      %v2186 = vld [vmem:[%s1037 + $0x80] sm:$0xff]
      %v2187 = vld [vmem:[%s1037 + $0x90] sm:$0xff]
      %v2188 = vld [vmem:[%s1037 + $0x98] sm:$0xff]
      %v2189 = vld [vmem:[%s1037 + $0xa8] sm:$0xff]
      %v2190 = vld [vmem:[%s1037 + $0xb0] sm:$0xff]
      %v2191 = vld [vmem:[%s1037 + $0xc0] sm:$0xff]
      %v2192 = vld [vmem:[%s1037 + $0xc8] sm:$0xff]
      %v2193 = vld [vmem:[%s1037 + $0xd8] sm:$0xff]
      %v2194 = vld [vmem:[%s1037 + $0xe0] sm:$0xff]
      %v2195 = vld [vmem:[%s1037 + $0xf0] sm:$0xff]
      %v2196 = vld [vmem:[%s1037 + $0xf8] sm:$0xff]
      %v2197 = vld [vmem:[%s1037 + $0x108] sm:$0xff]
      %v2198 = vld [vmem:[%s1037 + $0x110] sm:$0xff]
      %v2199 = vld [vmem:[%s1037 + $0x120] sm:$0xff]
      %v2200 = vld [vmem:[%s1037 + $0x128] sm:$0xff]
      %v2201 = vld [vmem:[%s1037 + $0x138] sm:$0xff]
      %v2202 = vld [vmem:[%s1037 + $0x140] sm:$0xff]
      %v2203 = vld [vmem:[%s1037 + $0x150] sm:$0xff]
      %v2204 = vld [vmem:[%s1037 + $0x158] sm:$0xff]
      %v2205 = vld [vmem:[%s1037 + $0x168] sm:$0xff]
      %v2206 = vld [vmem:[%s1037 + $0x170] sm:$0xff]
      %s2207 = scalar_lea.vmem %s4, 96
      %v2208 = vld [vmem:[%s2207] sm:$0xff]
      %v2209 = vld [vmem:[%s2207 + $0x8] sm:$0xff]
      %v2210 = vld [vmem:[%s2207 + $0x10] sm:$0xff]
      %v2211 = vld [vmem:[%s2207 + $0x18] sm:$0xff]
      %v2213 = vsel %vm1031, %v2175, 0
      %v2216 = vsel %vm1031, %v2176, 0
      %v2219 = vsel %vm1031, %v2177, 0
      %v2222 = vsel %vm1031, %v2178, 0
      %v2225 = vsel %vm1031, %v2179, 0
      %v2228 = vsel %vm1031, %v2180, 0
      %v2231 = vsel %vm1031, %v2181, 0
      %v2234 = vsel %vm1031, %v2182, 0
      %v2237 = vsel %vm1031, %v2183, 0
      %v2240 = vsel %vm1031, %v2184, 0
      %v2243 = vsel %vm1031, %v2185, 0
      %v2246 = vsel %vm1031, %v2186, 0
      %v2249 = vsel %vm1031, %v2187, 0
      %v2252 = vsel %vm1031, %v2188, 0
      %v2255 = vsel %vm1031, %v2189, 0
      %v2258 = vsel %vm1031, %v2190, 0
      %v2261 = vsel %vm1031, %v2191, 0
      %v2264 = vsel %vm1031, %v2192, 0
      %v2267 = vsel %vm1031, %v2193, 0
      %v2270 = vsel %vm1031, %v2194, 0
      %v2273 = vsel %vm1031, %v2195, 0
      %v2276 = vsel %vm1031, %v2196, 0
      %v2279 = vsel %vm1031, %v2197, 0
      %v2282 = vsel %vm1031, %v2198, 0
      %v2285 = vsel %vm1031, %v2199, 0
      %v2288 = vsel %vm1031, %v2200, 0
      %v2291 = vsel %vm1031, %v2201, 0
      %v2294 = vsel %vm1031, %v2202, 0
      %v2297 = vsel %vm1031, %v2203, 0
      %v2300 = vsel %vm1031, %v2204, 0
      %v2303 = vsel %vm1031, %v2205, 0
      %v2306 = vsel %vm1031, %v2206, 0
      %2308 = vmatprep.subr.mxu0 0.0
      %2309 = vmatpush1.msra.mxu0 %v2208
      %2310 = vmatprep.subr.mxu0 0.0
      %2311 = vmatpush1.msra.mxu0 %v2209
      %2312 = vmatprep.subr.mxu0 0.0
      %2313 = vmatpush1.msra.mxu0 %v2210
      %2314 = vmatprep.subr.mxu0 0.0
      %2315 = vmatpush1.msra.mxu0 %v2211
      %2316 = vmatprep.subr.mxu0 0.0
      %2317 = vmatpush1.msra.mxu0 0.0
      %2318 = vmatprep.subr.mxu0 0.0
      %2319 = vmatpush1.msra.mxu0 0.0
      %2320 = vmatprep.subr.mxu0 0.0
      %2321 = vmatpush1.msra.mxu0 0.0
      %2322 = vmatprep.subr.mxu0 0.0
      %2323 = vmatpush1.msra.mxu0 0.0
      %2324 = vmatprep.subr.mxu0 0.0
      %2325 = vmatpush1.msra.mxu0 0.0
      %2326 = vmatprep.subr.mxu0 0.0
      %2327 = vmatpush1.msra.mxu0 0.0
      %2328 = vmatprep.subr.mxu0 0.0
      %2329 = vmatpush1.msra.mxu0 0.0
      %2330 = vmatprep.subr.mxu0 0.0
      %2331 = vmatpush1.msra.mxu0 0.0
      %2332 = vmatprep.subr.mxu0 0.0
      %2333 = vmatpush1.msra.mxu0 0.0
      %2334 = vmatprep.subr.mxu0 0.0
      %2335 = vmatpush1.msra.mxu0 0.0
      %2336 = vmatprep.subr.mxu0 0.0
      %2337 = vmatpush1.msra.mxu0 0.0
      %2338 = vmatprep.subr.mxu0 0.0
      %2339 = vmatpush1.msra.mxu0 0.0
      %2340 = vmatprep.subr.mxu0 0.0
      %2341 = vmatpush1.msra.mxu0 0.0
      %2342 = vmatprep.subr.mxu0 0.0
      %2343 = vmatpush1.msra.mxu0 0.0
      %2344 = vmatprep.subr.mxu0 0.0
      %2345 = vmatpush1.msra.mxu0 0.0
      %2346 = vmatprep.subr.mxu0 0.0
      %2347 = vmatpush1.msra.mxu0 0.0
      %2348 = vmatprep.subr.mxu0 0.0
      %2349 = vmatpush1.msra.mxu0 0.0
      %2350 = vmatprep.subr.mxu0 0.0
      %2351 = vmatpush1.msra.mxu0 0.0
      %2352 = vmatprep.subr.mxu0 0.0
      %2353 = vmatpush1.msra.mxu0 0.0
      %2354 = vmatprep.subr.mxu0 0.0
      %2355 = vmatpush1.msra.mxu0 0.0
      %2356 = vmatprep.subr.mxu0 0.0
      %2357 = vmatpush1.msra.mxu0 0.0
      %2358 = vmatprep.subr.mxu0 0.0
      %2359 = vmatpush1.msra.mxu0 0.0
      %2360 = vmatprep.subr.mxu0 0.0
      %2361 = vmatpush1.msra.mxu0 0.0
      %2362 = vmatprep.subr.mxu0 0.0
      %2363 = vmatpush1.msra.mxu0 0.0
      %2364 = vmatprep.subr.mxu0 0.0
      %2365 = vmatpush1.msra.mxu0 0.0
      %2366 = vmatprep.subr.mxu0 0.0
      %2367 = vmatpush1.msra.mxu0 0.0
      %2368 = vmatprep.subr.mxu0 0.0
      %2369 = vmatpush1.msra.mxu0 0.0
      %2370 = vmatprep.subr.mxu0 0.0
      %2371 = vmatpush1.msra.mxu0 0.0
      %2372 = vmatprep.mubr.f32.mxu0 0.0
      %2373 = vmatmul.mubr.f32.gmra.mrb[0].mxu0 %v2213
      %v2374 = vpop.f32.mrb[0].mxu0
      %v2375 = vadd.f32 0.0, %v2374
      %v2376 = vpop.f32.mrb[0].mxu0
      %2377 = vmatprep.mubr.f32.mxu0 0.0
      %2378 = vmatmul.mubr.f32.gmra.mrb[0].mxu0 %v2216
      %v2379 = vpop.f32.mrb[0].mxu0
      %v2380 = vadd.f32 0.0, %v2379
      %v2381 = vpop.f32.mrb[0].mxu0
      %2382 = vmatprep.mubr.f32.mxu0 0.0
      %2383 = vmatmul.mubr.f32.gmra.mrb[0].mxu0 %v2219
      %v2384 = vpop.f32.mrb[0].mxu0
      %v2385 = vadd.f32 0.0, %v2384
      %v2386 = vpop.f32.mrb[0].mxu0
      %2387 = vmatprep.mubr.f32.mxu0 0.0
      %2388 = vmatmul.mubr.f32.gmra.mrb[0].mxu0 %v2222
      %v2389 = vpop.f32.mrb[0].mxu0
      %v2390 = vadd.f32 0.0, %v2389
      %v2391 = vpop.f32.mrb[0].mxu0
      %2392 = vmatprep.mubr.f32.mxu0 0.0
      %2393 = vmatmul.mubr.f32.gmra.mrb[0].mxu0 %v2225
      %v2394 = vpop.f32.mrb[0].mxu0
      %v2395 = vadd.f32 0.0, %v2394
      %v2396 = vpop.f32.mrb[0].mxu0
      %2397 = vmatprep.mubr.f32.mxu0 0.0
      %2398 = vmatmul.mubr.f32.gmra.mrb[0].mxu0 %v2228
      %v2399 = vpop.f32.mrb[0].mxu0
      %v2400 = vadd.f32 0.0, %v2399
      %v2401 = vpop.f32.mrb[0].mxu0
      %2402 = vmatprep.mubr.f32.mxu0 0.0
      %2403 = vmatmul.mubr.f32.gmra.mrb[0].mxu0 %v2231
      %v2404 = vpop.f32.mrb[0].mxu0
      %v2405 = vadd.f32 0.0, %v2404
      %v2406 = vpop.f32.mrb[0].mxu0
      %2407 = vmatprep.mubr.f32.mxu0 0.0
      %2408 = vmatmul.mubr.f32.gmra.mrb[0].mxu0 %v2234
      %v2409 = vpop.f32.mrb[0].mxu0
      %v2410 = vadd.f32 0.0, %v2409
      %v2411 = vpop.f32.mrb[0].mxu0
      %2412 = vmatprep.mubr.f32.mxu0 0.0
      %2413 = vmatmul.mubr.f32.gmra.mrb[0].mxu0 %v2237
      %v2414 = vpop.f32.mrb[0].mxu0
      %v2415 = vadd.f32 0.0, %v2414
      %v2416 = vpop.f32.mrb[0].mxu0
      %2417 = vmatprep.mubr.f32.mxu0 0.0
      %2418 = vmatmul.mubr.f32.gmra.mrb[0].mxu0 %v2240
      %v2419 = vpop.f32.mrb[0].mxu0
      %v2420 = vadd.f32 0.0, %v2419
      %v2421 = vpop.f32.mrb[0].mxu0
      %2422 = vmatprep.mubr.f32.mxu0 0.0
      %2423 = vmatmul.mubr.f32.gmra.mrb[0].mxu0 %v2243
      %v2424 = vpop.f32.mrb[0].mxu0
      %v2425 = vadd.f32 0.0, %v2424
      %v2426 = vpop.f32.mrb[0].mxu0
      %2427 = vmatprep.mubr.f32.mxu0 0.0
      %2428 = vmatmul.mubr.f32.gmra.mrb[0].mxu0 %v2246
      %v2429 = vpop.f32.mrb[0].mxu0
      %v2430 = vadd.f32 0.0, %v2429
      %v2431 = vpop.f32.mrb[0].mxu0
      %2432 = vmatprep.mubr.f32.mxu0 0.0
      %2433 = vmatmul.mubr.f32.gmra.mrb[0].mxu0 %v2249
      %v2434 = vpop.f32.mrb[0].mxu0
      %v2435 = vadd.f32 0.0, %v2434
      %v2436 = vpop.f32.mrb[0].mxu0
      %2437 = vmatprep.mubr.f32.mxu0 0.0
      %2438 = vmatmul.mubr.f32.gmra.mrb[0].mxu0 %v2252
      %v2439 = vpop.f32.mrb[0].mxu0
      %v2440 = vadd.f32 0.0, %v2439
      %v2441 = vpop.f32.mrb[0].mxu0
      %2442 = vmatprep.mubr.f32.mxu0 0.0
      %2443 = vmatmul.mubr.f32.gmra.mrb[0].mxu0 %v2255
      %v2444 = vpop.f32.mrb[0].mxu0
      %v2445 = vadd.f32 0.0, %v2444
      %v2446 = vpop.f32.mrb[0].mxu0
      %2447 = vmatprep.mubr.f32.mxu0 0.0
      %2448 = vmatmul.mubr.f32.gmra.mrb[0].mxu0 %v2258
      %v2449 = vpop.f32.mrb[0].mxu0
      %v2450 = vadd.f32 0.0, %v2449
      %v2451 = vpop.f32.mrb[0].mxu0
      %2452 = vmatprep.mubr.f32.mxu0 0.0
      %2453 = vmatmul.mubr.f32.gmra.mrb[0].mxu0 %v2261
      %v2454 = vpop.f32.mrb[0].mxu0
      %v2455 = vadd.f32 0.0, %v2454
      %v2456 = vpop.f32.mrb[0].mxu0
      %2457 = vmatprep.mubr.f32.mxu0 0.0
      %2458 = vmatmul.mubr.f32.gmra.mrb[0].mxu0 %v2264
      %v2459 = vpop.f32.mrb[0].mxu0
      %v2460 = vadd.f32 0.0, %v2459
      %v2461 = vpop.f32.mrb[0].mxu0
      %2462 = vmatprep.mubr.f32.mxu0 0.0
      %2463 = vmatmul.mubr.f32.gmra.mrb[0].mxu0 %v2267
      %v2464 = vpop.f32.mrb[0].mxu0
      %v2465 = vadd.f32 0.0, %v2464
      %v2466 = vpop.f32.mrb[0].mxu0
      %2467 = vmatprep.mubr.f32.mxu0 0.0
      %2468 = vmatmul.mubr.f32.gmra.mrb[0].mxu0 %v2270
      %v2469 = vpop.f32.mrb[0].mxu0
      %v2470 = vadd.f32 0.0, %v2469
      %v2471 = vpop.f32.mrb[0].mxu0
      %2472 = vmatprep.mubr.f32.mxu0 0.0
      %2473 = vmatmul.mubr.f32.gmra.mrb[0].mxu0 %v2273
      %v2474 = vpop.f32.mrb[0].mxu0
      %v2475 = vadd.f32 0.0, %v2474
      %v2476 = vpop.f32.mrb[0].mxu0
      %2477 = vmatprep.mubr.f32.mxu0 0.0
      %2478 = vmatmul.mubr.f32.gmra.mrb[0].mxu0 %v2276
      %v2479 = vpop.f32.mrb[0].mxu0
      %v2480 = vadd.f32 0.0, %v2479
      %v2481 = vpop.f32.mrb[0].mxu0
      %2482 = vmatprep.mubr.f32.mxu0 0.0
      %2483 = vmatmul.mubr.f32.gmra.mrb[0].mxu0 %v2279
      %v2484 = vpop.f32.mrb[0].mxu0
      %v2485 = vadd.f32 0.0, %v2484
      %v2486 = vpop.f32.mrb[0].mxu0
      %2487 = vmatprep.mubr.f32.mxu0 0.0
      %2488 = vmatmul.mubr.f32.gmra.mrb[0].mxu0 %v2282
      %v2489 = vpop.f32.mrb[0].mxu0
      %v2490 = vadd.f32 0.0, %v2489
      %v2491 = vpop.f32.mrb[0].mxu0
      %2492 = vmatprep.mubr.f32.mxu0 0.0
      %2493 = vmatmul.mubr.f32.gmra.mrb[0].mxu0 %v2285
      %v2494 = vpop.f32.mrb[0].mxu0
      %v2495 = vadd.f32 0.0, %v2494
      %v2496 = vpop.f32.mrb[0].mxu0
      %2497 = vmatprep.mubr.f32.mxu0 0.0
      %2498 = vmatmul.mubr.f32.gmra.mrb[0].mxu0 %v2288
      %v2499 = vpop.f32.mrb[0].mxu0
      %v2500 = vadd.f32 0.0, %v2499
      %v2501 = vpop.f32.mrb[0].mxu0
      %2502 = vmatprep.mubr.f32.mxu0 0.0
      %2503 = vmatmul.mubr.f32.gmra.mrb[0].mxu0 %v2291
      %v2504 = vpop.f32.mrb[0].mxu0
      %v2505 = vadd.f32 0.0, %v2504
      %v2506 = vpop.f32.mrb[0].mxu0
      %2507 = vmatprep.mubr.f32.mxu0 0.0
      %2508 = vmatmul.mubr.f32.gmra.mrb[0].mxu0 %v2294
      %v2509 = vpop.f32.mrb[0].mxu0
      %v2510 = vadd.f32 0.0, %v2509
      %v2511 = vpop.f32.mrb[0].mxu0
      %2512 = vmatprep.mubr.f32.mxu0 0.0
      %2513 = vmatmul.mubr.f32.gmra.mrb[0].mxu0 %v2297
      %v2514 = vpop.f32.mrb[0].mxu0
      %v2515 = vadd.f32 0.0, %v2514
      %v2516 = vpop.f32.mrb[0].mxu0
      %2517 = vmatprep.mubr.f32.mxu0 0.0
      %2518 = vmatmul.mubr.f32.gmra.mrb[0].mxu0 %v2300
      %v2519 = vpop.f32.mrb[0].mxu0
      %v2520 = vadd.f32 0.0, %v2519
      %v2521 = vpop.f32.mrb[0].mxu0
      %2522 = vmatprep.mubr.f32.mxu0 0.0
      %2523 = vmatmul.mubr.f32.gmra.mrb[0].mxu0 %v2303
      %v2524 = vpop.f32.mrb[0].mxu0
      %v2525 = vadd.f32 0.0, %v2524
      %v2526 = vpop.f32.mrb[0].mxu0
      %2527 = vmatprep.mubr.f32.mxu0 0.0
      %2528 = vmatmul.mubr.f32.gmra.mrb[0].mxu0 %v2306
      %v2529 = vpop.f32.mrb[0].mxu0
      %v2530 = vadd.f32 0.0, %v2529
      %v2531 = vpop.f32.mrb[0].mxu0
      %2532 = vdwg.mxu0
      %v2533 = vadd.f32 %v2143, %v2375
      %v2534 = vadd.f32 %v2144, %v2380
      %v2535 = vadd.f32 %v2145, %v2385
      %v2536 = vadd.f32 %v2146, %v2390
      %v2537 = vadd.f32 %v2147, %v2395
      %v2538 = vadd.f32 %v2148, %v2400
      %v2539 = vadd.f32 %v2149, %v2405
      %v2540 = vadd.f32 %v2150, %v2410
      %v2541 = vadd.f32 %v2151, %v2415
      %v2542 = vadd.f32 %v2152, %v2420
      %v2543 = vadd.f32 %v2153, %v2425
      %v2544 = vadd.f32 %v2154, %v2430
      %v2545 = vadd.f32 %v2155, %v2435
      %v2546 = vadd.f32 %v2156, %v2440
      %v2547 = vadd.f32 %v2157, %v2445
      %v2548 = vadd.f32 %v2158, %v2450
      %v2549 = vadd.f32 %v2159, %v2455
      %v2550 = vadd.f32 %v2160, %v2460
      %v2551 = vadd.f32 %v2161, %v2465
      %v2552 = vadd.f32 %v2162, %v2470
      %v2553 = vadd.f32 %v2163, %v2475
      %v2554 = vadd.f32 %v2164, %v2480
      %v2555 = vadd.f32 %v2165, %v2485
      %v2556 = vadd.f32 %v2166, %v2490
      %v2557 = vadd.f32 %v2167, %v2495
      %v2558 = vadd.f32 %v2168, %v2500
      %v2559 = vadd.f32 %v2169, %v2505
      %v2560 = vadd.f32 %v2170, %v2510
      %v2561 = vadd.f32 %v2171, %v2515
      %v2562 = vadd.f32 %v2172, %v2520
      %v2563 = vadd.f32 %v2173, %v2525
      %v2564 = vadd.f32 %v2174, %v2530
      %v2565 = vld [vmem:[%s1037 + $0x1] sm:$0xff]
      %v2566 = vld [vmem:[%s1037 + $0x9] sm:$0xff]
      %v2567 = vld [vmem:[%s1037 + $0x19] sm:$0xff]
      %v2568 = vld [vmem:[%s1037 + $0x21] sm:$0xff]
      %v2569 = vld [vmem:[%s1037 + $0x31] sm:$0xff]
      %v2570 = vld [vmem:[%s1037 + $0x39] sm:$0xff]
      %v2571 = vld [vmem:[%s1037 + $0x49] sm:$0xff]
      %v2572 = vld [vmem:[%s1037 + $0x51] sm:$0xff]
      %v2573 = vld [vmem:[%s1037 + $0x61] sm:$0xff]
      %v2574 = vld [vmem:[%s1037 + $0x69] sm:$0xff]
      %v2575 = vld [vmem:[%s1037 + $0x79] sm:$0xff]
      %v2576 = vld [vmem:[%s1037 + $0x81] sm:$0xff]
      %v2577 = vld [vmem:[%s1037 + $0x91] sm:$0xff]
      %v2578 = vld [vmem:[%s1037 + $0x99] sm:$0xff]
      %v2579 = vld [vmem:[%s1037 + $0xa9] sm:$0xff]
      %v2580 = vld [vmem:[%s1037 + $0xb1] sm:$0xff]
      %v2581 = vld [vmem:[%s1037 + $0xc1] sm:$0xff]
      %v2582 = vld [vmem:[%s1037 + $0xc9] sm:$0xff]
      %v2583 = vld [vmem:[%s1037 + $0xd9] sm:$0xff]
      %v2584 = vld [vmem:[%s1037 + $0xe1] sm:$0xff]
      %v2585 = vld [vmem:[%s1037 + $0xf1] sm:$0xff]
      %v2586 = vld [vmem:[%s1037 + $0xf9] sm:$0xff]
      %v2587 = vld [vmem:[%s1037 + $0x109] sm:$0xff]
      %v2588 = vld [vmem:[%s1037 + $0x111] sm:$0xff]
      %v2589 = vld [vmem:[%s1037 + $0x121] sm:$0xff]
      %v2590 = vld [vmem:[%s1037 + $0x129] sm:$0xff]
      %v2591 = vld [vmem:[%s1037 + $0x139] sm:$0xff]
      %v2592 = vld [vmem:[%s1037 + $0x141] sm:$0xff]
      %v2593 = vld [vmem:[%s1037 + $0x151] sm:$0xff]
      %v2594 = vld [vmem:[%s1037 + $0x159] sm:$0xff]
      %v2595 = vld [vmem:[%s1037 + $0x169] sm:$0xff]
      %v2596 = vld [vmem:[%s1037 + $0x171] sm:$0xff]
      %s2597 = scalar_lea.vmem %s4, 128
      %v2598 = vld [vmem:[%s2597] sm:$0xff]
      %v2599 = vld [vmem:[%s2597 + $0x8] sm:$0xff]
      %v2600 = vld [vmem:[%s2597 + $0x10] sm:$0xff]
      %v2601 = vld [vmem:[%s2597 + $0x18] sm:$0xff]
      %v2603 = vsel %vm1031, %v2565, 0
      %v2606 = vsel %vm1031, %v2566, 0
      %v2609 = vsel %vm1031, %v2567, 0
      %v2612 = vsel %vm1031, %v2568, 0
      %v2615 = vsel %vm1031, %v2569, 0
      %v2618 = vsel %vm1031, %v2570, 0
      %v2621 = vsel %vm1031, %v2571, 0
      %v2624 = vsel %vm1031, %v2572, 0
      %v2627 = vsel %vm1031, %v2573, 0
      %v2630 = vsel %vm1031, %v2574, 0
      %v2633 = vsel %vm1031, %v2575, 0
      %v2636 = vsel %vm1031, %v2576, 0
      %v2639 = vsel %vm1031, %v2577, 0
      %v2642 = vsel %vm1031, %v2578, 0
      %v2645 = vsel %vm1031, %v2579, 0
      %v2648 = vsel %vm1031, %v2580, 0
      %v2651 = vsel %vm1031, %v2581, 0
      %v2654 = vsel %vm1031, %v2582, 0
      %v2657 = vsel %vm1031, %v2583, 0
      %v2660 = vsel %vm1031, %v2584, 0
      %v2663 = vsel %vm1031, %v2585, 0
      %v2666 = vsel %vm1031, %v2586, 0
      %v2669 = vsel %vm1031, %v2587, 0
      %v2672 = vsel %vm1031, %v2588, 0
      %v2675 = vsel %vm1031, %v2589, 0
      %v2678 = vsel %vm1031, %v2590, 0
      %v2681 = vsel %vm1031, %v2591, 0
      %v2684 = vsel %vm1031, %v2592, 0
      %v2687 = vsel %vm1031, %v2593, 0
      %v2690 = vsel %vm1031, %v2594, 0
      %v2693 = vsel %vm1031, %v2595, 0
      %v2696 = vsel %vm1031, %v2596, 0
      %2698 = vmatprep.subr.mxu0 0.0
      %2699 = vmatpush1.msra.mxu0 %v2598
      %2700 = vmatprep.subr.mxu0 0.0
      %2701 = vmatpush1.msra.mxu0 %v2599
      %2702 = vmatprep.subr.mxu0 0.0
      %2703 = vmatpush1.msra.mxu0 %v2600
      %2704 = vmatprep.subr.mxu0 0.0
      %2705 = vmatpush1.msra.mxu0 %v2601
      %2706 = vmatprep.subr.mxu0 0.0
      %2707 = vmatpush1.msra.mxu0 0.0
      %2708 = vmatprep.subr.mxu0 0.0
      %2709 = vmatpush1.msra.mxu0 0.0
      %2710 = vmatprep.subr.mxu0 0.0
      %2711 = vmatpush1.msra.mxu0 0.0
      %2712 = vmatprep.subr.mxu0 0.0
      %2713 = vmatpush1.msra.mxu0 0.0
      %2714 = vmatprep.subr.mxu0 0.0
      %2715 = vmatpush1.msra.mxu0 0.0
      %2716 = vmatprep.subr.mxu0 0.0
      %2717 = vmatpush1.msra.mxu0 0.0
      %2718 = vmatprep.subr.mxu0 0.0
      %2719 = vmatpush1.msra.mxu0 0.0
      %2720 = vmatprep.subr.mxu0 0.0
      %2721 = vmatpush1.msra.mxu0 0.0
      %2722 = vmatprep.subr.mxu0 0.0
      %2723 = vmatpush1.msra.mxu0 0.0
      %2724 = vmatprep.subr.mxu0 0.0
      %2725 = vmatpush1.msra.mxu0 0.0
      %2726 = vmatprep.subr.mxu0 0.0
      %2727 = vmatpush1.msra.mxu0 0.0
      %2728 = vmatprep.subr.mxu0 0.0
      %2729 = vmatpush1.msra.mxu0 0.0
      %2730 = vmatprep.subr.mxu0 0.0
      %2731 = vmatpush1.msra.mxu0 0.0
      %2732 = vmatprep.subr.mxu0 0.0
      %2733 = vmatpush1.msra.mxu0 0.0
      %2734 = vmatprep.subr.mxu0 0.0
      %2735 = vmatpush1.msra.mxu0 0.0
      %2736 = vmatprep.subr.mxu0 0.0
      %2737 = vmatpush1.msra.mxu0 0.0
      %2738 = vmatprep.subr.mxu0 0.0
      %2739 = vmatpush1.msra.mxu0 0.0
      %2740 = vmatprep.subr.mxu0 0.0
      %2741 = vmatpush1.msra.mxu0 0.0
      %2742 = vmatprep.subr.mxu0 0.0
      %2743 = vmatpush1.msra.mxu0 0.0
      %2744 = vmatprep.subr.mxu0 0.0
      %2745 = vmatpush1.msra.mxu0 0.0
      %2746 = vmatprep.subr.mxu0 0.0
      %2747 = vmatpush1.msra.mxu0 0.0
      %2748 = vmatprep.subr.mxu0 0.0
      %2749 = vmatpush1.msra.mxu0 0.0
      %2750 = vmatprep.subr.mxu0 0.0
      %2751 = vmatpush1.msra.mxu0 0.0
      %2752 = vmatprep.subr.mxu0 0.0
      %2753 = vmatpush1.msra.mxu0 0.0
      %2754 = vmatprep.subr.mxu0 0.0
      %2755 = vmatpush1.msra.mxu0 0.0
      %2756 = vmatprep.subr.mxu0 0.0
      %2757 = vmatpush1.msra.mxu0 0.0
      %2758 = vmatprep.subr.mxu0 0.0
      %2759 = vmatpush1.msra.mxu0 0.0
      %2760 = vmatprep.subr.mxu0 0.0
      %2761 = vmatpush1.msra.mxu0 0.0
      %2762 = vmatprep.mubr.f32.mxu0 0.0
      %2763 = vmatmul.mubr.f32.gmra.mrb[0].mxu0 %v2603
      %v2764 = vpop.f32.mrb[0].mxu0
      %v2765 = vadd.f32 0.0, %v2764
      %v2766 = vpop.f32.mrb[0].mxu0
      %2767 = vmatprep.mubr.f32.mxu0 0.0
      %2768 = vmatmul.mubr.f32.gmra.mrb[0].mxu0 %v2606
      %v2769 = vpop.f32.mrb[0].mxu0
      %v2770 = vadd.f32 0.0, %v2769
      %v2771 = vpop.f32.mrb[0].mxu0
      %2772 = vmatprep.mubr.f32.mxu0 0.0
      %2773 = vmatmul.mubr.f32.gmra.mrb[0].mxu0 %v2609
      %v2774 = vpop.f32.mrb[0].mxu0
      %v2775 = vadd.f32 0.0, %v2774
      %v2776 = vpop.f32.mrb[0].mxu0
      %2777 = vmatprep.mubr.f32.mxu0 0.0
      %2778 = vmatmul.mubr.f32.gmra.mrb[0].mxu0 %v2612
      %v2779 = vpop.f32.mrb[0].mxu0
      %v2780 = vadd.f32 0.0, %v2779
      %v2781 = vpop.f32.mrb[0].mxu0
      %2782 = vmatprep.mubr.f32.mxu0 0.0
      %2783 = vmatmul.mubr.f32.gmra.mrb[0].mxu0 %v2615
      %v2784 = vpop.f32.mrb[0].mxu0
      %v2785 = vadd.f32 0.0, %v2784
      %v2786 = vpop.f32.mrb[0].mxu0
      %2787 = vmatprep.mubr.f32.mxu0 0.0
      %2788 = vmatmul.mubr.f32.gmra.mrb[0].mxu0 %v2618
      %v2789 = vpop.f32.mrb[0].mxu0
      %v2790 = vadd.f32 0.0, %v2789
      %v2791 = vpop.f32.mrb[0].mxu0
      %2792 = vmatprep.mubr.f32.mxu0 0.0
      %2793 = vmatmul.mubr.f32.gmra.mrb[0].mxu0 %v2621
      %v2794 = vpop.f32.mrb[0].mxu0
      %v2795 = vadd.f32 0.0, %v2794
      %v2796 = vpop.f32.mrb[0].mxu0
      %2797 = vmatprep.mubr.f32.mxu0 0.0
      %2798 = vmatmul.mubr.f32.gmra.mrb[0].mxu0 %v2624
      %v2799 = vpop.f32.mrb[0].mxu0
      %v2800 = vadd.f32 0.0, %v2799
      %v2801 = vpop.f32.mrb[0].mxu0
      %2802 = vmatprep.mubr.f32.mxu0 0.0
      %2803 = vmatmul.mubr.f32.gmra.mrb[0].mxu0 %v2627
      %v2804 = vpop.f32.mrb[0].mxu0
      %v2805 = vadd.f32 0.0, %v2804
      %v2806 = vpop.f32.mrb[0].mxu0
      %2807 = vmatprep.mubr.f32.mxu0 0.0
      %2808 = vmatmul.mubr.f32.gmra.mrb[0].mxu0 %v2630
      %v2809 = vpop.f32.mrb[0].mxu0
      %v2810 = vadd.f32 0.0, %v2809
      %v2811 = vpop.f32.mrb[0].mxu0
      %2812 = vmatprep.mubr.f32.mxu0 0.0
      %2813 = vmatmul.mubr.f32.gmra.mrb[0].mxu0 %v2633
      %v2814 = vpop.f32.mrb[0].mxu0
      %v2815 = vadd.f32 0.0, %v2814
      %v2816 = vpop.f32.mrb[0].mxu0
      %2817 = vmatprep.mubr.f32.mxu0 0.0
      %2818 = vmatmul.mubr.f32.gmra.mrb[0].mxu0 %v2636
      %v2819 = vpop.f32.mrb[0].mxu0
      %v2820 = vadd.f32 0.0, %v2819
      %v2821 = vpop.f32.mrb[0].mxu0
      %2822 = vmatprep.mubr.f32.mxu0 0.0
      %2823 = vmatmul.mubr.f32.gmra.mrb[0].mxu0 %v2639
      %v2824 = vpop.f32.mrb[0].mxu0
      %v2825 = vadd.f32 0.0, %v2824
      %v2826 = vpop.f32.mrb[0].mxu0
      %2827 = vmatprep.mubr.f32.mxu0 0.0
      %2828 = vmatmul.mubr.f32.gmra.mrb[0].mxu0 %v2642
      %v2829 = vpop.f32.mrb[0].mxu0
      %v2830 = vadd.f32 0.0, %v2829
      %v2831 = vpop.f32.mrb[0].mxu0
      %2832 = vmatprep.mubr.f32.mxu0 0.0
      %2833 = vmatmul.mubr.f32.gmra.mrb[0].mxu0 %v2645
      %v2834 = vpop.f32.mrb[0].mxu0
      %v2835 = vadd.f32 0.0, %v2834
      %v2836 = vpop.f32.mrb[0].mxu0
      %2837 = vmatprep.mubr.f32.mxu0 0.0
      %2838 = vmatmul.mubr.f32.gmra.mrb[0].mxu0 %v2648
      %v2839 = vpop.f32.mrb[0].mxu0
      %v2840 = vadd.f32 0.0, %v2839
      %v2841 = vpop.f32.mrb[0].mxu0
      %2842 = vmatprep.mubr.f32.mxu0 0.0
      %2843 = vmatmul.mubr.f32.gmra.mrb[0].mxu0 %v2651
      %v2844 = vpop.f32.mrb[0].mxu0
      %v2845 = vadd.f32 0.0, %v2844
      %v2846 = vpop.f32.mrb[0].mxu0
      %2847 = vmatprep.mubr.f32.mxu0 0.0
      %2848 = vmatmul.mubr.f32.gmra.mrb[0].mxu0 %v2654
      %v2849 = vpop.f32.mrb[0].mxu0
      %v2850 = vadd.f32 0.0, %v2849
      %v2851 = vpop.f32.mrb[0].mxu0
      %2852 = vmatprep.mubr.f32.mxu0 0.0
      %2853 = vmatmul.mubr.f32.gmra.mrb[0].mxu0 %v2657
      %v2854 = vpop.f32.mrb[0].mxu0
      %v2855 = vadd.f32 0.0, %v2854
      %v2856 = vpop.f32.mrb[0].mxu0
      %2857 = vmatprep.mubr.f32.mxu0 0.0
      %2858 = vmatmul.mubr.f32.gmra.mrb[0].mxu0 %v2660
      %v2859 = vpop.f32.mrb[0].mxu0
      %v2860 = vadd.f32 0.0, %v2859
      %v2861 = vpop.f32.mrb[0].mxu0
      %2862 = vmatprep.mubr.f32.mxu0 0.0
      %2863 = vmatmul.mubr.f32.gmra.mrb[0].mxu0 %v2663
      %v2864 = vpop.f32.mrb[0].mxu0
      %v2865 = vadd.f32 0.0, %v2864
      %v2866 = vpop.f32.mrb[0].mxu0
      %2867 = vmatprep.mubr.f32.mxu0 0.0
      %2868 = vmatmul.mubr.f32.gmra.mrb[0].mxu0 %v2666
      %v2869 = vpop.f32.mrb[0].mxu0
      %v2870 = vadd.f32 0.0, %v2869
      %v2871 = vpop.f32.mrb[0].mxu0
      %2872 = vmatprep.mubr.f32.mxu0 0.0
      %2873 = vmatmul.mubr.f32.gmra.mrb[0].mxu0 %v2669
      %v2874 = vpop.f32.mrb[0].mxu0
      %v2875 = vadd.f32 0.0, %v2874
      %v2876 = vpop.f32.mrb[0].mxu0
      %2877 = vmatprep.mubr.f32.mxu0 0.0
      %2878 = vmatmul.mubr.f32.gmra.mrb[0].mxu0 %v2672
      %v2879 = vpop.f32.mrb[0].mxu0
      %v2880 = vadd.f32 0.0, %v2879
      %v2881 = vpop.f32.mrb[0].mxu0
      %2882 = vmatprep.mubr.f32.mxu0 0.0
      %2883 = vmatmul.mubr.f32.gmra.mrb[0].mxu0 %v2675
      %v2884 = vpop.f32.mrb[0].mxu0
      %v2885 = vadd.f32 0.0, %v2884
      %v2886 = vpop.f32.mrb[0].mxu0
      %2887 = vmatprep.mubr.f32.mxu0 0.0
      %2888 = vmatmul.mubr.f32.gmra.mrb[0].mxu0 %v2678
      %v2889 = vpop.f32.mrb[0].mxu0
      %v2890 = vadd.f32 0.0, %v2889
      %v2891 = vpop.f32.mrb[0].mxu0
      %2892 = vmatprep.mubr.f32.mxu0 0.0
      %2893 = vmatmul.mubr.f32.gmra.mrb[0].mxu0 %v2681
      %v2894 = vpop.f32.mrb[0].mxu0
      %v2895 = vadd.f32 0.0, %v2894
      %v2896 = vpop.f32.mrb[0].mxu0
      %2897 = vmatprep.mubr.f32.mxu0 0.0
      %2898 = vmatmul.mubr.f32.gmra.mrb[0].mxu0 %v2684
      %v2899 = vpop.f32.mrb[0].mxu0
      %v2900 = vadd.f32 0.0, %v2899
      %v2901 = vpop.f32.mrb[0].mxu0
      %2902 = vmatprep.mubr.f32.mxu0 0.0
      %2903 = vmatmul.mubr.f32.gmra.mrb[0].mxu0 %v2687
      %v2904 = vpop.f32.mrb[0].mxu0
      %v2905 = vadd.f32 0.0, %v2904
      %v2906 = vpop.f32.mrb[0].mxu0
      %2907 = vmatprep.mubr.f32.mxu0 0.0
      %2908 = vmatmul.mubr.f32.gmra.mrb[0].mxu0 %v2690
      %v2909 = vpop.f32.mrb[0].mxu0
      %v2910 = vadd.f32 0.0, %v2909
      %v2911 = vpop.f32.mrb[0].mxu0
      %2912 = vmatprep.mubr.f32.mxu0 0.0
      %2913 = vmatmul.mubr.f32.gmra.mrb[0].mxu0 %v2693
      %v2914 = vpop.f32.mrb[0].mxu0
      %v2915 = vadd.f32 0.0, %v2914
      %v2916 = vpop.f32.mrb[0].mxu0
      %2917 = vmatprep.mubr.f32.mxu0 0.0
      %2918 = vmatmul.mubr.f32.gmra.mrb[0].mxu0 %v2696
      %v2919 = vpop.f32.mrb[0].mxu0
      %v2920 = vadd.f32 0.0, %v2919
      %v2921 = vpop.f32.mrb[0].mxu0
      %2922 = vdwg.mxu0
      %v2923 = vadd.f32 %v2533, %v2765
      %v2924 = vadd.f32 %v2534, %v2770
      %v2925 = vadd.f32 %v2535, %v2775
      %v2926 = vadd.f32 %v2536, %v2780
      %v2927 = vadd.f32 %v2537, %v2785
      %v2928 = vadd.f32 %v2538, %v2790
      %v2929 = vadd.f32 %v2539, %v2795
      %v2930 = vadd.f32 %v2540, %v2800
      %v2931 = vadd.f32 %v2541, %v2805
      %v2932 = vadd.f32 %v2542, %v2810
      %v2933 = vadd.f32 %v2543, %v2815
      %v2934 = vadd.f32 %v2544, %v2820
      %v2935 = vadd.f32 %v2545, %v2825
      %v2936 = vadd.f32 %v2546, %v2830
      %v2937 = vadd.f32 %v2547, %v2835
      %v2938 = vadd.f32 %v2548, %v2840
      %v2939 = vadd.f32 %v2549, %v2845
      %v2940 = vadd.f32 %v2550, %v2850
      %v2941 = vadd.f32 %v2551, %v2855
      %v2942 = vadd.f32 %v2552, %v2860
      %v2943 = vadd.f32 %v2553, %v2865
      %v2944 = vadd.f32 %v2554, %v2870
      %v2945 = vadd.f32 %v2555, %v2875
      %v2946 = vadd.f32 %v2556, %v2880
      %v2947 = vadd.f32 %v2557, %v2885
      %v2948 = vadd.f32 %v2558, %v2890
      %v2949 = vadd.f32 %v2559, %v2895
      %v2950 = vadd.f32 %v2560, %v2900
      %v2951 = vadd.f32 %v2561, %v2905
      %v2952 = vadd.f32 %v2562, %v2910
      %v2953 = vadd.f32 %v2563, %v2915
      %v2954 = vadd.f32 %v2564, %v2920
      %v2955 = vld [vmem:[%s1037 + $0x2] sm:$0xff]
      %v2956 = vld [vmem:[%s1037 + $0xa] sm:$0xff]
      %v2957 = vld [vmem:[%s1037 + $0x1a] sm:$0xff]
      %v2958 = vld [vmem:[%s1037 + $0x22] sm:$0xff]
      %v2959 = vld [vmem:[%s1037 + $0x32] sm:$0xff]
      %v2960 = vld [vmem:[%s1037 + $0x3a] sm:$0xff]
      %v2961 = vld [vmem:[%s1037 + $0x4a] sm:$0xff]
      %v2962 = vld [vmem:[%s1037 + $0x52] sm:$0xff]
      %v2963 = vld [vmem:[%s1037 + $0x62] sm:$0xff]
      %v2964 = vld [vmem:[%s1037 + $0x6a] sm:$0xff]
      %v2965 = vld [vmem:[%s1037 + $0x7a] sm:$0xff]
      %v2966 = vld [vmem:[%s1037 + $0x82] sm:$0xff]
      %v2967 = vld [vmem:[%s1037 + $0x92] sm:$0xff]
      %v2968 = vld [vmem:[%s1037 + $0x9a] sm:$0xff]
      %v2969 = vld [vmem:[%s1037 + $0xaa] sm:$0xff]
      %v2970 = vld [vmem:[%s1037 + $0xb2] sm:$0xff]
      %v2971 = vld [vmem:[%s1037 + $0xc2] sm:$0xff]
      %v2972 = vld [vmem:[%s1037 + $0xca] sm:$0xff]
      %v2973 = vld [vmem:[%s1037 + $0xda] sm:$0xff]
      %v2974 = vld [vmem:[%s1037 + $0xe2] sm:$0xff]
      %v2975 = vld [vmem:[%s1037 + $0xf2] sm:$0xff]
      %v2976 = vld [vmem:[%s1037 + $0xfa] sm:$0xff]
      %v2977 = vld [vmem:[%s1037 + $0x10a] sm:$0xff]
      %v2978 = vld [vmem:[%s1037 + $0x112] sm:$0xff]
      %v2979 = vld [vmem:[%s1037 + $0x122] sm:$0xff]
      %v2980 = vld [vmem:[%s1037 + $0x12a] sm:$0xff]
      %v2981 = vld [vmem:[%s1037 + $0x13a] sm:$0xff]
      %v2982 = vld [vmem:[%s1037 + $0x142] sm:$0xff]
      %v2983 = vld [vmem:[%s1037 + $0x152] sm:$0xff]
      %v2984 = vld [vmem:[%s1037 + $0x15a] sm:$0xff]
      %v2985 = vld [vmem:[%s1037 + $0x16a] sm:$0xff]
      %v2986 = vld [vmem:[%s1037 + $0x172] sm:$0xff]
      %s2987 = scalar_lea.vmem %s4, 160
      %v2988 = vld [vmem:[%s2987] sm:$0xff]
      %v2989 = vld [vmem:[%s2987 + $0x8] sm:$0xff]
      %v2990 = vld [vmem:[%s2987 + $0x10] sm:$0xff]
      %v2991 = vld [vmem:[%s2987 + $0x18] sm:$0xff]
      %v2993 = vsel %vm1031, %v2955, 0
      %v2996 = vsel %vm1031, %v2956, 0
      %v2999 = vsel %vm1031, %v2957, 0
      %v3002 = vsel %vm1031, %v2958, 0
      %v3005 = vsel %vm1031, %v2959, 0
      %v3008 = vsel %vm1031, %v2960, 0
      %v3011 = vsel %vm1031, %v2961, 0
      %v3014 = vsel %vm1031, %v2962, 0
      %v3017 = vsel %vm1031, %v2963, 0
      %v3020 = vsel %vm1031, %v2964, 0
      %v3023 = vsel %vm1031, %v2965, 0
      %v3026 = vsel %vm1031, %v2966, 0
      %v3029 = vsel %vm1031, %v2967, 0
      %v3032 = vsel %vm1031, %v2968, 0
      %v3035 = vsel %vm1031, %v2969, 0
      %v3038 = vsel %vm1031, %v2970, 0
      %v3041 = vsel %vm1031, %v2971, 0
      %v3044 = vsel %vm1031, %v2972, 0
      %v3047 = vsel %vm1031, %v2973, 0
      %v3050 = vsel %vm1031, %v2974, 0
      %v3053 = vsel %vm1031, %v2975, 0
      %v3056 = vsel %vm1031, %v2976, 0
      %v3059 = vsel %vm1031, %v2977, 0
      %v3062 = vsel %vm1031, %v2978, 0
      %v3065 = vsel %vm1031, %v2979, 0
      %v3068 = vsel %vm1031, %v2980, 0
      %v3071 = vsel %vm1031, %v2981, 0
      %v3074 = vsel %vm1031, %v2982, 0
      %v3077 = vsel %vm1031, %v2983, 0
      %v3080 = vsel %vm1031, %v2984, 0
      %v3083 = vsel %vm1031, %v2985, 0
      %v3086 = vsel %vm1031, %v2986, 0
      %3088 = vmatprep.subr.mxu0 0.0
      %3089 = vmatpush1.msra.mxu0 %v2988
      %3090 = vmatprep.subr.mxu0 0.0
      %3091 = vmatpush1.msra.mxu0 %v2989
      %3092 = vmatprep.subr.mxu0 0.0
      %3093 = vmatpush1.msra.mxu0 %v2990
      %3094 = vmatprep.subr.mxu0 0.0
      %3095 = vmatpush1.msra.mxu0 %v2991
      %3096 = vmatprep.subr.mxu0 0.0
      %3097 = vmatpush1.msra.mxu0 0.0
      %3098 = vmatprep.subr.mxu0 0.0
      %3099 = vmatpush1.msra.mxu0 0.0
      %3100 = vmatprep.subr.mxu0 0.0
      %3101 = vmatpush1.msra.mxu0 0.0
      %3102 = vmatprep.subr.mxu0 0.0
      %3103 = vmatpush1.msra.mxu0 0.0
      %3104 = vmatprep.subr.mxu0 0.0
      %3105 = vmatpush1.msra.mxu0 0.0
      %3106 = vmatprep.subr.mxu0 0.0
      %3107 = vmatpush1.msra.mxu0 0.0
      %3108 = vmatprep.subr.mxu0 0.0
      %3109 = vmatpush1.msra.mxu0 0.0
      %3110 = vmatprep.subr.mxu0 0.0
      %3111 = vmatpush1.msra.mxu0 0.0
      %3112 = vmatprep.subr.mxu0 0.0
      %3113 = vmatpush1.msra.mxu0 0.0
      %3114 = vmatprep.subr.mxu0 0.0
      %3115 = vmatpush1.msra.mxu0 0.0
      %3116 = vmatprep.subr.mxu0 0.0
      %3117 = vmatpush1.msra.mxu0 0.0
      %3118 = vmatprep.subr.mxu0 0.0
      %3119 = vmatpush1.msra.mxu0 0.0
      %3120 = vmatprep.subr.mxu0 0.0
      %3121 = vmatpush1.msra.mxu0 0.0
      %3122 = vmatprep.subr.mxu0 0.0
      %3123 = vmatpush1.msra.mxu0 0.0
      %3124 = vmatprep.subr.mxu0 0.0
      %3125 = vmatpush1.msra.mxu0 0.0
      %3126 = vmatprep.subr.mxu0 0.0
      %3127 = vmatpush1.msra.mxu0 0.0
      %3128 = vmatprep.subr.mxu0 0.0
      %3129 = vmatpush1.msra.mxu0 0.0
      %3130 = vmatprep.subr.mxu0 0.0
      %3131 = vmatpush1.msra.mxu0 0.0
      %3132 = vmatprep.subr.mxu0 0.0
      %3133 = vmatpush1.msra.mxu0 0.0
      %3134 = vmatprep.subr.mxu0 0.0
      %3135 = vmatpush1.msra.mxu0 0.0
      %3136 = vmatprep.subr.mxu0 0.0
      %3137 = vmatpush1.msra.mxu0 0.0
      %3138 = vmatprep.subr.mxu0 0.0
      %3139 = vmatpush1.msra.mxu0 0.0
      %3140 = vmatprep.subr.mxu0 0.0
      %3141 = vmatpush1.msra.mxu0 0.0
      %3142 = vmatprep.subr.mxu0 0.0
      %3143 = vmatpush1.msra.mxu0 0.0
      %3144 = vmatprep.subr.mxu0 0.0
      %3145 = vmatpush1.msra.mxu0 0.0
      %3146 = vmatprep.subr.mxu0 0.0
      %3147 = vmatpush1.msra.mxu0 0.0
      %3148 = vmatprep.subr.mxu0 0.0
      %3149 = vmatpush1.msra.mxu0 0.0
      %3150 = vmatprep.subr.mxu0 0.0
      %3151 = vmatpush1.msra.mxu0 0.0
      %3152 = vmatprep.mubr.f32.mxu0 0.0
      %3153 = vmatmul.mubr.f32.gmra.mrb[0].mxu0 %v2993
      %v3154 = vpop.f32.mrb[0].mxu0
      %v3155 = vadd.f32 0.0, %v3154
      %v3156 = vpop.f32.mrb[0].mxu0
      %3157 = vmatprep.mubr.f32.mxu0 0.0
      %3158 = vmatmul.mubr.f32.gmra.mrb[0].mxu0 %v2996
      %v3159 = vpop.f32.mrb[0].mxu0
      %v3160 = vadd.f32 0.0, %v3159
      %v3161 = vpop.f32.mrb[0].mxu0
      %3162 = vmatprep.mubr.f32.mxu0 0.0
      %3163 = vmatmul.mubr.f32.gmra.mrb[0].mxu0 %v2999
      %v3164 = vpop.f32.mrb[0].mxu0
      %v3165 = vadd.f32 0.0, %v3164
      %v3166 = vpop.f32.mrb[0].mxu0
      %3167 = vmatprep.mubr.f32.mxu0 0.0
      %3168 = vmatmul.mubr.f32.gmra.mrb[0].mxu0 %v3002
      %v3169 = vpop.f32.mrb[0].mxu0
      %v3170 = vadd.f32 0.0, %v3169
      %v3171 = vpop.f32.mrb[0].mxu0
      %3172 = vmatprep.mubr.f32.mxu0 0.0
      %3173 = vmatmul.mubr.f32.gmra.mrb[0].mxu0 %v3005
      %v3174 = vpop.f32.mrb[0].mxu0
      %v3175 = vadd.f32 0.0, %v3174
      %v3176 = vpop.f32.mrb[0].mxu0
      %3177 = vmatprep.mubr.f32.mxu0 0.0
      %3178 = vmatmul.mubr.f32.gmra.mrb[0].mxu0 %v3008
      %v3179 = vpop.f32.mrb[0].mxu0
      %v3180 = vadd.f32 0.0, %v3179
      %v3181 = vpop.f32.mrb[0].mxu0
      %3182 = vmatprep.mubr.f32.mxu0 0.0
      %3183 = vmatmul.mubr.f32.gmra.mrb[0].mxu0 %v3011
      %v3184 = vpop.f32.mrb[0].mxu0
      %v3185 = vadd.f32 0.0, %v3184
      %v3186 = vpop.f32.mrb[0].mxu0
      %3187 = vmatprep.mubr.f32.mxu0 0.0
      %3188 = vmatmul.mubr.f32.gmra.mrb[0].mxu0 %v3014
      %v3189 = vpop.f32.mrb[0].mxu0
      %v3190 = vadd.f32 0.0, %v3189
      %v3191 = vpop.f32.mrb[0].mxu0
      %3192 = vmatprep.mubr.f32.mxu0 0.0
      %3193 = vmatmul.mubr.f32.gmra.mrb[0].mxu0 %v3017
      %v3194 = vpop.f32.mrb[0].mxu0
      %v3195 = vadd.f32 0.0, %v3194
      %v3196 = vpop.f32.mrb[0].mxu0
      %3197 = vmatprep.mubr.f32.mxu0 0.0
      %3198 = vmatmul.mubr.f32.gmra.mrb[0].mxu0 %v3020
      %v3199 = vpop.f32.mrb[0].mxu0
      %v3200 = vadd.f32 0.0, %v3199
      %v3201 = vpop.f32.mrb[0].mxu0
      %3202 = vmatprep.mubr.f32.mxu0 0.0
      %3203 = vmatmul.mubr.f32.gmra.mrb[0].mxu0 %v3023
      %v3204 = vpop.f32.mrb[0].mxu0
      %v3205 = vadd.f32 0.0, %v3204
      %v3206 = vpop.f32.mrb[0].mxu0
      %3207 = vmatprep.mubr.f32.mxu0 0.0
      %3208 = vmatmul.mubr.f32.gmra.mrb[0].mxu0 %v3026
      %v3209 = vpop.f32.mrb[0].mxu0
      %v3210 = vadd.f32 0.0, %v3209
      %v3211 = vpop.f32.mrb[0].mxu0
      %3212 = vmatprep.mubr.f32.mxu0 0.0
      %3213 = vmatmul.mubr.f32.gmra.mrb[0].mxu0 %v3029
      %v3214 = vpop.f32.mrb[0].mxu0
      %v3215 = vadd.f32 0.0, %v3214
      %v3216 = vpop.f32.mrb[0].mxu0
      %3217 = vmatprep.mubr.f32.mxu0 0.0
      %3218 = vmatmul.mubr.f32.gmra.mrb[0].mxu0 %v3032
      %v3219 = vpop.f32.mrb[0].mxu0
      %v3220 = vadd.f32 0.0, %v3219
      %v3221 = vpop.f32.mrb[0].mxu0
      %3222 = vmatprep.mubr.f32.mxu0 0.0
      %3223 = vmatmul.mubr.f32.gmra.mrb[0].mxu0 %v3035
      %v3224 = vpop.f32.mrb[0].mxu0
      %v3225 = vadd.f32 0.0, %v3224
      %v3226 = vpop.f32.mrb[0].mxu0
      %3227 = vmatprep.mubr.f32.mxu0 0.0
      %3228 = vmatmul.mubr.f32.gmra.mrb[0].mxu0 %v3038
      %v3229 = vpop.f32.mrb[0].mxu0
      %v3230 = vadd.f32 0.0, %v3229
      %v3231 = vpop.f32.mrb[0].mxu0
      %3232 = vmatprep.mubr.f32.mxu0 0.0
      %3233 = vmatmul.mubr.f32.gmra.mrb[0].mxu0 %v3041
      %v3234 = vpop.f32.mrb[0].mxu0
      %v3235 = vadd.f32 0.0, %v3234
      %v3236 = vpop.f32.mrb[0].mxu0
      %3237 = vmatprep.mubr.f32.mxu0 0.0
      %3238 = vmatmul.mubr.f32.gmra.mrb[0].mxu0 %v3044
      %v3239 = vpop.f32.mrb[0].mxu0
      %v3240 = vadd.f32 0.0, %v3239
      %v3241 = vpop.f32.mrb[0].mxu0
      %3242 = vmatprep.mubr.f32.mxu0 0.0
      %3243 = vmatmul.mubr.f32.gmra.mrb[0].mxu0 %v3047
      %v3244 = vpop.f32.mrb[0].mxu0
      %v3245 = vadd.f32 0.0, %v3244
      %v3246 = vpop.f32.mrb[0].mxu0
      %3247 = vmatprep.mubr.f32.mxu0 0.0
      %3248 = vmatmul.mubr.f32.gmra.mrb[0].mxu0 %v3050
      %v3249 = vpop.f32.mrb[0].mxu0
      %v3250 = vadd.f32 0.0, %v3249
      %v3251 = vpop.f32.mrb[0].mxu0
      %3252 = vmatprep.mubr.f32.mxu0 0.0
      %3253 = vmatmul.mubr.f32.gmra.mrb[0].mxu0 %v3053
      %v3254 = vpop.f32.mrb[0].mxu0
      %v3255 = vadd.f32 0.0, %v3254
      %v3256 = vpop.f32.mrb[0].mxu0
      %3257 = vmatprep.mubr.f32.mxu0 0.0
      %3258 = vmatmul.mubr.f32.gmra.mrb[0].mxu0 %v3056
      %v3259 = vpop.f32.mrb[0].mxu0
      %v3260 = vadd.f32 0.0, %v3259
      %v3261 = vpop.f32.mrb[0].mxu0
      %3262 = vmatprep.mubr.f32.mxu0 0.0
      %3263 = vmatmul.mubr.f32.gmra.mrb[0].mxu0 %v3059
      %v3264 = vpop.f32.mrb[0].mxu0
      %v3265 = vadd.f32 0.0, %v3264
      %v3266 = vpop.f32.mrb[0].mxu0
      %3267 = vmatprep.mubr.f32.mxu0 0.0
      %3268 = vmatmul.mubr.f32.gmra.mrb[0].mxu0 %v3062
      %v3269 = vpop.f32.mrb[0].mxu0
      %v3270 = vadd.f32 0.0, %v3269
      %v3271 = vpop.f32.mrb[0].mxu0
      %3272 = vmatprep.mubr.f32.mxu0 0.0
      %3273 = vmatmul.mubr.f32.gmra.mrb[0].mxu0 %v3065
      %v3274 = vpop.f32.mrb[0].mxu0
      %v3275 = vadd.f32 0.0, %v3274
      %v3276 = vpop.f32.mrb[0].mxu0
      %3277 = vmatprep.mubr.f32.mxu0 0.0
      %3278 = vmatmul.mubr.f32.gmra.mrb[0].mxu0 %v3068
      %v3279 = vpop.f32.mrb[0].mxu0
      %v3280 = vadd.f32 0.0, %v3279
      %v3281 = vpop.f32.mrb[0].mxu0
      %3282 = vmatprep.mubr.f32.mxu0 0.0
      %3283 = vmatmul.mubr.f32.gmra.mrb[0].mxu0 %v3071
      %v3284 = vpop.f32.mrb[0].mxu0
      %v3285 = vadd.f32 0.0, %v3284
      %v3286 = vpop.f32.mrb[0].mxu0
      %3287 = vmatprep.mubr.f32.mxu0 0.0
      %3288 = vmatmul.mubr.f32.gmra.mrb[0].mxu0 %v3074
      %v3289 = vpop.f32.mrb[0].mxu0
      %v3290 = vadd.f32 0.0, %v3289
      %v3291 = vpop.f32.mrb[0].mxu0
      %3292 = vmatprep.mubr.f32.mxu0 0.0
      %3293 = vmatmul.mubr.f32.gmra.mrb[0].mxu0 %v3077
      %v3294 = vpop.f32.mrb[0].mxu0
      %v3295 = vadd.f32 0.0, %v3294
      %v3296 = vpop.f32.mrb[0].mxu0
      %3297 = vmatprep.mubr.f32.mxu0 0.0
      %3298 = vmatmul.mubr.f32.gmra.mrb[0].mxu0 %v3080
      %v3299 = vpop.f32.mrb[0].mxu0
      %v3300 = vadd.f32 0.0, %v3299
      %v3301 = vpop.f32.mrb[0].mxu0
      %3302 = vmatprep.mubr.f32.mxu0 0.0
      %3303 = vmatmul.mubr.f32.gmra.mrb[0].mxu0 %v3083
      %v3304 = vpop.f32.mrb[0].mxu0
      %v3305 = vadd.f32 0.0, %v3304
      %v3306 = vpop.f32.mrb[0].mxu0
      %3307 = vmatprep.mubr.f32.mxu0 0.0
      %3308 = vmatmul.mubr.f32.gmra.mrb[0].mxu0 %v3086
      %v3309 = vpop.f32.mrb[0].mxu0
      %v3310 = vadd.f32 0.0, %v3309
      %v3311 = vpop.f32.mrb[0].mxu0
      %3312 = vdwg.mxu0
      %v3313 = vadd.f32 %v2923, %v3155
      %v3314 = vadd.f32 %v2924, %v3160
      %v3315 = vadd.f32 %v2925, %v3165
      %v3316 = vadd.f32 %v2926, %v3170
      %v3317 = vadd.f32 %v2927, %v3175
      %v3318 = vadd.f32 %v2928, %v3180
      %v3319 = vadd.f32 %v2929, %v3185
      %v3320 = vadd.f32 %v2930, %v3190
      %v3321 = vadd.f32 %v2931, %v3195
      %v3322 = vadd.f32 %v2932, %v3200
      %v3323 = vadd.f32 %v2933, %v3205
      %v3324 = vadd.f32 %v2934, %v3210
      %v3325 = vadd.f32 %v2935, %v3215
      %v3326 = vadd.f32 %v2936, %v3220
      %v3327 = vadd.f32 %v2937, %v3225
      %v3328 = vadd.f32 %v2938, %v3230
      %v3329 = vadd.f32 %v2939, %v3235
      %v3330 = vadd.f32 %v2940, %v3240
      %v3331 = vadd.f32 %v2941, %v3245
      %v3332 = vadd.f32 %v2942, %v3250
      %v3333 = vadd.f32 %v2943, %v3255
      %v3334 = vadd.f32 %v2944, %v3260
      %v3335 = vadd.f32 %v2945, %v3265
      %v3336 = vadd.f32 %v2946, %v3270
      %v3337 = vadd.f32 %v2947, %v3275
      %v3338 = vadd.f32 %v2948, %v3280
      %v3339 = vadd.f32 %v2949, %v3285
      %v3340 = vadd.f32 %v2950, %v3290
      %v3341 = vadd.f32 %v2951, %v3295
      %v3342 = vadd.f32 %v2952, %v3300
      %v3343 = vadd.f32 %v2953, %v3305
      %v3344 = vadd.f32 %v2954, %v3310
      %s3345 = scalar_lea.vmem [#allocation2], 48
      %v3346 = vld [vmem:[%s3345] sm:$0xff]
      %v3347 = vld [vmem:[%s3345 + $0x8] sm:$0xff]
      %v3348 = vld [vmem:[%s3345 + $0x18] sm:$0xff]
      %v3349 = vld [vmem:[%s3345 + $0x20] sm:$0xff]
      %v3350 = vld [vmem:[%s3345 + $0x30] sm:$0xff]
      %v3351 = vld [vmem:[%s3345 + $0x38] sm:$0xff]
      %v3352 = vld [vmem:[%s3345 + $0x48] sm:$0xff]
      %v3353 = vld [vmem:[%s3345 + $0x50] sm:$0xff]
      %v3354 = vld [vmem:[%s3345 + $0x60] sm:$0xff]
      %v3355 = vld [vmem:[%s3345 + $0x68] sm:$0xff]
      %v3356 = vld [vmem:[%s3345 + $0x78] sm:$0xff]
      %v3357 = vld [vmem:[%s3345 + $0x80] sm:$0xff]
      %v3358 = vld [vmem:[%s3345 + $0x90] sm:$0xff]
      %v3359 = vld [vmem:[%s3345 + $0x98] sm:$0xff]
      %v3360 = vld [vmem:[%s3345 + $0xa8] sm:$0xff]
      %v3361 = vld [vmem:[%s3345 + $0xb0] sm:$0xff]
      %v3362 = vld [vmem:[%s3345 + $0xc0] sm:$0xff]
      %v3363 = vld [vmem:[%s3345 + $0xc8] sm:$0xff]
      %v3364 = vld [vmem:[%s3345 + $0xd8] sm:$0xff]
      %v3365 = vld [vmem:[%s3345 + $0xe0] sm:$0xff]
      %v3366 = vld [vmem:[%s3345 + $0xf0] sm:$0xff]
      %v3367 = vld [vmem:[%s3345 + $0xf8] sm:$0xff]
      %v3368 = vld [vmem:[%s3345 + $0x108] sm:$0xff]
      %v3369 = vld [vmem:[%s3345 + $0x110] sm:$0xff]
      %v3370 = vld [vmem:[%s3345 + $0x120] sm:$0xff]
      %v3371 = vld [vmem:[%s3345 + $0x128] sm:$0xff]
      %v3372 = vld [vmem:[%s3345 + $0x138] sm:$0xff]
      %v3373 = vld [vmem:[%s3345 + $0x140] sm:$0xff]
      %v3374 = vld [vmem:[%s3345 + $0x150] sm:$0xff]
      %v3375 = vld [vmem:[%s3345 + $0x158] sm:$0xff]
      %v3376 = vld [vmem:[%s3345 + $0x168] sm:$0xff]
      %v3377 = vld [vmem:[%s3345 + $0x170] sm:$0xff]
      %s3378 = scalar_lea.vmem %s4, 192
      %v3379 = vld [vmem:[%s3378] sm:$0xff]
      %v3380 = vld [vmem:[%s3378 + $0x8] sm:$0xff]
      %v3381 = vld [vmem:[%s3378 + $0x10] sm:$0xff]
      %v3382 = vld [vmem:[%s3378 + $0x18] sm:$0xff]
      %v3384 = vsel %vm1031, %v3346, 0
      %v3387 = vsel %vm1031, %v3347, 0
      %v3390 = vsel %vm1031, %v3348, 0
      %v3393 = vsel %vm1031, %v3349, 0
      %v3396 = vsel %vm1031, %v3350, 0
      %v3399 = vsel %vm1031, %v3351, 0
      %v3402 = vsel %vm1031, %v3352, 0
      %v3405 = vsel %vm1031, %v3353, 0
      %v3408 = vsel %vm1031, %v3354, 0
      %v3411 = vsel %vm1031, %v3355, 0
      %v3414 = vsel %vm1031, %v3356, 0
      %v3417 = vsel %vm1031, %v3357, 0
      %v3420 = vsel %vm1031, %v3358, 0
      %v3423 = vsel %vm1031, %v3359, 0
      %v3426 = vsel %vm1031, %v3360, 0
      %v3429 = vsel %vm1031, %v3361, 0
      %v3432 = vsel %vm1031, %v3362, 0
      %v3435 = vsel %vm1031, %v3363, 0
      %v3438 = vsel %vm1031, %v3364, 0
      %v3441 = vsel %vm1031, %v3365, 0
      %v3444 = vsel %vm1031, %v3366, 0
      %v3447 = vsel %vm1031, %v3367, 0
      %v3450 = vsel %vm1031, %v3368, 0
      %v3453 = vsel %vm1031, %v3369, 0
      %v3456 = vsel %vm1031, %v3370, 0
      %v3459 = vsel %vm1031, %v3371, 0
      %v3462 = vsel %vm1031, %v3372, 0
      %v3465 = vsel %vm1031, %v3373, 0
      %v3468 = vsel %vm1031, %v3374, 0
      %v3471 = vsel %vm1031, %v3375, 0
      %v3474 = vsel %vm1031, %v3376, 0
      %v3477 = vsel %vm1031, %v3377, 0
      %3479 = vmatprep.subr.mxu0 0.0
      %3480 = vmatpush1.msra.mxu0 %v3379
      %3481 = vmatprep.subr.mxu0 0.0
      %3482 = vmatpush1.msra.mxu0 %v3380
      %3483 = vmatprep.subr.mxu0 0.0
      %3484 = vmatpush1.msra.mxu0 %v3381
      %3485 = vmatprep.subr.mxu0 0.0
      %3486 = vmatpush1.msra.mxu0 %v3382
      %3487 = vmatprep.subr.mxu0 0.0
      %3488 = vmatpush1.msra.mxu0 0.0
      %3489 = vmatprep.subr.mxu0 0.0
      %3490 = vmatpush1.msra.mxu0 0.0
      %3491 = vmatprep.subr.mxu0 0.0
      %3492 = vmatpush1.msra.mxu0 0.0
      %3493 = vmatprep.subr.mxu0 0.0
      %3494 = vmatpush1.msra.mxu0 0.0
      %3495 = vmatprep.subr.mxu0 0.0
      %3496 = vmatpush1.msra.mxu0 0.0
      %3497 = vmatprep.subr.mxu0 0.0
      %3498 = vmatpush1.msra.mxu0 0.0
      %3499 = vmatprep.subr.mxu0 0.0
      %3500 = vmatpush1.msra.mxu0 0.0
      %3501 = vmatprep.subr.mxu0 0.0
      %3502 = vmatpush1.msra.mxu0 0.0
      %3503 = vmatprep.subr.mxu0 0.0
      %3504 = vmatpush1.msra.mxu0 0.0
      %3505 = vmatprep.subr.mxu0 0.0
      %3506 = vmatpush1.msra.mxu0 0.0
      %3507 = vmatprep.subr.mxu0 0.0
      %3508 = vmatpush1.msra.mxu0 0.0
      %3509 = vmatprep.subr.mxu0 0.0
      %3510 = vmatpush1.msra.mxu0 0.0
      %3511 = vmatprep.subr.mxu0 0.0
      %3512 = vmatpush1.msra.mxu0 0.0
      %3513 = vmatprep.subr.mxu0 0.0
      %3514 = vmatpush1.msra.mxu0 0.0
      %3515 = vmatprep.subr.mxu0 0.0
      %3516 = vmatpush1.msra.mxu0 0.0
      %3517 = vmatprep.subr.mxu0 0.0
      %3518 = vmatpush1.msra.mxu0 0.0
      %3519 = vmatprep.subr.mxu0 0.0
      %3520 = vmatpush1.msra.mxu0 0.0
      %3521 = vmatprep.subr.mxu0 0.0
      %3522 = vmatpush1.msra.mxu0 0.0
      %3523 = vmatprep.subr.mxu0 0.0
      %3524 = vmatpush1.msra.mxu0 0.0
      %3525 = vmatprep.subr.mxu0 0.0
      %3526 = vmatpush1.msra.mxu0 0.0
      %3527 = vmatprep.subr.mxu0 0.0
      %3528 = vmatpush1.msra.mxu0 0.0
      %3529 = vmatprep.subr.mxu0 0.0
      %3530 = vmatpush1.msra.mxu0 0.0
      %3531 = vmatprep.subr.mxu0 0.0
      %3532 = vmatpush1.msra.mxu0 0.0
      %3533 = vmatprep.subr.mxu0 0.0
      %3534 = vmatpush1.msra.mxu0 0.0
      %3535 = vmatprep.subr.mxu0 0.0
      %3536 = vmatpush1.msra.mxu0 0.0
      %3537 = vmatprep.subr.mxu0 0.0
      %3538 = vmatpush1.msra.mxu0 0.0
      %3539 = vmatprep.subr.mxu0 0.0
      %3540 = vmatpush1.msra.mxu0 0.0
      %3541 = vmatprep.subr.mxu0 0.0
      %3542 = vmatpush1.msra.mxu0 0.0
      %3543 = vmatprep.mubr.f32.mxu0 0.0
      %3544 = vmatmul.mubr.f32.gmra.mrb[0].mxu0 %v3384
      %v3545 = vpop.f32.mrb[0].mxu0
      %v3546 = vadd.f32 0.0, %v3545
      %v3547 = vpop.f32.mrb[0].mxu0
      %3548 = vmatprep.mubr.f32.mxu0 0.0
      %3549 = vmatmul.mubr.f32.gmra.mrb[0].mxu0 %v3387
      %v3550 = vpop.f32.mrb[0].mxu0
      %v3551 = vadd.f32 0.0, %v3550
      %v3552 = vpop.f32.mrb[0].mxu0
      %3553 = vmatprep.mubr.f32.mxu0 0.0
      %3554 = vmatmul.mubr.f32.gmra.mrb[0].mxu0 %v3390
      %v3555 = vpop.f32.mrb[0].mxu0
      %v3556 = vadd.f32 0.0, %v3555
      %v3557 = vpop.f32.mrb[0].mxu0
      %3558 = vmatprep.mubr.f32.mxu0 0.0
      %3559 = vmatmul.mubr.f32.gmra.mrb[0].mxu0 %v3393
      %v3560 = vpop.f32.mrb[0].mxu0
      %v3561 = vadd.f32 0.0, %v3560
      %v3562 = vpop.f32.mrb[0].mxu0
      %3563 = vmatprep.mubr.f32.mxu0 0.0
      %3564 = vmatmul.mubr.f32.gmra.mrb[0].mxu0 %v3396
      %v3565 = vpop.f32.mrb[0].mxu0
      %v3566 = vadd.f32 0.0, %v3565
      %v3567 = vpop.f32.mrb[0].mxu0
      %3568 = vmatprep.mubr.f32.mxu0 0.0
      %3569 = vmatmul.mubr.f32.gmra.mrb[0].mxu0 %v3399
      %v3570 = vpop.f32.mrb[0].mxu0
      %v3571 = vadd.f32 0.0, %v3570
      %v3572 = vpop.f32.mrb[0].mxu0
      %3573 = vmatprep.mubr.f32.mxu0 0.0
      %3574 = vmatmul.mubr.f32.gmra.mrb[0].mxu0 %v3402
      %v3575 = vpop.f32.mrb[0].mxu0
      %v3576 = vadd.f32 0.0, %v3575
      %v3577 = vpop.f32.mrb[0].mxu0
      %3578 = vmatprep.mubr.f32.mxu0 0.0
      %3579 = vmatmul.mubr.f32.gmra.mrb[0].mxu0 %v3405
      %v3580 = vpop.f32.mrb[0].mxu0
      %v3581 = vadd.f32 0.0, %v3580
      %v3582 = vpop.f32.mrb[0].mxu0
      %3583 = vmatprep.mubr.f32.mxu0 0.0
      %3584 = vmatmul.mubr.f32.gmra.mrb[0].mxu0 %v3408
      %v3585 = vpop.f32.mrb[0].mxu0
      %v3586 = vadd.f32 0.0, %v3585
      %v3587 = vpop.f32.mrb[0].mxu0
      %3588 = vmatprep.mubr.f32.mxu0 0.0
      %3589 = vmatmul.mubr.f32.gmra.mrb[0].mxu0 %v3411
      %v3590 = vpop.f32.mrb[0].mxu0
      %v3591 = vadd.f32 0.0, %v3590
      %v3592 = vpop.f32.mrb[0].mxu0
      %3593 = vmatprep.mubr.f32.mxu0 0.0
      %3594 = vmatmul.mubr.f32.gmra.mrb[0].mxu0 %v3414
      %v3595 = vpop.f32.mrb[0].mxu0
      %v3596 = vadd.f32 0.0, %v3595
      %v3597 = vpop.f32.mrb[0].mxu0
      %3598 = vmatprep.mubr.f32.mxu0 0.0
      %3599 = vmatmul.mubr.f32.gmra.mrb[0].mxu0 %v3417
      %v3600 = vpop.f32.mrb[0].mxu0
      %v3601 = vadd.f32 0.0, %v3600
      %v3602 = vpop.f32.mrb[0].mxu0
      %3603 = vmatprep.mubr.f32.mxu0 0.0
      %3604 = vmatmul.mubr.f32.gmra.mrb[0].mxu0 %v3420
      %v3605 = vpop.f32.mrb[0].mxu0
      %v3606 = vadd.f32 0.0, %v3605
      %v3607 = vpop.f32.mrb[0].mxu0
      %3608 = vmatprep.mubr.f32.mxu0 0.0
      %3609 = vmatmul.mubr.f32.gmra.mrb[0].mxu0 %v3423
      %v3610 = vpop.f32.mrb[0].mxu0
      %v3611 = vadd.f32 0.0, %v3610
      %v3612 = vpop.f32.mrb[0].mxu0
      %3613 = vmatprep.mubr.f32.mxu0 0.0
      %3614 = vmatmul.mubr.f32.gmra.mrb[0].mxu0 %v3426
      %v3615 = vpop.f32.mrb[0].mxu0
      %v3616 = vadd.f32 0.0, %v3615
      %v3617 = vpop.f32.mrb[0].mxu0
      %3618 = vmatprep.mubr.f32.mxu0 0.0
      %3619 = vmatmul.mubr.f32.gmra.mrb[0].mxu0 %v3429
      %v3620 = vpop.f32.mrb[0].mxu0
      %v3621 = vadd.f32 0.0, %v3620
      %v3622 = vpop.f32.mrb[0].mxu0
      %3623 = vmatprep.mubr.f32.mxu0 0.0
      %3624 = vmatmul.mubr.f32.gmra.mrb[0].mxu0 %v3432
      %v3625 = vpop.f32.mrb[0].mxu0
      %v3626 = vadd.f32 0.0, %v3625
      %v3627 = vpop.f32.mrb[0].mxu0
      %3628 = vmatprep.mubr.f32.mxu0 0.0
      %3629 = vmatmul.mubr.f32.gmra.mrb[0].mxu0 %v3435
      %v3630 = vpop.f32.mrb[0].mxu0
      %v3631 = vadd.f32 0.0, %v3630
      %v3632 = vpop.f32.mrb[0].mxu0
      %3633 = vmatprep.mubr.f32.mxu0 0.0
      %3634 = vmatmul.mubr.f32.gmra.mrb[0].mxu0 %v3438
      %v3635 = vpop.f32.mrb[0].mxu0
      %v3636 = vadd.f32 0.0, %v3635
      %v3637 = vpop.f32.mrb[0].mxu0
      %3638 = vmatprep.mubr.f32.mxu0 0.0
      %3639 = vmatmul.mubr.f32.gmra.mrb[0].mxu0 %v3441
      %v3640 = vpop.f32.mrb[0].mxu0
      %v3641 = vadd.f32 0.0, %v3640
      %v3642 = vpop.f32.mrb[0].mxu0
      %3643 = vmatprep.mubr.f32.mxu0 0.0
      %3644 = vmatmul.mubr.f32.gmra.mrb[0].mxu0 %v3444
      %v3645 = vpop.f32.mrb[0].mxu0
      %v3646 = vadd.f32 0.0, %v3645
      %v3647 = vpop.f32.mrb[0].mxu0
      %3648 = vmatprep.mubr.f32.mxu0 0.0
      %3649 = vmatmul.mubr.f32.gmra.mrb[0].mxu0 %v3447
      %v3650 = vpop.f32.mrb[0].mxu0
      %v3651 = vadd.f32 0.0, %v3650
      %v3652 = vpop.f32.mrb[0].mxu0
      %3653 = vmatprep.mubr.f32.mxu0 0.0
      %3654 = vmatmul.mubr.f32.gmra.mrb[0].mxu0 %v3450
      %v3655 = vpop.f32.mrb[0].mxu0
      %v3656 = vadd.f32 0.0, %v3655
      %v3657 = vpop.f32.mrb[0].mxu0
      %3658 = vmatprep.mubr.f32.mxu0 0.0
      %3659 = vmatmul.mubr.f32.gmra.mrb[0].mxu0 %v3453
      %v3660 = vpop.f32.mrb[0].mxu0
      %v3661 = vadd.f32 0.0, %v3660
      %v3662 = vpop.f32.mrb[0].mxu0
      %3663 = vmatprep.mubr.f32.mxu0 0.0
      %3664 = vmatmul.mubr.f32.gmra.mrb[0].mxu0 %v3456
      %v3665 = vpop.f32.mrb[0].mxu0
      %v3666 = vadd.f32 0.0, %v3665
      %v3667 = vpop.f32.mrb[0].mxu0
      %3668 = vmatprep.mubr.f32.mxu0 0.0
      %3669 = vmatmul.mubr.f32.gmra.mrb[0].mxu0 %v3459
      %v3670 = vpop.f32.mrb[0].mxu0
      %v3671 = vadd.f32 0.0, %v3670
      %v3672 = vpop.f32.mrb[0].mxu0
      %3673 = vmatprep.mubr.f32.mxu0 0.0
      %3674 = vmatmul.mubr.f32.gmra.mrb[0].mxu0 %v3462
      %v3675 = vpop.f32.mrb[0].mxu0
      %v3676 = vadd.f32 0.0, %v3675
      %v3677 = vpop.f32.mrb[0].mxu0
      %3678 = vmatprep.mubr.f32.mxu0 0.0
      %3679 = vmatmul.mubr.f32.gmra.mrb[0].mxu0 %v3465
      %v3680 = vpop.f32.mrb[0].mxu0
      %v3681 = vadd.f32 0.0, %v3680
      %v3682 = vpop.f32.mrb[0].mxu0
      %3683 = vmatprep.mubr.f32.mxu0 0.0
      %3684 = vmatmul.mubr.f32.gmra.mrb[0].mxu0 %v3468
      %v3685 = vpop.f32.mrb[0].mxu0
      %v3686 = vadd.f32 0.0, %v3685
      %v3687 = vpop.f32.mrb[0].mxu0
      %3688 = vmatprep.mubr.f32.mxu0 0.0
      %3689 = vmatmul.mubr.f32.gmra.mrb[0].mxu0 %v3471
      %v3690 = vpop.f32.mrb[0].mxu0
      %v3691 = vadd.f32 0.0, %v3690
      %v3692 = vpop.f32.mrb[0].mxu0
      %3693 = vmatprep.mubr.f32.mxu0 0.0
      %3694 = vmatmul.mubr.f32.gmra.mrb[0].mxu0 %v3474
      %v3695 = vpop.f32.mrb[0].mxu0
      %v3696 = vadd.f32 0.0, %v3695
      %v3697 = vpop.f32.mrb[0].mxu0
      %3698 = vmatprep.mubr.f32.mxu0 0.0
      %3699 = vmatmul.mubr.f32.gmra.mrb[0].mxu0 %v3477
      %v3700 = vpop.f32.mrb[0].mxu0
      %v3701 = vadd.f32 0.0, %v3700
      %v3702 = vpop.f32.mrb[0].mxu0
      %3703 = vdwg.mxu0
      %v3704 = vadd.f32 %v3313, %v3546
      %v3705 = vadd.f32 %v3314, %v3551
      %v3706 = vadd.f32 %v3315, %v3556
      %v3707 = vadd.f32 %v3316, %v3561
      %v3708 = vadd.f32 %v3317, %v3566
      %v3709 = vadd.f32 %v3318, %v3571
      %v3710 = vadd.f32 %v3319, %v3576
      %v3711 = vadd.f32 %v3320, %v3581
      %v3712 = vadd.f32 %v3321, %v3586
      %v3713 = vadd.f32 %v3322, %v3591
      %v3714 = vadd.f32 %v3323, %v3596
      %v3715 = vadd.f32 %v3324, %v3601
      %v3716 = vadd.f32 %v3325, %v3606
      %v3717 = vadd.f32 %v3326, %v3611
      %v3718 = vadd.f32 %v3327, %v3616
      %v3719 = vadd.f32 %v3328, %v3621
      %v3720 = vadd.f32 %v3329, %v3626
      %v3721 = vadd.f32 %v3330, %v3631
      %v3722 = vadd.f32 %v3331, %v3636
      %v3723 = vadd.f32 %v3332, %v3641
      %v3724 = vadd.f32 %v3333, %v3646
      %v3725 = vadd.f32 %v3334, %v3651
      %v3726 = vadd.f32 %v3335, %v3656
      %v3727 = vadd.f32 %v3336, %v3661
      %v3728 = vadd.f32 %v3337, %v3666
      %v3729 = vadd.f32 %v3338, %v3671
      %v3730 = vadd.f32 %v3339, %v3676
      %v3731 = vadd.f32 %v3340, %v3681
      %v3732 = vadd.f32 %v3341, %v3686
      %v3733 = vadd.f32 %v3342, %v3691
      %v3734 = vadd.f32 %v3343, %v3696
      %v3735 = vadd.f32 %v3344, %v3701
      %v3736 = vld [vmem:[%s3345 + $0x1] sm:$0xff]
      %v3737 = vld [vmem:[%s3345 + $0x9] sm:$0xff]
      %v3738 = vld [vmem:[%s3345 + $0x19] sm:$0xff]
      %v3739 = vld [vmem:[%s3345 + $0x21] sm:$0xff]
      %v3740 = vld [vmem:[%s3345 + $0x31] sm:$0xff]
      %v3741 = vld [vmem:[%s3345 + $0x39] sm:$0xff]
      %v3742 = vld [vmem:[%s3345 + $0x49] sm:$0xff]
      %v3743 = vld [vmem:[%s3345 + $0x51] sm:$0xff]
      %v3744 = vld [vmem:[%s3345 + $0x61] sm:$0xff]
      %v3745 = vld [vmem:[%s3345 + $0x69] sm:$0xff]
      %v3746 = vld [vmem:[%s3345 + $0x79] sm:$0xff]
      %v3747 = vld [vmem:[%s3345 + $0x81] sm:$0xff]
      %v3748 = vld [vmem:[%s3345 + $0x91] sm:$0xff]
      %v3749 = vld [vmem:[%s3345 + $0x99] sm:$0xff]
      %v3750 = vld [vmem:[%s3345 + $0xa9] sm:$0xff]
      %v3751 = vld [vmem:[%s3345 + $0xb1] sm:$0xff]
      %v3752 = vld [vmem:[%s3345 + $0xc1] sm:$0xff]
      %v3753 = vld [vmem:[%s3345 + $0xc9] sm:$0xff]
      %v3754 = vld [vmem:[%s3345 + $0xd9] sm:$0xff]
      %v3755 = vld [vmem:[%s3345 + $0xe1] sm:$0xff]
      %v3756 = vld [vmem:[%s3345 + $0xf1] sm:$0xff]
      %v3757 = vld [vmem:[%s3345 + $0xf9] sm:$0xff]
      %v3758 = vld [vmem:[%s3345 + $0x109] sm:$0xff]
      %v3759 = vld [vmem:[%s3345 + $0x111] sm:$0xff]
      %v3760 = vld [vmem:[%s3345 + $0x121] sm:$0xff]
      %v3761 = vld [vmem:[%s3345 + $0x129] sm:$0xff]
      %v3762 = vld [vmem:[%s3345 + $0x139] sm:$0xff]
      %v3763 = vld [vmem:[%s3345 + $0x141] sm:$0xff]
      %v3764 = vld [vmem:[%s3345 + $0x151] sm:$0xff]
      %v3765 = vld [vmem:[%s3345 + $0x159] sm:$0xff]
      %v3766 = vld [vmem:[%s3345 + $0x169] sm:$0xff]
      %v3767 = vld [vmem:[%s3345 + $0x171] sm:$0xff]
      %s3768 = scalar_lea.vmem %s4, 224
      %v3769 = vld [vmem:[%s3768] sm:$0xff]
      %v3770 = vld [vmem:[%s3768 + $0x8] sm:$0xff]
      %v3771 = vld [vmem:[%s3768 + $0x10] sm:$0xff]
      %v3772 = vld [vmem:[%s3768 + $0x18] sm:$0xff]
      %v3774 = vsel %vm1031, %v3736, 0
      %v3777 = vsel %vm1031, %v3737, 0
      %v3780 = vsel %vm1031, %v3738, 0
      %v3783 = vsel %vm1031, %v3739, 0
      %v3786 = vsel %vm1031, %v3740, 0
      %v3789 = vsel %vm1031, %v3741, 0
      %v3792 = vsel %vm1031, %v3742, 0
      %v3795 = vsel %vm1031, %v3743, 0
      %v3798 = vsel %vm1031, %v3744, 0
      %v3801 = vsel %vm1031, %v3745, 0
      %v3804 = vsel %vm1031, %v3746, 0
      %v3807 = vsel %vm1031, %v3747, 0
      %v3810 = vsel %vm1031, %v3748, 0
      %v3813 = vsel %vm1031, %v3749, 0
      %v3816 = vsel %vm1031, %v3750, 0
      %v3819 = vsel %vm1031, %v3751, 0
      %v3822 = vsel %vm1031, %v3752, 0
      %v3825 = vsel %vm1031, %v3753, 0
      %v3828 = vsel %vm1031, %v3754, 0
      %v3831 = vsel %vm1031, %v3755, 0
      %v3834 = vsel %vm1031, %v3756, 0
      %v3837 = vsel %vm1031, %v3757, 0
      %v3840 = vsel %vm1031, %v3758, 0
      %v3843 = vsel %vm1031, %v3759, 0
      %v3846 = vsel %vm1031, %v3760, 0
      %v3849 = vsel %vm1031, %v3761, 0
      %v3852 = vsel %vm1031, %v3762, 0
      %v3855 = vsel %vm1031, %v3763, 0
      %v3858 = vsel %vm1031, %v3764, 0
      %v3861 = vsel %vm1031, %v3765, 0
      %v3864 = vsel %vm1031, %v3766, 0
      %v3867 = vsel %vm1031, %v3767, 0
      %3869 = vmatprep.subr.mxu0 0.0
      %3870 = vmatpush1.msra.mxu0 %v3769
      %3871 = vmatprep.subr.mxu0 0.0
      %3872 = vmatpush1.msra.mxu0 %v3770
      %3873 = vmatprep.subr.mxu0 0.0
      %3874 = vmatpush1.msra.mxu0 %v3771
      %3875 = vmatprep.subr.mxu0 0.0
      %3876 = vmatpush1.msra.mxu0 %v3772
      %3877 = vmatprep.subr.mxu0 0.0
      %3878 = vmatpush1.msra.mxu0 0.0
      %3879 = vmatprep.subr.mxu0 0.0
      %3880 = vmatpush1.msra.mxu0 0.0
      %3881 = vmatprep.subr.mxu0 0.0
      %3882 = vmatpush1.msra.mxu0 0.0
      %3883 = vmatprep.subr.mxu0 0.0
      %3884 = vmatpush1.msra.mxu0 0.0
      %3885 = vmatprep.subr.mxu0 0.0
      %3886 = vmatpush1.msra.mxu0 0.0
      %3887 = vmatprep.subr.mxu0 0.0
      %3888 = vmatpush1.msra.mxu0 0.0
      %3889 = vmatprep.subr.mxu0 0.0
      %3890 = vmatpush1.msra.mxu0 0.0
      %3891 = vmatprep.subr.mxu0 0.0
      %3892 = vmatpush1.msra.mxu0 0.0
      %3893 = vmatprep.subr.mxu0 0.0
      %3894 = vmatpush1.msra.mxu0 0.0
      %3895 = vmatprep.subr.mxu0 0.0
      %3896 = vmatpush1.msra.mxu0 0.0
      %3897 = vmatprep.subr.mxu0 0.0
      %3898 = vmatpush1.msra.mxu0 0.0
      %3899 = vmatprep.subr.mxu0 0.0
      %3900 = vmatpush1.msra.mxu0 0.0
      %3901 = vmatprep.subr.mxu0 0.0
      %3902 = vmatpush1.msra.mxu0 0.0
      %3903 = vmatprep.subr.mxu0 0.0
      %3904 = vmatpush1.msra.mxu0 0.0
      %3905 = vmatprep.subr.mxu0 0.0
      %3906 = vmatpush1.msra.mxu0 0.0
      %3907 = vmatprep.subr.mxu0 0.0
      %3908 = vmatpush1.msra.mxu0 0.0
      %3909 = vmatprep.subr.mxu0 0.0
      %3910 = vmatpush1.msra.mxu0 0.0
      %3911 = vmatprep.subr.mxu0 0.0
      %3912 = vmatpush1.msra.mxu0 0.0
      %3913 = vmatprep.subr.mxu0 0.0
      %3914 = vmatpush1.msra.mxu0 0.0
      %3915 = vmatprep.subr.mxu0 0.0
      %3916 = vmatpush1.msra.mxu0 0.0
      %3917 = vmatprep.subr.mxu0 0.0
      %3918 = vmatpush1.msra.mxu0 0.0
      %3919 = vmatprep.subr.mxu0 0.0
      %3920 = vmatpush1.msra.mxu0 0.0
      %3921 = vmatprep.subr.mxu0 0.0
      %3922 = vmatpush1.msra.mxu0 0.0
      %3923 = vmatprep.subr.mxu0 0.0
      %3924 = vmatpush1.msra.mxu0 0.0
      %3925 = vmatprep.subr.mxu0 0.0
      %3926 = vmatpush1.msra.mxu0 0.0
      %3927 = vmatprep.subr.mxu0 0.0
      %3928 = vmatpush1.msra.mxu0 0.0
      %3929 = vmatprep.subr.mxu0 0.0
      %3930 = vmatpush1.msra.mxu0 0.0
      %3931 = vmatprep.subr.mxu0 0.0
      %3932 = vmatpush1.msra.mxu0 0.0
      %3933 = vmatprep.mubr.f32.mxu0 0.0
      %3934 = vmatmul.mubr.f32.gmra.mrb[0].mxu0 %v3774
      %v3935 = vpop.f32.mrb[0].mxu0
      %v3936 = vadd.f32 0.0, %v3935
      %v3937 = vpop.f32.mrb[0].mxu0
      %3938 = vmatprep.mubr.f32.mxu0 0.0
      %3939 = vmatmul.mubr.f32.gmra.mrb[0].mxu0 %v3777
      %v3940 = vpop.f32.mrb[0].mxu0
      %v3941 = vadd.f32 0.0, %v3940
      %v3942 = vpop.f32.mrb[0].mxu0
      %3943 = vmatprep.mubr.f32.mxu0 0.0
      %3944 = vmatmul.mubr.f32.gmra.mrb[0].mxu0 %v3780
      %v3945 = vpop.f32.mrb[0].mxu0
      %v3946 = vadd.f32 0.0, %v3945
      %v3947 = vpop.f32.mrb[0].mxu0
      %3948 = vmatprep.mubr.f32.mxu0 0.0
      %3949 = vmatmul.mubr.f32.gmra.mrb[0].mxu0 %v3783
      %v3950 = vpop.f32.mrb[0].mxu0
      %v3951 = vadd.f32 0.0, %v3950
      %v3952 = vpop.f32.mrb[0].mxu0
      %3953 = vmatprep.mubr.f32.mxu0 0.0
      %3954 = vmatmul.mubr.f32.gmra.mrb[0].mxu0 %v3786
      %v3955 = vpop.f32.mrb[0].mxu0
      %v3956 = vadd.f32 0.0, %v3955
      %v3957 = vpop.f32.mrb[0].mxu0
      %3958 = vmatprep.mubr.f32.mxu0 0.0
      %3959 = vmatmul.mubr.f32.gmra.mrb[0].mxu0 %v3789
      %v3960 = vpop.f32.mrb[0].mxu0
      %v3961 = vadd.f32 0.0, %v3960
      %v3962 = vpop.f32.mrb[0].mxu0
      %3963 = vmatprep.mubr.f32.mxu0 0.0
      %3964 = vmatmul.mubr.f32.gmra.mrb[0].mxu0 %v3792
      %v3965 = vpop.f32.mrb[0].mxu0
      %v3966 = vadd.f32 0.0, %v3965
      %v3967 = vpop.f32.mrb[0].mxu0
      %3968 = vmatprep.mubr.f32.mxu0 0.0
      %3969 = vmatmul.mubr.f32.gmra.mrb[0].mxu0 %v3795
      %v3970 = vpop.f32.mrb[0].mxu0
      %v3971 = vadd.f32 0.0, %v3970
      %v3972 = vpop.f32.mrb[0].mxu0
      %3973 = vmatprep.mubr.f32.mxu0 0.0
      %3974 = vmatmul.mubr.f32.gmra.mrb[0].mxu0 %v3798
      %v3975 = vpop.f32.mrb[0].mxu0
      %v3976 = vadd.f32 0.0, %v3975
      %v3977 = vpop.f32.mrb[0].mxu0
      %3978 = vmatprep.mubr.f32.mxu0 0.0
      %3979 = vmatmul.mubr.f32.gmra.mrb[0].mxu0 %v3801
      %v3980 = vpop.f32.mrb[0].mxu0
      %v3981 = vadd.f32 0.0, %v3980
      %v3982 = vpop.f32.mrb[0].mxu0
      %3983 = vmatprep.mubr.f32.mxu0 0.0
      %3984 = vmatmul.mubr.f32.gmra.mrb[0].mxu0 %v3804
      %v3985 = vpop.f32.mrb[0].mxu0
      %v3986 = vadd.f32 0.0, %v3985
      %v3987 = vpop.f32.mrb[0].mxu0
      %3988 = vmatprep.mubr.f32.mxu0 0.0
      %3989 = vmatmul.mubr.f32.gmra.mrb[0].mxu0 %v3807
      %v3990 = vpop.f32.mrb[0].mxu0
      %v3991 = vadd.f32 0.0, %v3990
      %v3992 = vpop.f32.mrb[0].mxu0
      %3993 = vmatprep.mubr.f32.mxu0 0.0
      %3994 = vmatmul.mubr.f32.gmra.mrb[0].mxu0 %v3810
      %v3995 = vpop.f32.mrb[0].mxu0
      %v3996 = vadd.f32 0.0, %v3995
      %v3997 = vpop.f32.mrb[0].mxu0
      %3998 = vmatprep.mubr.f32.mxu0 0.0
      %3999 = vmatmul.mubr.f32.gmra.mrb[0].mxu0 %v3813
      %v4000 = vpop.f32.mrb[0].mxu0
      %v4001 = vadd.f32 0.0, %v4000
      %v4002 = vpop.f32.mrb[0].mxu0
      %4003 = vmatprep.mubr.f32.mxu0 0.0
      %4004 = vmatmul.mubr.f32.gmra.mrb[0].mxu0 %v3816
      %v4005 = vpop.f32.mrb[0].mxu0
      %v4006 = vadd.f32 0.0, %v4005
      %v4007 = vpop.f32.mrb[0].mxu0
      %4008 = vmatprep.mubr.f32.mxu0 0.0
      %4009 = vmatmul.mubr.f32.gmra.mrb[0].mxu0 %v3819
      %v4010 = vpop.f32.mrb[0].mxu0
      %v4011 = vadd.f32 0.0, %v4010
      %v4012 = vpop.f32.mrb[0].mxu0
      %4013 = vmatprep.mubr.f32.mxu0 0.0
      %4014 = vmatmul.mubr.f32.gmra.mrb[0].mxu0 %v3822
      %v4015 = vpop.f32.mrb[0].mxu0
      %v4016 = vadd.f32 0.0, %v4015
      %v4017 = vpop.f32.mrb[0].mxu0
      %4018 = vmatprep.mubr.f32.mxu0 0.0
      %4019 = vmatmul.mubr.f32.gmra.mrb[0].mxu0 %v3825
      %v4020 = vpop.f32.mrb[0].mxu0
      %v4021 = vadd.f32 0.0, %v4020
      %v4022 = vpop.f32.mrb[0].mxu0
      %4023 = vmatprep.mubr.f32.mxu0 0.0
      %4024 = vmatmul.mubr.f32.gmra.mrb[0].mxu0 %v3828
      %v4025 = vpop.f32.mrb[0].mxu0
      %v4026 = vadd.f32 0.0, %v4025
      %v4027 = vpop.f32.mrb[0].mxu0
      %4028 = vmatprep.mubr.f32.mxu0 0.0
      %4029 = vmatmul.mubr.f32.gmra.mrb[0].mxu0 %v3831
      %v4030 = vpop.f32.mrb[0].mxu0
      %v4031 = vadd.f32 0.0, %v4030
      %v4032 = vpop.f32.mrb[0].mxu0
      %4033 = vmatprep.mubr.f32.mxu0 0.0
      %4034 = vmatmul.mubr.f32.gmra.mrb[0].mxu0 %v3834
      %v4035 = vpop.f32.mrb[0].mxu0
      %v4036 = vadd.f32 0.0, %v4035
      %v4037 = vpop.f32.mrb[0].mxu0
      %4038 = vmatprep.mubr.f32.mxu0 0.0
      %4039 = vmatmul.mubr.f32.gmra.mrb[0].mxu0 %v3837
      %v4040 = vpop.f32.mrb[0].mxu0
      %v4041 = vadd.f32 0.0, %v4040
      %v4042 = vpop.f32.mrb[0].mxu0
      %4043 = vmatprep.mubr.f32.mxu0 0.0
      %4044 = vmatmul.mubr.f32.gmra.mrb[0].mxu0 %v3840
      %v4045 = vpop.f32.mrb[0].mxu0
      %v4046 = vadd.f32 0.0, %v4045
      %v4047 = vpop.f32.mrb[0].mxu0
      %4048 = vmatprep.mubr.f32.mxu0 0.0
      %4049 = vmatmul.mubr.f32.gmra.mrb[0].mxu0 %v3843
      %v4050 = vpop.f32.mrb[0].mxu0
      %v4051 = vadd.f32 0.0, %v4050
      %v4052 = vpop.f32.mrb[0].mxu0
      %4053 = vmatprep.mubr.f32.mxu0 0.0
      %4054 = vmatmul.mubr.f32.gmra.mrb[0].mxu0 %v3846
      %v4055 = vpop.f32.mrb[0].mxu0
      %v4056 = vadd.f32 0.0, %v4055
      %v4057 = vpop.f32.mrb[0].mxu0
      %4058 = vmatprep.mubr.f32.mxu0 0.0
      %4059 = vmatmul.mubr.f32.gmra.mrb[0].mxu0 %v3849
      %v4060 = vpop.f32.mrb[0].mxu0
      %v4061 = vadd.f32 0.0, %v4060
      %v4062 = vpop.f32.mrb[0].mxu0
      %4063 = vmatprep.mubr.f32.mxu0 0.0
      %4064 = vmatmul.mubr.f32.gmra.mrb[0].mxu0 %v3852
      %v4065 = vpop.f32.mrb[0].mxu0
      %v4066 = vadd.f32 0.0, %v4065
      %v4067 = vpop.f32.mrb[0].mxu0
      %4068 = vmatprep.mubr.f32.mxu0 0.0
      %4069 = vmatmul.mubr.f32.gmra.mrb[0].mxu0 %v3855
      %v4070 = vpop.f32.mrb[0].mxu0
      %v4071 = vadd.f32 0.0, %v4070
      %v4072 = vpop.f32.mrb[0].mxu0
      %4073 = vmatprep.mubr.f32.mxu0 0.0
      %4074 = vmatmul.mubr.f32.gmra.mrb[0].mxu0 %v3858
      %v4075 = vpop.f32.mrb[0].mxu0
      %v4076 = vadd.f32 0.0, %v4075
      %v4077 = vpop.f32.mrb[0].mxu0
      %4078 = vmatprep.mubr.f32.mxu0 0.0
      %4079 = vmatmul.mubr.f32.gmra.mrb[0].mxu0 %v3861
      %v4080 = vpop.f32.mrb[0].mxu0
      %v4081 = vadd.f32 0.0, %v4080
      %v4082 = vpop.f32.mrb[0].mxu0
      %4083 = vmatprep.mubr.f32.mxu0 0.0
      %4084 = vmatmul.mubr.f32.gmra.mrb[0].mxu0 %v3864
      %v4085 = vpop.f32.mrb[0].mxu0
      %v4086 = vadd.f32 0.0, %v4085
      %v4087 = vpop.f32.mrb[0].mxu0
      %4088 = vmatprep.mubr.f32.mxu0 0.0
      %4089 = vmatmul.mubr.f32.gmra.mrb[0].mxu0 %v3867
      %v4090 = vpop.f32.mrb[0].mxu0
      %v4091 = vadd.f32 0.0, %v4090
      %v4092 = vpop.f32.mrb[0].mxu0
      %4093 = vdwg.mxu0
      %v4094 = vadd.f32 %v3704, %v3936
      %v4095 = vadd.f32 %v3705, %v3941
      %v4096 = vadd.f32 %v3706, %v3946
      %v4097 = vadd.f32 %v3707, %v3951
      %v4098 = vadd.f32 %v3708, %v3956
      %v4099 = vadd.f32 %v3709, %v3961
      %v4100 = vadd.f32 %v3710, %v3966
      %v4101 = vadd.f32 %v3711, %v3971
      %v4102 = vadd.f32 %v3712, %v3976
      %v4103 = vadd.f32 %v3713, %v3981
      %v4104 = vadd.f32 %v3714, %v3986
      %v4105 = vadd.f32 %v3715, %v3991
      %v4106 = vadd.f32 %v3716, %v3996
      %v4107 = vadd.f32 %v3717, %v4001
      %v4108 = vadd.f32 %v3718, %v4006
      %v4109 = vadd.f32 %v3719, %v4011
      %v4110 = vadd.f32 %v3720, %v4016
      %v4111 = vadd.f32 %v3721, %v4021
      %v4112 = vadd.f32 %v3722, %v4026
      %v4113 = vadd.f32 %v3723, %v4031
      %v4114 = vadd.f32 %v3724, %v4036
      %v4115 = vadd.f32 %v3725, %v4041
      %v4116 = vadd.f32 %v3726, %v4046
      %v4117 = vadd.f32 %v3727, %v4051
      %v4118 = vadd.f32 %v3728, %v4056
      %v4119 = vadd.f32 %v3729, %v4061
      %v4120 = vadd.f32 %v3730, %v4066
      %v4121 = vadd.f32 %v3731, %v4071
      %v4122 = vadd.f32 %v3732, %v4076
      %v4123 = vadd.f32 %v3733, %v4081
      %v4124 = vadd.f32 %v3734, %v4086
      %v4125 = vadd.f32 %v3735, %v4091
      %v4126 = vld [vmem:[%s3345 + $0x2] sm:$0xff]
      %v4127 = vld [vmem:[%s3345 + $0xa] sm:$0xff]
      %v4128 = vld [vmem:[%s3345 + $0x1a] sm:$0xff]
      %v4129 = vld [vmem:[%s3345 + $0x22] sm:$0xff]
      %v4130 = vld [vmem:[%s3345 + $0x32] sm:$0xff]
      %v4131 = vld [vmem:[%s3345 + $0x3a] sm:$0xff]
      %v4132 = vld [vmem:[%s3345 + $0x4a] sm:$0xff]
      %v4133 = vld [vmem:[%s3345 + $0x52] sm:$0xff]
      %v4134 = vld [vmem:[%s3345 + $0x62] sm:$0xff]
      %v4135 = vld [vmem:[%s3345 + $0x6a] sm:$0xff]
      %v4136 = vld [vmem:[%s3345 + $0x7a] sm:$0xff]
      %v4137 = vld [vmem:[%s3345 + $0x82] sm:$0xff]
      %v4138 = vld [vmem:[%s3345 + $0x92] sm:$0xff]
      %v4139 = vld [vmem:[%s3345 + $0x9a] sm:$0xff]
      %v4140 = vld [vmem:[%s3345 + $0xaa] sm:$0xff]
      %v4141 = vld [vmem:[%s3345 + $0xb2] sm:$0xff]
      %v4142 = vld [vmem:[%s3345 + $0xc2] sm:$0xff]
      %v4143 = vld [vmem:[%s3345 + $0xca] sm:$0xff]
      %v4144 = vld [vmem:[%s3345 + $0xda] sm:$0xff]
      %v4145 = vld [vmem:[%s3345 + $0xe2] sm:$0xff]
      %v4146 = vld [vmem:[%s3345 + $0xf2] sm:$0xff]
      %v4147 = vld [vmem:[%s3345 + $0xfa] sm:$0xff]
      %v4148 = vld [vmem:[%s3345 + $0x10a] sm:$0xff]
      %v4149 = vld [vmem:[%s3345 + $0x112] sm:$0xff]
      %v4150 = vld [vmem:[%s3345 + $0x122] sm:$0xff]
      %v4151 = vld [vmem:[%s3345 + $0x12a] sm:$0xff]
      %v4152 = vld [vmem:[%s3345 + $0x13a] sm:$0xff]
      %v4153 = vld [vmem:[%s3345 + $0x142] sm:$0xff]
      %v4154 = vld [vmem:[%s3345 + $0x152] sm:$0xff]
      %v4155 = vld [vmem:[%s3345 + $0x15a] sm:$0xff]
      %v4156 = vld [vmem:[%s3345 + $0x16a] sm:$0xff]
      %v4157 = vld [vmem:[%s3345 + $0x172] sm:$0xff]
      %s4158 = scalar_lea.vmem %s4, 256
      %v4159 = vld [vmem:[%s4158] sm:$0xff]
      %v4160 = vld [vmem:[%s4158 + $0x8] sm:$0xff]
      %v4161 = vld [vmem:[%s4158 + $0x10] sm:$0xff]
      %v4162 = vld [vmem:[%s4158 + $0x18] sm:$0xff]
      %v4164 = vsel %vm1031, %v4126, 0
      %v4167 = vsel %vm1031, %v4127, 0
      %v4170 = vsel %vm1031, %v4128, 0
      %v4173 = vsel %vm1031, %v4129, 0
      %v4176 = vsel %vm1031, %v4130, 0
      %v4179 = vsel %vm1031, %v4131, 0
      %v4182 = vsel %vm1031, %v4132, 0
      %v4185 = vsel %vm1031, %v4133, 0
      %v4188 = vsel %vm1031, %v4134, 0
      %v4191 = vsel %vm1031, %v4135, 0
      %v4194 = vsel %vm1031, %v4136, 0
      %v4197 = vsel %vm1031, %v4137, 0
      %v4200 = vsel %vm1031, %v4138, 0
      %v4203 = vsel %vm1031, %v4139, 0
      %v4206 = vsel %vm1031, %v4140, 0
      %v4209 = vsel %vm1031, %v4141, 0
      %v4212 = vsel %vm1031, %v4142, 0
      %v4215 = vsel %vm1031, %v4143, 0
      %v4218 = vsel %vm1031, %v4144, 0
      %v4221 = vsel %vm1031, %v4145, 0
      %v4224 = vsel %vm1031, %v4146, 0
      %v4227 = vsel %vm1031, %v4147, 0
      %v4230 = vsel %vm1031, %v4148, 0
      %v4233 = vsel %vm1031, %v4149, 0
      %v4236 = vsel %vm1031, %v4150, 0
      %v4239 = vsel %vm1031, %v4151, 0
      %v4242 = vsel %vm1031, %v4152, 0
      %v4245 = vsel %vm1031, %v4153, 0
      %v4248 = vsel %vm1031, %v4154, 0
      %v4251 = vsel %vm1031, %v4155, 0
      %v4254 = vsel %vm1031, %v4156, 0
      %v4257 = vsel %vm1031, %v4157, 0
      %4259 = vmatprep.subr.mxu0 0.0
      %4260 = vmatpush1.msra.mxu0 %v4159
      %4261 = vmatprep.subr.mxu0 0.0
      %4262 = vmatpush1.msra.mxu0 %v4160
      %4263 = vmatprep.subr.mxu0 0.0
      %4264 = vmatpush1.msra.mxu0 %v4161
      %4265 = vmatprep.subr.mxu0 0.0
      %4266 = vmatpush1.msra.mxu0 %v4162
      %4267 = vmatprep.subr.mxu0 0.0
      %4268 = vmatpush1.msra.mxu0 0.0
      %4269 = vmatprep.subr.mxu0 0.0
      %4270 = vmatpush1.msra.mxu0 0.0
      %4271 = vmatprep.subr.mxu0 0.0
      %4272 = vmatpush1.msra.mxu0 0.0
      %4273 = vmatprep.subr.mxu0 0.0
      %4274 = vmatpush1.msra.mxu0 0.0
      %4275 = vmatprep.subr.mxu0 0.0
      %4276 = vmatpush1.msra.mxu0 0.0
      %4277 = vmatprep.subr.mxu0 0.0
      %4278 = vmatpush1.msra.mxu0 0.0
      %4279 = vmatprep.subr.mxu0 0.0
      %4280 = vmatpush1.msra.mxu0 0.0
      %4281 = vmatprep.subr.mxu0 0.0
      %4282 = vmatpush1.msra.mxu0 0.0
      %4283 = vmatprep.subr.mxu0 0.0
      %4284 = vmatpush1.msra.mxu0 0.0
      %4285 = vmatprep.subr.mxu0 0.0
      %4286 = vmatpush1.msra.mxu0 0.0
      %4287 = vmatprep.subr.mxu0 0.0
      %4288 = vmatpush1.msra.mxu0 0.0
      %4289 = vmatprep.subr.mxu0 0.0
      %4290 = vmatpush1.msra.mxu0 0.0
      %4291 = vmatprep.subr.mxu0 0.0
      %4292 = vmatpush1.msra.mxu0 0.0
      %4293 = vmatprep.subr.mxu0 0.0
      %4294 = vmatpush1.msra.mxu0 0.0
      %4295 = vmatprep.subr.mxu0 0.0
      %4296 = vmatpush1.msra.mxu0 0.0
      %4297 = vmatprep.subr.mxu0 0.0
      %4298 = vmatpush1.msra.mxu0 0.0
      %4299 = vmatprep.subr.mxu0 0.0
      %4300 = vmatpush1.msra.mxu0 0.0
      %4301 = vmatprep.subr.mxu0 0.0
      %4302 = vmatpush1.msra.mxu0 0.0
      %4303 = vmatprep.subr.mxu0 0.0
      %4304 = vmatpush1.msra.mxu0 0.0
      %4305 = vmatprep.subr.mxu0 0.0
      %4306 = vmatpush1.msra.mxu0 0.0
      %4307 = vmatprep.subr.mxu0 0.0
      %4308 = vmatpush1.msra.mxu0 0.0
      %4309 = vmatprep.subr.mxu0 0.0
      %4310 = vmatpush1.msra.mxu0 0.0
      %4311 = vmatprep.subr.mxu0 0.0
      %4312 = vmatpush1.msra.mxu0 0.0
      %4313 = vmatprep.subr.mxu0 0.0
      %4314 = vmatpush1.msra.mxu0 0.0
      %4315 = vmatprep.subr.mxu0 0.0
      %4316 = vmatpush1.msra.mxu0 0.0
      %4317 = vmatprep.subr.mxu0 0.0
      %4318 = vmatpush1.msra.mxu0 0.0
      %4319 = vmatprep.subr.mxu0 0.0
      %4320 = vmatpush1.msra.mxu0 0.0
      %4321 = vmatprep.subr.mxu0 0.0
      %4322 = vmatpush1.msra.mxu0 0.0
      %4323 = vmatprep.mubr.f32.mxu0 0.0
      %4324 = vmatmul.mubr.f32.gmra.mrb[0].mxu0 %v4164
      %v4325 = vpop.f32.mrb[0].mxu0
      %v4326 = vadd.f32 0.0, %v4325
      %v4327 = vpop.f32.mrb[0].mxu0
      %4328 = vmatprep.mubr.f32.mxu0 0.0
      %4329 = vmatmul.mubr.f32.gmra.mrb[0].mxu0 %v4167
      %v4330 = vpop.f32.mrb[0].mxu0
      %v4331 = vadd.f32 0.0, %v4330
      %v4332 = vpop.f32.mrb[0].mxu0
      %4333 = vmatprep.mubr.f32.mxu0 0.0
      %4334 = vmatmul.mubr.f32.gmra.mrb[0].mxu0 %v4170
      %v4335 = vpop.f32.mrb[0].mxu0
      %v4336 = vadd.f32 0.0, %v4335
      %v4337 = vpop.f32.mrb[0].mxu0
      %4338 = vmatprep.mubr.f32.mxu0 0.0
      %4339 = vmatmul.mubr.f32.gmra.mrb[0].mxu0 %v4173
      %v4340 = vpop.f32.mrb[0].mxu0
      %v4341 = vadd.f32 0.0, %v4340
      %v4342 = vpop.f32.mrb[0].mxu0
      %4343 = vmatprep.mubr.f32.mxu0 0.0
      %4344 = vmatmul.mubr.f32.gmra.mrb[0].mxu0 %v4176
      %v4345 = vpop.f32.mrb[0].mxu0
      %v4346 = vadd.f32 0.0, %v4345
      %v4347 = vpop.f32.mrb[0].mxu0
      %4348 = vmatprep.mubr.f32.mxu0 0.0
      %4349 = vmatmul.mubr.f32.gmra.mrb[0].mxu0 %v4179
      %v4350 = vpop.f32.mrb[0].mxu0
      %v4351 = vadd.f32 0.0, %v4350
      %v4352 = vpop.f32.mrb[0].mxu0
      %4353 = vmatprep.mubr.f32.mxu0 0.0
      %4354 = vmatmul.mubr.f32.gmra.mrb[0].mxu0 %v4182
      %v4355 = vpop.f32.mrb[0].mxu0
      %v4356 = vadd.f32 0.0, %v4355
      %v4357 = vpop.f32.mrb[0].mxu0
      %4358 = vmatprep.mubr.f32.mxu0 0.0
      %4359 = vmatmul.mubr.f32.gmra.mrb[0].mxu0 %v4185
      %v4360 = vpop.f32.mrb[0].mxu0
      %v4361 = vadd.f32 0.0, %v4360
      %v4362 = vpop.f32.mrb[0].mxu0
      %4363 = vmatprep.mubr.f32.mxu0 0.0
      %4364 = vmatmul.mubr.f32.gmra.mrb[0].mxu0 %v4188
      %v4365 = vpop.f32.mrb[0].mxu0
      %v4366 = vadd.f32 0.0, %v4365
      %v4367 = vpop.f32.mrb[0].mxu0
      %4368 = vmatprep.mubr.f32.mxu0 0.0
      %4369 = vmatmul.mubr.f32.gmra.mrb[0].mxu0 %v4191
      %v4370 = vpop.f32.mrb[0].mxu0
      %v4371 = vadd.f32 0.0, %v4370
      %v4372 = vpop.f32.mrb[0].mxu0
      %4373 = vmatprep.mubr.f32.mxu0 0.0
      %4374 = vmatmul.mubr.f32.gmra.mrb[0].mxu0 %v4194
      %v4375 = vpop.f32.mrb[0].mxu0
      %v4376 = vadd.f32 0.0, %v4375
      %v4377 = vpop.f32.mrb[0].mxu0
      %4378 = vmatprep.mubr.f32.mxu0 0.0
      %4379 = vmatmul.mubr.f32.gmra.mrb[0].mxu0 %v4197
      %v4380 = vpop.f32.mrb[0].mxu0
      %v4381 = vadd.f32 0.0, %v4380
      %v4382 = vpop.f32.mrb[0].mxu0
      %4383 = vmatprep.mubr.f32.mxu0 0.0
      %4384 = vmatmul.mubr.f32.gmra.mrb[0].mxu0 %v4200
      %v4385 = vpop.f32.mrb[0].mxu0
      %v4386 = vadd.f32 0.0, %v4385
      %v4387 = vpop.f32.mrb[0].mxu0
      %4388 = vmatprep.mubr.f32.mxu0 0.0
      %4389 = vmatmul.mubr.f32.gmra.mrb[0].mxu0 %v4203
      %v4390 = vpop.f32.mrb[0].mxu0
      %v4391 = vadd.f32 0.0, %v4390
      %v4392 = vpop.f32.mrb[0].mxu0
      %4393 = vmatprep.mubr.f32.mxu0 0.0
      %4394 = vmatmul.mubr.f32.gmra.mrb[0].mxu0 %v4206
      %v4395 = vpop.f32.mrb[0].mxu0
      %v4396 = vadd.f32 0.0, %v4395
      %v4397 = vpop.f32.mrb[0].mxu0
      %4398 = vmatprep.mubr.f32.mxu0 0.0
      %4399 = vmatmul.mubr.f32.gmra.mrb[0].mxu0 %v4209
      %v4400 = vpop.f32.mrb[0].mxu0
      %v4401 = vadd.f32 0.0, %v4400
      %v4402 = vpop.f32.mrb[0].mxu0
      %4403 = vmatprep.mubr.f32.mxu0 0.0
      %4404 = vmatmul.mubr.f32.gmra.mrb[0].mxu0 %v4212
      %v4405 = vpop.f32.mrb[0].mxu0
      %v4406 = vadd.f32 0.0, %v4405
      %v4407 = vpop.f32.mrb[0].mxu0
      %4408 = vmatprep.mubr.f32.mxu0 0.0
      %4409 = vmatmul.mubr.f32.gmra.mrb[0].mxu0 %v4215
      %v4410 = vpop.f32.mrb[0].mxu0
      %v4411 = vadd.f32 0.0, %v4410
      %v4412 = vpop.f32.mrb[0].mxu0
      %4413 = vmatprep.mubr.f32.mxu0 0.0
      %4414 = vmatmul.mubr.f32.gmra.mrb[0].mxu0 %v4218
      %v4415 = vpop.f32.mrb[0].mxu0
      %v4416 = vadd.f32 0.0, %v4415
      %v4417 = vpop.f32.mrb[0].mxu0
      %4418 = vmatprep.mubr.f32.mxu0 0.0
      %4419 = vmatmul.mubr.f32.gmra.mrb[0].mxu0 %v4221
      %v4420 = vpop.f32.mrb[0].mxu0
      %v4421 = vadd.f32 0.0, %v4420
      %v4422 = vpop.f32.mrb[0].mxu0
      %4423 = vmatprep.mubr.f32.mxu0 0.0
      %4424 = vmatmul.mubr.f32.gmra.mrb[0].mxu0 %v4224
      %v4425 = vpop.f32.mrb[0].mxu0
      %v4426 = vadd.f32 0.0, %v4425
      %v4427 = vpop.f32.mrb[0].mxu0
      %4428 = vmatprep.mubr.f32.mxu0 0.0
      %4429 = vmatmul.mubr.f32.gmra.mrb[0].mxu0 %v4227
      %v4430 = vpop.f32.mrb[0].mxu0
      %v4431 = vadd.f32 0.0, %v4430
      %v4432 = vpop.f32.mrb[0].mxu0
      %4433 = vmatprep.mubr.f32.mxu0 0.0
      %4434 = vmatmul.mubr.f32.gmra.mrb[0].mxu0 %v4230
      %v4435 = vpop.f32.mrb[0].mxu0
      %v4436 = vadd.f32 0.0, %v4435
      %v4437 = vpop.f32.mrb[0].mxu0
      %4438 = vmatprep.mubr.f32.mxu0 0.0
      %4439 = vmatmul.mubr.f32.gmra.mrb[0].mxu0 %v4233
      %v4440 = vpop.f32.mrb[0].mxu0
      %v4441 = vadd.f32 0.0, %v4440
      %v4442 = vpop.f32.mrb[0].mxu0
      %4443 = vmatprep.mubr.f32.mxu0 0.0
      %4444 = vmatmul.mubr.f32.gmra.mrb[0].mxu0 %v4236
      %v4445 = vpop.f32.mrb[0].mxu0
      %v4446 = vadd.f32 0.0, %v4445
      %v4447 = vpop.f32.mrb[0].mxu0
      %4448 = vmatprep.mubr.f32.mxu0 0.0
      %4449 = vmatmul.mubr.f32.gmra.mrb[0].mxu0 %v4239
      %v4450 = vpop.f32.mrb[0].mxu0
      %v4451 = vadd.f32 0.0, %v4450
      %v4452 = vpop.f32.mrb[0].mxu0
      %4453 = vmatprep.mubr.f32.mxu0 0.0
      %4454 = vmatmul.mubr.f32.gmra.mrb[0].mxu0 %v4242
      %v4455 = vpop.f32.mrb[0].mxu0
      %v4456 = vadd.f32 0.0, %v4455
      %v4457 = vpop.f32.mrb[0].mxu0
      %4458 = vmatprep.mubr.f32.mxu0 0.0
      %4459 = vmatmul.mubr.f32.gmra.mrb[0].mxu0 %v4245
      %v4460 = vpop.f32.mrb[0].mxu0
      %v4461 = vadd.f32 0.0, %v4460
      %v4462 = vpop.f32.mrb[0].mxu0
      %4463 = vmatprep.mubr.f32.mxu0 0.0
      %4464 = vmatmul.mubr.f32.gmra.mrb[0].mxu0 %v4248
      %v4465 = vpop.f32.mrb[0].mxu0
      %v4466 = vadd.f32 0.0, %v4465
      %v4467 = vpop.f32.mrb[0].mxu0
      %4468 = vmatprep.mubr.f32.mxu0 0.0
      %4469 = vmatmul.mubr.f32.gmra.mrb[0].mxu0 %v4251
      %v4470 = vpop.f32.mrb[0].mxu0
      %v4471 = vadd.f32 0.0, %v4470
      %v4472 = vpop.f32.mrb[0].mxu0
      %4473 = vmatprep.mubr.f32.mxu0 0.0
      %4474 = vmatmul.mubr.f32.gmra.mrb[0].mxu0 %v4254
      %v4475 = vpop.f32.mrb[0].mxu0
      %v4476 = vadd.f32 0.0, %v4475
      %v4477 = vpop.f32.mrb[0].mxu0
      %4478 = vmatprep.mubr.f32.mxu0 0.0
      %4479 = vmatmul.mubr.f32.gmra.mrb[0].mxu0 %v4257
      %v4480 = vpop.f32.mrb[0].mxu0
      %v4481 = vadd.f32 0.0, %v4480
      %v4482 = vpop.f32.mrb[0].mxu0
      %4483 = vdwg.mxu0
      %v4484 = vadd.f32 %v4094, %v4326
      %v4485 = vadd.f32 %v4095, %v4331
      %v4486 = vadd.f32 %v4096, %v4336
      %v4487 = vadd.f32 %v4097, %v4341
      %v4488 = vadd.f32 %v4098, %v4346
      %v4489 = vadd.f32 %v4099, %v4351
      %v4490 = vadd.f32 %v4100, %v4356
      %v4491 = vadd.f32 %v4101, %v4361
      %v4492 = vadd.f32 %v4102, %v4366
      %v4493 = vadd.f32 %v4103, %v4371
      %v4494 = vadd.f32 %v4104, %v4376
      %v4495 = vadd.f32 %v4105, %v4381
      %v4496 = vadd.f32 %v4106, %v4386
      %v4497 = vadd.f32 %v4107, %v4391
      %v4498 = vadd.f32 %v4108, %v4396
      %v4499 = vadd.f32 %v4109, %v4401
      %v4500 = vadd.f32 %v4110, %v4406
      %v4501 = vadd.f32 %v4111, %v4411
      %v4502 = vadd.f32 %v4112, %v4416
      %v4503 = vadd.f32 %v4113, %v4421
      %v4504 = vadd.f32 %v4114, %v4426
      %v4505 = vadd.f32 %v4115, %v4431
      %v4506 = vadd.f32 %v4116, %v4436
      %v4507 = vadd.f32 %v4117, %v4441
      %v4508 = vadd.f32 %v4118, %v4446
      %v4509 = vadd.f32 %v4119, %v4451
      %v4510 = vadd.f32 %v4120, %v4456
      %v4511 = vadd.f32 %v4121, %v4461
      %v4512 = vadd.f32 %v4122, %v4466
      %v4513 = vadd.f32 %v4123, %v4471
      %v4514 = vadd.f32 %v4124, %v4476
      %v4515 = vadd.f32 %v4125, %v4481
      %4548 = vrot.lane.b32.xlu0 %v4484, 8
      %v4549 = vpop.permute.xlu0 %4548
      %4550 = vrot.lane.b32.xlu0 %v4485, 8
      %v4551 = vpop.permute.xlu0 %4550
      %4552 = vrot.lane.b32.xlu0 %v4486, 8
      %v4553 = vpop.permute.xlu0 %4552
      %4554 = vrot.lane.b32.xlu0 %v4487, 8
      %v4555 = vpop.permute.xlu0 %4554
      %4556 = vrot.lane.b32.xlu0 %v4488, 8
      %v4557 = vpop.permute.xlu0 %4556
      %4558 = vrot.lane.b32.xlu0 %v4489, 8
      %v4559 = vpop.permute.xlu0 %4558
      %4560 = vrot.lane.b32.xlu0 %v4490, 8
      %v4561 = vpop.permute.xlu0 %4560
      %4562 = vrot.lane.b32.xlu0 %v4491, 8
      %v4563 = vpop.permute.xlu0 %4562
      %4564 = vrot.lane.b32.xlu0 %v4492, 8
      %v4565 = vpop.permute.xlu0 %4564
      %4566 = vrot.lane.b32.xlu0 %v4493, 8
      %v4567 = vpop.permute.xlu0 %4566
      %4568 = vrot.lane.b32.xlu0 %v4494, 8
      %v4569 = vpop.permute.xlu0 %4568
      %4570 = vrot.lane.b32.xlu0 %v4495, 8
      %v4571 = vpop.permute.xlu0 %4570
      %4572 = vrot.lane.b32.xlu0 %v4496, 8
      %v4573 = vpop.permute.xlu0 %4572
      %4574 = vrot.lane.b32.xlu0 %v4497, 8
      %v4575 = vpop.permute.xlu0 %4574
      %4576 = vrot.lane.b32.xlu0 %v4498, 8
      %v4577 = vpop.permute.xlu0 %4576
      %4578 = vrot.lane.b32.xlu0 %v4499, 8
      %v4579 = vpop.permute.xlu0 %4578
      %4580 = vrot.lane.b32.xlu0 %v4500, 8
      %v4581 = vpop.permute.xlu0 %4580
      %4582 = vrot.lane.b32.xlu0 %v4501, 8
      %v4583 = vpop.permute.xlu0 %4582
      %4584 = vrot.lane.b32.xlu0 %v4502, 8
      %v4585 = vpop.permute.xlu0 %4584
      %4586 = vrot.lane.b32.xlu0 %v4503, 8
      %v4587 = vpop.permute.xlu0 %4586
      %4588 = vrot.lane.b32.xlu0 %v4504, 8
      %v4589 = vpop.permute.xlu0 %4588
      %4590 = vrot.lane.b32.xlu0 %v4505, 8
      %v4591 = vpop.permute.xlu0 %4590
      %4592 = vrot.lane.b32.xlu0 %v4506, 8
      %v4593 = vpop.permute.xlu0 %4592
      %4594 = vrot.lane.b32.xlu0 %v4507, 8
      %v4595 = vpop.permute.xlu0 %4594
      %4596 = vrot.lane.b32.xlu0 %v4508, 8
      %v4597 = vpop.permute.xlu0 %4596
      %4598 = vrot.lane.b32.xlu0 %v4509, 8
      %v4599 = vpop.permute.xlu0 %4598
      %4600 = vrot.lane.b32.xlu0 %v4510, 8
      %v4601 = vpop.permute.xlu0 %4600
      %4602 = vrot.lane.b32.xlu0 %v4511, 8
      %v4603 = vpop.permute.xlu0 %4602
      %4604 = vrot.lane.b32.xlu0 %v4512, 8
      %v4605 = vpop.permute.xlu0 %4604
      %4606 = vrot.lane.b32.xlu0 %v4513, 8
      %v4607 = vpop.permute.xlu0 %4606
      %4608 = vrot.lane.b32.xlu0 %v4514, 8
      %v4609 = vpop.permute.xlu0 %4608
      %4610 = vrot.lane.b32.xlu0 %v4515, 8
      %v4611 = vpop.permute.xlu0 %4610
      %v4644 = vsel %vm458, %v393, %v4549
      %v4645 = vsel %vm458, %v394, %v4551
      %v4646 = vsel %vm458, %v395, %v4553
      %v4647 = vsel %vm458, %v396, %v4555
      %v4648 = vsel %vm458, %v397, %v4557
      %v4649 = vsel %vm458, %v398, %v4559
      %v4650 = vsel %vm458, %v399, %v4561
      %v4651 = vsel %vm458, %v400, %v4563
      %v4652 = vsel %vm458, %v401, %v4565
      %v4653 = vsel %vm458, %v402, %v4567
      %v4654 = vsel %vm458, %v403, %v4569
      %v4655 = vsel %vm458, %v404, %v4571
      %v4656 = vsel %vm458, %v405, %v4573
      %v4657 = vsel %vm458, %v406, %v4575
      %v4658 = vsel %vm458, %v407, %v4577
      %v4659 = vsel %vm458, %v408, %v4579
      %v4660 = vsel %vm458, %v409, %v4581
      %v4661 = vsel %vm458, %v410, %v4583
      %v4662 = vsel %vm458, %v411, %v4585
      %v4663 = vsel %vm458, %v412, %v4587
      %v4664 = vsel %vm458, %v413, %v4589
      %v4665 = vsel %vm458, %v414, %v4591
      %v4666 = vsel %vm458, %v415, %v4593
      %v4667 = vsel %vm458, %v416, %v4595
      %v4668 = vsel %vm458, %v417, %v4597
      %v4669 = vsel %vm458, %v418, %v4599
      %v4670 = vsel %vm458, %v419, %v4601
      %v4671 = vsel %vm458, %v420, %v4603
      %v4672 = vsel %vm458, %v421, %v4605
      %v4673 = vsel %vm458, %v422, %v4607
      %v4674 = vsel %vm458, %v423, %v4609
      %v4675 = vsel %vm458, %v424, %v4611
      %vm4676 = vcmask 130048
      %4677 = vst.msk [vmem:[%s391] sm:$0xff] %vm4676, %v4644
      %4678 = vst.msk [vmem:[%s391 + $0x8] sm:$0xff] %vm4676, %v4645
      %4679 = vst.msk [vmem:[%s391 + $0x10] sm:$0xff] %vm4676, %v4646
      %4680 = vst.msk [vmem:[%s391 + $0x18] sm:$0xff] %vm4676, %v4647
      %4681 = vst.msk [vmem:[%s391 + $0x20] sm:$0xff] %vm4676, %v4648
      %4682 = vst.msk [vmem:[%s391 + $0x28] sm:$0xff] %vm4676, %v4649
      %4683 = vst.msk [vmem:[%s391 + $0x30] sm:$0xff] %vm4676, %v4650
      %4684 = vst.msk [vmem:[%s391 + $0x38] sm:$0xff] %vm4676, %v4651
      %4685 = vst.msk [vmem:[%s391 + $0x40] sm:$0xff] %vm4676, %v4652
      %4686 = vst.msk [vmem:[%s391 + $0x48] sm:$0xff] %vm4676, %v4653
      %4687 = vst.msk [vmem:[%s391 + $0x50] sm:$0xff] %vm4676, %v4654
      %4688 = vst.msk [vmem:[%s391 + $0x58] sm:$0xff] %vm4676, %v4655
      %4689 = vst.msk [vmem:[%s391 + $0x60] sm:$0xff] %vm4676, %v4656
      %4690 = vst.msk [vmem:[%s391 + $0x68] sm:$0xff] %vm4676, %v4657
      %4691 = vst.msk [vmem:[%s391 + $0x70] sm:$0xff] %vm4676, %v4658
      %4692 = vst.msk [vmem:[%s391 + $0x78] sm:$0xff] %vm4676, %v4659
      %4693 = vst.msk [vmem:[%s391 + $0x80] sm:$0xff] %vm4676, %v4660
      %4694 = vst.msk [vmem:[%s391 + $0x88] sm:$0xff] %vm4676, %v4661
      %4695 = vst.msk [vmem:[%s391 + $0x90] sm:$0xff] %vm4676, %v4662
      %4696 = vst.msk [vmem:[%s391 + $0x98] sm:$0xff] %vm4676, %v4663
      %4697 = vst.msk [vmem:[%s391 + $0xa0] sm:$0xff] %vm4676, %v4664
      %4698 = vst.msk [vmem:[%s391 + $0xa8] sm:$0xff] %vm4676, %v4665
      %4699 = vst.msk [vmem:[%s391 + $0xb0] sm:$0xff] %vm4676, %v4666
      %4700 = vst.msk [vmem:[%s391 + $0xb8] sm:$0xff] %vm4676, %v4667
      %4701 = vst.msk [vmem:[%s391 + $0xc0] sm:$0xff] %vm4676, %v4668
      %4702 = vst.msk [vmem:[%s391 + $0xc8] sm:$0xff] %vm4676, %v4669
      %4703 = vst.msk [vmem:[%s391 + $0xd0] sm:$0xff] %vm4676, %v4670
      %4704 = vst.msk [vmem:[%s391 + $0xd8] sm:$0xff] %vm4676, %v4671
      %4705 = vst.msk [vmem:[%s391 + $0xe0] sm:$0xff] %vm4676, %v4672
      %4706 = vst.msk [vmem:[%s391 + $0xe8] sm:$0xff] %vm4676, %v4673
      %4707 = vst.msk [vmem:[%s391 + $0xf0] sm:$0xff] %vm4676, %v4674
      %4708 = vst.msk [vmem:[%s391 + $0xf8] sm:$0xff] %vm4676, %v4675
      %s4709 = smul.u32 16, %s21
      %p4710 = scmp.lt.s32.totalorder %s20, 1
      %s4711 = scalar_select %p4710, %s20, 1
      %p4712 = scmp.lt.s32.totalorder %s4709, 15
      %s4713 = scalar_select %p4712, %s4709, 15
      %s4714 = smul.addr %s4713, 2
      %s4715 = smul.addr %s4711, 32
      %s4716 = sadd.s32 %s4714, %s4715
      %s4717 = smul.addr %s4716, 8
      %s4718 = scalar_lea.vmem %s5, %s4717
      // Predicated region
      $region41: #{bottleneck_forward.1} parent=39 // pred_check
        %p4719 = pneg %p190
      $region42: #{bottleneck_forward.1} parent=39 // pred_check_branch
        %4721 = sbr.rel (%p4719) target = $region44
      $region43: #{bottleneck_forward.1} parent=39 // pred_region
        %s4722 = smul.u32 16, %s21
      $region44: #{bottleneck_forward.1} parent=39 // pred_fallthru
        _
    $region40: #{bottleneck_forward.1} parent=5 // pred_fallthru
      _
    %p4723 = scmp.le.s32.totalorder 2, %s11
    // Predicated region
    $region45: #{bottleneck_forward.1} parent=5 // pred_check
      %p4724 = pneg %p4723
    $region46: #{bottleneck_forward.1} parent=5 // pred_check_branch
      %4726 = sbr.rel (%p4724) target = $region48
    $region47: #{bottleneck_forward.1} parent=5 // pred_region
      %s4727 = ssub.s32 %s11, 2
      // Predicated region
      $region49: #{bottleneck_forward.1} parent=47 // pred_check
        %p4728 = pneg %p196
      $region50: #{bottleneck_forward.1} parent=47 // pred_check_branch
        %4730 = sbr.rel (%p4728) target = $region52
      $region51: #{bottleneck_forward.1} parent=47 // pred_region
        %s4731 = smul.u32 16, %s23
        %p4732 = scmp.lt.s32.totalorder %s22, 1
        %s4733 = scalar_select %p4732, %s22, 1
        %p4734 = scmp.lt.s32.totalorder %s4731, 15
        %s4735 = scalar_select %p4734, %s4731, 15
        %s4736 = smul.addr %s4735, 2
        %s4737 = smul.addr %s4733, 32
        %s4738 = sadd.s32 %s4736, %s4737
        %s4739 = smul.addr %s4738, 8
        %s4740 = scalar_lea.vmem %s5, %s4739
      $region52: #{bottleneck_forward.1} parent=47 // pred_fallthru
        _
    $region48: #{bottleneck_forward.1} parent=5 // pred_fallthru
      _
  $region6: #{bottleneck_forward.1} parent=0 // loop_footer
    %s15 = sadd.s32 1, %s11
  $region7: #{bottleneck_forward.1} parent=0 // loop_footer_branch
    %10 = sbr.rel target = $region3
  $region8: #{bottleneck_forward.1} parent=0 // loop_exit
    _

</llo_original>
